<compile_context>
chip_gen: v5e
topology: v5e:2x2
jax: 0.10.0
libtpu: 0.0.40
codegen_flags: <defaults>
</compile_context>

<pallas_src>
import functools

import jax
import jax.numpy as jnp
import numpy as np
from jax import lax
from jax.experimental import pallas as pl
from jax.experimental.pallas import tpu as pltpu

EPS = 1e-5  # nn.GroupNorm default


# ---------------------------------------------------------------------------
# In-kernel helpers
# ---------------------------------------------------------------------------
def _group_reduce(v, grp_bf16):
    """Per-lane group sums of the (1, L) f32 row `v` via a 0/1 membership matmul.

    bf16 hi/lo split keeps ~f32 accuracy on the bf16 MXU path; the membership
    matrix entries are 0/1 and therefore bf16-exact.
    """
    v_hi = v.astype(jnp.bfloat16)
    v_lo = (v - v_hi.astype(jnp.float32)).astype(jnp.bfloat16)
    return (jnp.dot(v_hi, grp_bf16, preferred_element_type=jnp.float32)
            + jnp.dot(v_lo, grp_bf16, preferred_element_type=jnp.float32))


def _group_norm(x, gamma, beta, grp, *, inv_count):
    """GroupNorm on a lane-folded (R, L) f32 activation (L = W*C lanes)."""
    s = jnp.sum(x, axis=0, keepdims=True)                        # (1, L)
    mu = _group_reduce(s, grp) * inv_count                       # per-lane mean
    xm = x - mu                                                  # two-pass var
    var = _group_reduce(jnp.sum(xm * xm, axis=0, keepdims=True), grp) * inv_count
    return xm * (lax.rsqrt(var + EPS) * gamma) + beta            # (R, L) f32


def _store_padded(pad_ref, y, D, H):
    """Write y (R, L) into the interior of the (D+2, H+2, L) zero-halo scratch."""
    pad_ref[...] = jnp.zeros_like(pad_ref)   # halo must be re-zeroed every step
    pad_ref[1:D + 1, 1:H + 1, :] = y.reshape(D, H, y.shape[-1]).astype(pad_ref.dtype)


def _conv3x3x3_relu(pad_ref, w_ref, D, H):
    """3x3x3 conv (padding=1, bias=False) + ReLU from the padded VMEM scratch.

    pad_ref: (D+2, H+2, Lin) f32 zero-haloed normalized activation.
    w_ref:   (9*Lin, Lout) bf16 banded weight (kw taps + W zero-pad folded in).
    Returns  (D*H, Lout) f32.
    """
    Lin = pad_ref.shape[-1]
    Lout = w_ref.shape[-1]
    acc = jnp.zeros((D * H, Lout), jnp.float32)
    for dz in range(3):  # K split over dz: 3 accumulating matmuls, 3x less staging
        slabs = [pad_ref[dz:dz + D, dy:dy + H, :]
                 .astype(jnp.bfloat16).reshape(D * H, Lin)       # bf16 slabs
                 for dy in range(3)]
        im = jnp.concatenate(slabs, axis=1)                      # (D*H, 3*Lin) bf16
        acc = acc + jnp.dot(im, w_ref[dz * 3 * Lin:(dz + 1) * 3 * Lin, :],
                            preferred_element_type=jnp.float32)
    return jnp.maximum(acc, 0.0)


# ---------------------------------------------------------------------------
# Fully fused kernel: one batch element per grid step, everything stays in VMEM.
# ---------------------------------------------------------------------------
def _double_conv_kernel(x_ref, g1_ref, b1_ref, grp1_ref, w1_ref,
                        g2_ref, b2_ref, grp2_ref, w2_ref,
                        o_ref, pad1_ref, pad2_ref,
                        *, D, H, C1, C2, num_groups):
    R = D * H
    L1 = x_ref.shape[-1]
    W = L1 // C1

    # ---- Block 1: GroupNorm1 -> padded VMEM scratch -> conv1 -> ReLU ----------
    x = x_ref[...].astype(jnp.float32)                           # (R, L1)
    yn1 = _group_norm(x, g1_ref[...], b1_ref[...], grp1_ref[...],
                      inv_count=1.0 / (R * W * (C1 // num_groups)))
    _store_padded(pad1_ref, yn1, D, H)
    y1 = _conv3x3x3_relu(pad1_ref, w1_ref, D, H)                 # (R, L2) f32, VMEM only

    # ---- Block 2: GroupNorm2 -> padded VMEM scratch -> conv2 -> ReLU ----------
    yn2 = _group_norm(y1, g2_ref[...], b2_ref[...], grp2_ref[...],
                      inv_count=1.0 / (R * W * (C2 // num_groups)))
    _store_padded(pad2_ref, yn2, D, H)
    o_ref[...] = _conv3x3x3_relu(pad2_ref, w2_ref, D, H)         # (R, L3) f32


# ---------------------------------------------------------------------------
# Host-side weight folding / constants
# ---------------------------------------------------------------------------
def _fold_conv_weight(w_pt, W):
    """PyTorch (Cout, Cin, 3, 3, 3) -> banded (9*W*Cin, W*Cout) bf16 matrix.

    Row (dz, dy, w', ci), column (w, co) holds weight[co, ci, dz, dy, w'-w+1]
    when |w'-w| <= 1 and zero otherwise: the kw taps and the zero-padding along
    W are implemented inside the fused matmul (W lives on lanes, never shifted).
    """
    Cout, Cin = w_pt.shape[0], w_pt.shape[1]
    wt = jnp.transpose(w_pt, (2, 3, 4, 1, 0)).astype(jnp.float32)  # (kd,kh,kw,Ci,Co)
    bands = jnp.stack(
        [jnp.eye(W, W, k=1 - dx, dtype=jnp.float32) for dx in range(3)], axis=0)
    b = jnp.einsum("xab,zyxio->zyaibo", bands, wt)  # (3,3,W,Cin,W,Cout)
    return b.reshape(9 * W * Cin, W * Cout).astype(jnp.bfloat16)


def _group_matrix(C, num_groups, W):
    """0/1 (L, L) bf16 matrix: 1 iff the two lanes' channels share a GN group."""
    L = W * C
    gs = C // num_groups
    g = (jnp.arange(L) % C) // gs
    return (g[:, None] == g[None, :]).astype(jnp.bfloat16)


# ---------------------------------------------------------------------------
# DoubleConv3D_GCR forward (matches the PyTorch module)
# ---------------------------------------------------------------------------
@functools.partial(jax.jit, static_argnames=("num_groups",))
def double_conv3d_gcr_forward(x, params, num_groups=8):
    """x: (N, C, D, H, W) NCDHW. params: PyTorch-layout GN/conv tensors."""
    N, C1, D, H, W = x.shape
    C2 = params["conv1_w"].shape[0]
    C3 = params["conv2_w"].shape[0]
    L1, L2, L3 = W * C1, W * C2, W * C3
    R = D * H

    # Lane-folded channels-last layout: rows = D*H, lanes = W*C (128 at W=8,C=16).
    xr = jnp.transpose(x, (0, 2, 3, 4, 1)).reshape(N, R, L1)

    g1 = jnp.tile(params["gn1_w"].astype(jnp.float32), W).reshape(1, L1)
    b1 = jnp.tile(params["gn1_b"].astype(jnp.float32), W).reshape(1, L1)
    g2 = jnp.tile(params["gn2_w"].astype(jnp.float32), W).reshape(1, L2)
    b2 = jnp.tile(params["gn2_b"].astype(jnp.float32), W).reshape(1, L2)
    grp1 = _group_matrix(C1, num_groups, W)
    grp2 = _group_matrix(C2, num_groups, W)
    w1 = _fold_conv_weight(params["conv1_w"], W)   # (9*L1, L2) bf16, resident
    w2 = _fold_conv_weight(params["conv2_w"], W)   # (9*L2, L3) bf16, resident

    kernel = functools.partial(_double_conv_kernel, D=D, H=H, C1=C1, C2=C2,
                               num_groups=num_groups)

    flops = 2 * N * R * 9 * (L1 * L2 + L2 * L3)
    bytes_accessed = (4 * N * R * (L1 + L3)
                      + 2 * (w1.size + w2.size + grp1.size + grp2.size)
                      + 4 * 2 * (L1 + L2))

    out = pl.pallas_call(
        kernel,
        out_shape=jax.ShapeDtypeStruct((N, R, L3), jnp.float32),
        grid=(N,),
        in_specs=[
            pl.BlockSpec((None, R, L1), lambda n: (n, 0, 0)),   # x (per element)
            pl.BlockSpec((1, L1), lambda n: (0, 0)),            # gn1 gamma (resident)
            pl.BlockSpec((1, L1), lambda n: (0, 0)),            # gn1 beta
            pl.BlockSpec((L1, L1), lambda n: (0, 0)),           # group matrix 1
            pl.BlockSpec((9 * L1, L2), lambda n: (0, 0)),       # folded conv1 weight
            pl.BlockSpec((1, L2), lambda n: (0, 0)),            # gn2 gamma
            pl.BlockSpec((1, L2), lambda n: (0, 0)),            # gn2 beta
            pl.BlockSpec((L2, L2), lambda n: (0, 0)),           # group matrix 2
            pl.BlockSpec((9 * L2, L3), lambda n: (0, 0)),       # folded conv2 weight
        ],
        out_specs=pl.BlockSpec((None, R, L3), lambda n: (n, 0, 0)),
        scratch_shapes=[
            pltpu.VMEM((D + 2, H + 2, L1), jnp.float32),  # zero-halo GN1 output
            pltpu.VMEM((D + 2, H + 2, L2), jnp.float32),  # zero-halo GN2 output
        ],
        compiler_params=pltpu.CompilerParams(
            dimension_semantics=("parallel",),
            vmem_limit_bytes=48 * 1024 * 1024),
        cost_estimate=pl.CostEstimate(
            flops=int(flops),
            transcendentals=int(N * (L1 + L2)),
            bytes_accessed=int(bytes_accessed)),
    )(xr, g1, b1, grp1, w1, g2, b2, grp2, w2)

    y = out.reshape(N, D, H, W, C3)
    return jnp.transpose(y, (0, 4, 1, 2, 3))  # back to NCDHW


# ---------------------------------------------------------------------------
# Pure-JAX references (for numerical validation)
# ---------------------------------------------------------------------------
def _reference_forward(x, params, num_groups, matmul_bf16):
    def gn(y, g, b):
        N, D, H, W, C = y.shape
        yr = y.reshape(N, D * H * W, num_groups, C // num_groups)
        mean = yr.mean(axis=(1, 3), keepdims=True)
        var = ((yr - mean) ** 2).mean(axis=(1, 3), keepdims=True)
        yn = (yr - mean) / jnp.sqrt(var + EPS)
        return (yn.reshape(N, D * H * W, C) * g + b).reshape(N, D, H, W, C)

    def conv_relu(y, w_pt):
        w = jnp.transpose(w_pt, (2, 3, 4, 1, 0))  # DHWIO
        if matmul_bf16:
            y = y.astype(jnp.bfloat16)
            w = w.astype(jnp.bfloat16)
        out = lax.conv_general_dilated(
            y, w, window_strides=(1, 1, 1), padding=[(1, 1)] * 3,
            dimension_numbers=("NDHWC", "DHWIO", "NDHWC"),
            preferred_element_type=jnp.float32)
        return jnp.maximum(out, 0.0)

    y = jnp.transpose(x, (0, 2, 3, 4, 1)).astype(jnp.float32)
    y = conv_relu(gn(y, params["gn1_w"], params["gn1_b"]), params["conv1_w"])
    y = conv_relu(gn(y, params["gn2_w"], params["gn2_b"]), params["conv2_w"])
    return jnp.transpose(y, (0, 4, 1, 2, 3))


def _double_conv_channels(input_channels, output_channels, is_encoder):
    # Mirrors DoubleConv3D_GCR.__init__ channel plumbing.
    if is_encoder:
        c1_in = input_channels
        c1_out = max(output_channels // 2, input_channels)
        c2_in, c2_out = c1_out, output_channels
    else:
        c1_in, c1_out = input_channels, output_channels
        c2_in, c2_out = output_channels, output_channels
    return c1_in, c1_out, c2_in, c2_out


# ---------------------------------------------------------------------------
if __name__ == "__main__":
    key = jax.random.PRNGKey(0)
    ks = jax.random.split(key, 8)

    # Decoder-path config: 16 -> 16 channels, 8 groups, 8^3 volume, batch 2.
    N, input_channels, output_channels, num_groups = 2, 16, 16, 8
    D = H = W = 8
    c1_in, c1_out, c2_in, c2_out = _double_conv_channels(
        input_channels, output_channels, is_encoder=False)

    x = jax.random.normal(ks[0], (N, c1_in, D, H, W), jnp.float32)
    params = {
        "gn1_w": 1.0 + 0.1 * jax.random.normal(ks[1], (c1_in,), jnp.float32),
        "gn1_b": 0.1 * jax.random.normal(ks[2], (c1_in,), jnp.float32),
        "conv1_w": 0.05 * jax.random.normal(ks[3], (c1_out, c1_in, 3, 3, 3),
                                            jnp.float32),
        "gn2_w": 1.0 + 0.1 * jax.random.normal(ks[4], (c2_in,), jnp.float32),
        "gn2_b": 0.1 * jax.random.normal(ks[5], (c2_in,), jnp.float32),
        "conv2_w": 0.05 * jax.random.normal(ks[6], (c2_out, c2_in, 3, 3, 3),
                                            jnp.float32),
    }

    out = jax.block_until_ready(
        double_conv3d_gcr_forward(x, params, num_groups=num_groups))
    assert out.shape == (N, c2_out, D, H, W), out.shape

    # Tight check vs. a matched-precision reference (bf16 matmul inputs, f32 acc).
    ref_bf16 = jax.block_until_ready(
        _reference_forward(x, params, num_groups, matmul_bf16=True))
    np.testing.assert_allclose(np.asarray(out), np.asarray(ref_bf16),
                               rtol=2e-3, atol=2e-3)
    # Loose check vs. the full-f32 PyTorch-semantics reference.
    ref_f32 = jax.block_until_ready(
        _reference_forward(x, params, num_groups, matmul_bf16=False))
    np.testing.assert_allclose(np.asarray(out), np.asarray(ref_f32),
                               rtol=5e-2, atol=5e-2)

    print("KERNEL_OK")
</pallas_src>

<mosaic_0001>
module attributes {stable_mosaic.version = 11 : i64} {
  func.func @_double_conv_kernel(%arg0: i32, %arg1: memref<1x64x128xf32, #tpu.memory_space<vmem>>, %arg2: memref<1x128xf32, #tpu.memory_space<vmem>>, %arg3: memref<1x128xf32, #tpu.memory_space<vmem>>, %arg4: memref<128x128xbf16, #tpu.memory_space<vmem>>, %arg5: memref<1152x128xbf16, #tpu.memory_space<vmem>>, %arg6: memref<1x128xf32, #tpu.memory_space<vmem>>, %arg7: memref<1x128xf32, #tpu.memory_space<vmem>>, %arg8: memref<128x128xbf16, #tpu.memory_space<vmem>>, %arg9: memref<1152x128xbf16, #tpu.memory_space<vmem>>, %arg10: memref<1x64x128xf32, #tpu.memory_space<vmem>>, %arg11: memref<10x10x128xf32, #tpu.memory_space<vmem>>, %arg12: memref<10x10x128xf32, #tpu.memory_space<vmem>>) attributes {dimension_semantics = [#tpu.dimension_semantics<parallel>], iteration_bounds = array<i64: 2>, scalar_prefetch = 0 : i64, scratch_operands = 2 : i64, tpu.core_type = #tpu.core_type<tc>, window_params = [{transform_indices = @transform_0, window_bounds = array<i64: 1, 64, 128>}, {pipeline_mode = #tpu.pipeline_mode<synchronous>, transform_indices = @transform_1, window_bounds = array<i64: 1, 128>}, {pipeline_mode = #tpu.pipeline_mode<synchronous>, transform_indices = @transform_2, window_bounds = array<i64: 1, 128>}, {pipeline_mode = #tpu.pipeline_mode<synchronous>, transform_indices = @transform_3, window_bounds = array<i64: 128, 128>}, {pipeline_mode = #tpu.pipeline_mode<synchronous>, transform_indices = @transform_4, window_bounds = array<i64: 1152, 128>}, {pipeline_mode = #tpu.pipeline_mode<synchronous>, transform_indices = @transform_5, window_bounds = array<i64: 1, 128>}, {pipeline_mode = #tpu.pipeline_mode<synchronous>, transform_indices = @transform_6, window_bounds = array<i64: 1, 128>}, {pipeline_mode = #tpu.pipeline_mode<synchronous>, transform_indices = @transform_7, window_bounds = array<i64: 128, 128>}, {pipeline_mode = #tpu.pipeline_mode<synchronous>, transform_indices = @transform_8, window_bounds = array<i64: 1152, 128>}, {transform_indices = @transform_9, window_bounds = array<i64: 1, 64, 128>}]} {
    %c0 = arith.constant 0 : index
    %c0_0 = arith.constant 0 : index
    %c0_1 = arith.constant 0 : index
    %0 = vector.load %arg1[%c0, %c0_0, %c0_1] : memref<1x64x128xf32, #tpu.memory_space<vmem>>, vector<1x64x128xf32>
    %1 = vector.shape_cast %0 : vector<1x64x128xf32> to vector<64x128xf32>
    %c0_2 = arith.constant 0 : index
    %c0_3 = arith.constant 0 : index
    %2 = vector.load %arg2[%c0_2, %c0_3] : memref<1x128xf32, #tpu.memory_space<vmem>>, vector<1x128xf32>
    %c0_4 = arith.constant 0 : index
    %c0_5 = arith.constant 0 : index
    %3 = vector.load %arg3[%c0_4, %c0_5] : memref<1x128xf32, #tpu.memory_space<vmem>>, vector<1x128xf32>
    %c0_6 = arith.constant 0 : index
    %c0_7 = arith.constant 0 : index
    %4 = vector.load %arg4[%c0_6, %c0_7] : memref<128x128xbf16, #tpu.memory_space<vmem>>, vector<128x128xbf16>
    %cst = arith.constant dense<0.000000e+00> : vector<128xf32>
    %5 = vector.multi_reduction <add>, %1, %cst [0] : vector<64x128xf32> to vector<128xf32>
    %6 = vector.shape_cast %5 : vector<128xf32> to vector<1x128xf32>
    %7 = arith.truncf %6 : vector<1x128xf32> to vector<1x128xbf16>
    %8 = arith.extf %7 : vector<1x128xbf16> to vector<1x128xf32>
    %9 = arith.subf %6, %8 : vector<1x128xf32>
    %10 = arith.truncf %9 : vector<1x128xf32> to vector<1x128xbf16>
    %cst_8 = arith.constant dense<0.000000e+00> : vector<1x128xf32>
    %11 = tpu.matmul %7, %4, %cst_8 {dimension_numbers = #tpu.dot_dimension_numbers<[1], [0], [0], [1], [0, 0, 1, 1], [], []>} : vector<1x128xbf16>, vector<128x128xbf16>, vector<1x128xf32> -> vector<1x128xf32>
    %cst_9 = arith.constant dense<0.000000e+00> : vector<1x128xf32>
    %12 = tpu.matmul %10, %4, %cst_9 {dimension_numbers = #tpu.dot_dimension_numbers<[1], [0], [0], [1], [0, 0, 1, 1], [], []>} : vector<1x128xbf16>, vector<128x128xbf16>, vector<1x128xf32> -> vector<1x128xf32>
    %13 = arith.addf %11, %12 : vector<1x128xf32>
    %cst_10 = arith.constant 9.765625E-4 : f32
    %14 = vector.broadcast %cst_10 : f32 to vector<1x128xf32>
    %15 = arith.mulf %13, %14 : vector<1x128xf32>
    %16 = vector.broadcast %15 : vector<1x128xf32> to vector<64x128xf32>
    %17 = arith.subf %1, %16 : vector<64x128xf32>
    %18 = arith.mulf %17, %17 : vector<64x128xf32>
    %cst_11 = arith.constant dense<0.000000e+00> : vector<128xf32>
    %19 = vector.multi_reduction <add>, %18, %cst_11 [0] : vector<64x128xf32> to vector<128xf32>
    %20 = vector.shape_cast %19 : vector<128xf32> to vector<1x128xf32>
    %21 = arith.truncf %20 : vector<1x128xf32> to vector<1x128xbf16>
    %22 = arith.extf %21 : vector<1x128xbf16> to vector<1x128xf32>
    %23 = arith.subf %20, %22 : vector<1x128xf32>
    %24 = arith.truncf %23 : vector<1x128xf32> to vector<1x128xbf16>
    %cst_12 = arith.constant dense<0.000000e+00> : vector<1x128xf32>
    %25 = tpu.matmul %21, %4, %cst_12 {dimension_numbers = #tpu.dot_dimension_numbers<[1], [0], [0], [1], [0, 0, 1, 1], [], []>} : vector<1x128xbf16>, vector<128x128xbf16>, vector<1x128xf32> -> vector<1x128xf32>
    %cst_13 = arith.constant dense<0.000000e+00> : vector<1x128xf32>
    %26 = tpu.matmul %24, %4, %cst_13 {dimension_numbers = #tpu.dot_dimension_numbers<[1], [0], [0], [1], [0, 0, 1, 1], [], []>} : vector<1x128xbf16>, vector<128x128xbf16>, vector<1x128xf32> -> vector<1x128xf32>
    %27 = arith.addf %25, %26 : vector<1x128xf32>
    %cst_14 = arith.constant 9.765625E-4 : f32
    %28 = vector.broadcast %cst_14 : f32 to vector<1x128xf32>
    %29 = arith.mulf %27, %28 : vector<1x128xf32>
    %cst_15 = arith.constant 9.99999974E-6 : f32
    %30 = vector.broadcast %cst_15 : f32 to vector<1x128xf32>
    %31 = arith.addf %29, %30 : vector<1x128xf32>
    %32 = math.rsqrt %31 : vector<1x128xf32>
    %33 = arith.mulf %32, %2 : vector<1x128xf32>
    %34 = vector.broadcast %33 : vector<1x128xf32> to vector<64x128xf32>
    %35 = arith.mulf %17, %34 : vector<64x128xf32>
    %36 = vector.broadcast %3 : vector<1x128xf32> to vector<64x128xf32>
    %37 = arith.addf %35, %36 : vector<64x128xf32>
    %cst_16 = arith.constant 0.000000e+00 : f32
    %38 = vector.broadcast %cst_16 : f32 to vector<10x10x128xf32>
    %c0_17 = arith.constant 0 : index
    %c0_18 = arith.constant 0 : index
    %c0_19 = arith.constant 0 : index
    %39 = vector.load %arg11[%c0_17, %c0_18, %c0_19] : memref<10x10x128xf32, #tpu.memory_space<vmem>>, vector<10x10x128xf32>
    tpu.vector_store %arg11[%c0_17, %c0_18, %c0_19], %38 {strides = array<i32>} : memref<10x10x128xf32, #tpu.memory_space<vmem>>, vector<10x10x128xf32>,
    %40 = vector.shape_cast %37 : vector<64x128xf32> to vector<8x8x128xf32>
    %c1 = arith.constant 1 : index
    %c1_20 = arith.constant 1 : index
    %c0_21 = arith.constant 0 : index
    %41 = vector.load %arg11[%c1, %c1_20, %c0_21] : memref<10x10x128xf32, #tpu.memory_space<vmem>>, vector<8x8x128xf32>
    tpu.vector_store %arg11[%c1, %c1_20, %c0_21], %40 {strides = array<i32>} : memref<10x10x128xf32, #tpu.memory_space<vmem>>, vector<8x8x128xf32>,
    %cst_22 = arith.constant 0.000000e+00 : f32
    %42 = vector.broadcast %cst_22 : f32 to vector<64x128xf32>
    %c0_23 = arith.constant 0 : index
    %c0_24 = arith.constant 0 : index
    %c0_25 = arith.constant 0 : index
    %43 = vector.load %arg11[%c0_23, %c0_24, %c0_25] : memref<10x10x128xf32, #tpu.memory_space<vmem>>, vector<8x8x128xf32>
    %44 = arith.truncf %43 : vector<8x8x128xf32> to vector<8x8x128xbf16>
    %45 = vector.shape_cast %44 : vector<8x8x128xbf16> to vector<64x128xbf16>
    %c0_26 = arith.constant 0 : index
    %c1_27 = arith.constant 1 : index
    %c0_28 = arith.constant 0 : index
    %46 = vector.load %arg11[%c0_26, %c1_27, %c0_28] : memref<10x10x128xf32, #tpu.memory_space<vmem>>, vector<8x8x128xf32>
    %47 = arith.truncf %46 : vector<8x8x128xf32> to vector<8x8x128xbf16>
    %48 = vector.shape_cast %47 : vector<8x8x128xbf16> to vector<64x128xbf16>
    %c0_29 = arith.constant 0 : index
    %c2 = arith.constant 2 : index
    %c0_30 = arith.constant 0 : index
    %49 = vector.load %arg11[%c0_29, %c2, %c0_30] : memref<10x10x128xf32, #tpu.memory_space<vmem>>, vector<8x8x128xf32>
    %50 = arith.truncf %49 : vector<8x8x128xf32> to vector<8x8x128xbf16>
    %51 = vector.shape_cast %50 : vector<8x8x128xbf16> to vector<64x128xbf16>
    %52 = tpu.concatenate %45, %48, %51 in 1 : vector<64x128xbf16>, vector<64x128xbf16>, vector<64x128xbf16> -> vector<64x384xbf16>
    %c0_31 = arith.constant 0 : index
    %c0_32 = arith.constant 0 : index
    %53 = vector.load %arg5[%c0_31, %c0_32] : memref<1152x128xbf16, #tpu.memory_space<vmem>>, vector<384x128xbf16>
    %cst_33 = arith.constant dense<0.000000e+00> : vector<64x128xf32>
    %54 = tpu.matmul %52, %53, %cst_33 {dimension_numbers = #tpu.dot_dimension_numbers<[1], [0], [0], [1], [0, 0, 1, 1], [], []>} : vector<64x384xbf16>, vector<384x128xbf16>, vector<64x128xf32> -> vector<64x128xf32>
    %55 = arith.addf %42, %54 : vector<64x128xf32>
    %c1_34 = arith.constant 1 : index
    %c0_35 = arith.constant 0 : index
    %c0_36 = arith.constant 0 : index
    %56 = vector.load %arg11[%c1_34, %c0_35, %c0_36] : memref<10x10x128xf32, #tpu.memory_space<vmem>>, vector<8x8x128xf32>
    %57 = arith.truncf %56 : vector<8x8x128xf32> to vector<8x8x128xbf16>
    %58 = vector.shape_cast %57 : vector<8x8x128xbf16> to vector<64x128xbf16>
    %c1_37 = arith.constant 1 : index
    %c1_38 = arith.constant 1 : index
    %c0_39 = arith.constant 0 : index
    %59 = vector.load %arg11[%c1_37, %c1_38, %c0_39] : memref<10x10x128xf32, #tpu.memory_space<vmem>>, vector<8x8x128xf32>
    %60 = arith.truncf %59 : vector<8x8x128xf32> to vector<8x8x128xbf16>
    %61 = vector.shape_cast %60 : vector<8x8x128xbf16> to vector<64x128xbf16>
    %c1_40 = arith.constant 1 : index
    %c2_41 = arith.constant 2 : index
    %c0_42 = arith.constant 0 : index
    %62 = vector.load %arg11[%c1_40, %c2_41, %c0_42] : memref<10x10x128xf32, #tpu.memory_space<vmem>>, vector<8x8x128xf32>
    %63 = arith.truncf %62 : vector<8x8x128xf32> to vector<8x8x128xbf16>
    %64 = vector.shape_cast %63 : vector<8x8x128xbf16> to vector<64x128xbf16>
    %65 = tpu.concatenate %58, %61, %64 in 1 : vector<64x128xbf16>, vector<64x128xbf16>, vector<64x128xbf16> -> vector<64x384xbf16>
    %c384 = arith.constant 384 : index
    %c0_43 = arith.constant 0 : index
    %66 = vector.load %arg5[%c384, %c0_43] : memref<1152x128xbf16, #tpu.memory_space<vmem>>, vector<384x128xbf16>
    %cst_44 = arith.constant dense<0.000000e+00> : vector<64x128xf32>
    %67 = tpu.matmul %65, %66, %cst_44 {dimension_numbers = #tpu.dot_dimension_numbers<[1], [0], [0], [1], [0, 0, 1, 1], [], []>} : vector<64x384xbf16>, vector<384x128xbf16>, vector<64x128xf32> -> vector<64x128xf32>
    %68 = arith.addf %55, %67 : vector<64x128xf32>
    %c2_45 = arith.constant 2 : index
    %c0_46 = arith.constant 0 : index
    %c0_47 = arith.constant 0 : index
    %69 = vector.load %arg11[%c2_45, %c0_46, %c0_47] : memref<10x10x128xf32, #tpu.memory_space<vmem>>, vector<8x8x128xf32>
    %70 = arith.truncf %69 : vector<8x8x128xf32> to vector<8x8x128xbf16>
    %71 = vector.shape_cast %70 : vector<8x8x128xbf16> to vector<64x128xbf16>
    %c2_48 = arith.constant 2 : index
    %c1_49 = arith.constant 1 : index
    %c0_50 = arith.constant 0 : index
    %72 = vector.load %arg11[%c2_48, %c1_49, %c0_50] : memref<10x10x128xf32, #tpu.memory_space<vmem>>, vector<8x8x128xf32>
    %73 = arith.truncf %72 : vector<8x8x128xf32> to vector<8x8x128xbf16>
    %74 = vector.shape_cast %73 : vector<8x8x128xbf16> to vector<64x128xbf16>
    %c2_51 = arith.constant 2 : index
    %c2_52 = arith.constant 2 : index
    %c0_53 = arith.constant 0 : index
    %75 = vector.load %arg11[%c2_51, %c2_52, %c0_53] : memref<10x10x128xf32, #tpu.memory_space<vmem>>, vector<8x8x128xf32>
    %76 = arith.truncf %75 : vector<8x8x128xf32> to vector<8x8x128xbf16>
    %77 = vector.shape_cast %76 : vector<8x8x128xbf16> to vector<64x128xbf16>
    %78 = tpu.concatenate %71, %74, %77 in 1 : vector<64x128xbf16>, vector<64x128xbf16>, vector<64x128xbf16> -> vector<64x384xbf16>
    %c768 = arith.constant 768 : index
    %c0_54 = arith.constant 0 : index
    %79 = vector.load %arg5[%c768, %c0_54] : memref<1152x128xbf16, #tpu.memory_space<vmem>>, vector<384x128xbf16>
    %cst_55 = arith.constant dense<0.000000e+00> : vector<64x128xf32>
    %80 = tpu.matmul %78, %79, %cst_55 {dimension_numbers = #tpu.dot_dimension_numbers<[1], [0], [0], [1], [0, 0, 1, 1], [], []>} : vector<64x384xbf16>, vector<384x128xbf16>, vector<64x128xf32> -> vector<64x128xf32>
    %81 = arith.addf %68, %80 : vector<64x128xf32>
    %cst_56 = arith.constant 0.000000e+00 : f32
    %82 = vector.broadcast %cst_56 : f32 to vector<64x128xf32>
    %83 = arith.maximumf %81, %82 : vector<64x128xf32>
    %c0_57 = arith.constant 0 : index
    %c0_58 = arith.constant 0 : index
    %84 = vector.load %arg6[%c0_57, %c0_58] : memref<1x128xf32, #tpu.memory_space<vmem>>, vector<1x128xf32>
    %c0_59 = arith.constant 0 : index
    %c0_60 = arith.constant 0 : index
    %85 = vector.load %arg7[%c0_59, %c0_60] : memref<1x128xf32, #tpu.memory_space<vmem>>, vector<1x128xf32>
    %c0_61 = arith.constant 0 : index
    %c0_62 = arith.constant 0 : index
    %86 = vector.load %arg8[%c0_61, %c0_62] : memref<128x128xbf16, #tpu.memory_space<vmem>>, vector<128x128xbf16>
    %cst_63 = arith.constant dense<0.000000e+00> : vector<128xf32>
    %87 = vector.multi_reduction <add>, %83, %cst_63 [0] : vector<64x128xf32> to vector<128xf32>
    %88 = vector.shape_cast %87 : vector<128xf32> to vector<1x128xf32>
    %89 = arith.truncf %88 : vector<1x128xf32> to vector<1x128xbf16>
    %90 = arith.extf %89 : vector<1x128xbf16> to vector<1x128xf32>
    %91 = arith.subf %88, %90 : vector<1x128xf32>
    %92 = arith.truncf %91 : vector<1x128xf32> to vector<1x128xbf16>
    %cst_64 = arith.constant dense<0.000000e+00> : vector<1x128xf32>
    %93 = tpu.matmul %89, %86, %cst_64 {dimension_numbers = #tpu.dot_dimension_numbers<[1], [0], [0], [1], [0, 0, 1, 1], [], []>} : vector<1x128xbf16>, vector<128x128xbf16>, vector<1x128xf32> -> vector<1x128xf32>
    %cst_65 = arith.constant dense<0.000000e+00> : vector<1x128xf32>
    %94 = tpu.matmul %92, %86, %cst_65 {dimension_numbers = #tpu.dot_dimension_numbers<[1], [0], [0], [1], [0, 0, 1, 1], [], []>} : vector<1x128xbf16>, vector<128x128xbf16>, vector<1x128xf32> -> vector<1x128xf32>
    %95 = arith.addf %93, %94 : vector<1x128xf32>
    %cst_66 = arith.constant 9.765625E-4 : f32
    %96 = vector.broadcast %cst_66 : f32 to vector<1x128xf32>
    %97 = arith.mulf %95, %96 : vector<1x128xf32>
    %98 = vector.broadcast %97 : vector<1x128xf32> to vector<64x128xf32>
    %99 = arith.subf %83, %98 : vector<64x128xf32>
    %100 = arith.mulf %99, %99 : vector<64x128xf32>
    %cst_67 = arith.constant dense<0.000000e+00> : vector<128xf32>
    %101 = vector.multi_reduction <add>, %100, %cst_67 [0] : vector<64x128xf32> to vector<128xf32>
    %102 = vector.shape_cast %101 : vector<128xf32> to vector<1x128xf32>
    %103 = arith.truncf %102 : vector<1x128xf32> to vector<1x128xbf16>
    %104 = arith.extf %103 : vector<1x128xbf16> to vector<1x128xf32>
    %105 = arith.subf %102, %104 : vector<1x128xf32>
    %106 = arith.truncf %105 : vector<1x128xf32> to vector<1x128xbf16>
    %cst_68 = arith.constant dense<0.000000e+00> : vector<1x128xf32>
    %107 = tpu.matmul %103, %86, %cst_68 {dimension_numbers = #tpu.dot_dimension_numbers<[1], [0], [0], [1], [0, 0, 1, 1], [], []>} : vector<1x128xbf16>, vector<128x128xbf16>, vector<1x128xf32> -> vector<1x128xf32>
    %cst_69 = arith.constant dense<0.000000e+00> : vector<1x128xf32>
    %108 = tpu.matmul %106, %86, %cst_69 {dimension_numbers = #tpu.dot_dimension_numbers<[1], [0], [0], [1], [0, 0, 1, 1], [], []>} : vector<1x128xbf16>, vector<128x128xbf16>, vector<1x128xf32> -> vector<1x128xf32>
    %109 = arith.addf %107, %108 : vector<1x128xf32>
    %cst_70 = arith.constant 9.765625E-4 : f32
    %110 = vector.broadcast %cst_70 : f32 to vector<1x128xf32>
    %111 = arith.mulf %109, %110 : vector<1x128xf32>
    %cst_71 = arith.constant 9.99999974E-6 : f32
    %112 = vector.broadcast %cst_71 : f32 to vector<1x128xf32>
    %113 = arith.addf %111, %112 : vector<1x128xf32>
    %114 = math.rsqrt %113 : vector<1x128xf32>
    %115 = arith.mulf %114, %84 : vector<1x128xf32>
    %116 = vector.broadcast %115 : vector<1x128xf32> to vector<64x128xf32>
    %117 = arith.mulf %99, %116 : vector<64x128xf32>
    %118 = vector.broadcast %85 : vector<1x128xf32> to vector<64x128xf32>
    %119 = arith.addf %117, %118 : vector<64x128xf32>
    %cst_72 = arith.constant 0.000000e+00 : f32
    %120 = vector.broadcast %cst_72 : f32 to vector<10x10x128xf32>
    %c0_73 = arith.constant 0 : index
    %c0_74 = arith.constant 0 : index
    %c0_75 = arith.constant 0 : index
    %121 = vector.load %arg12[%c0_73, %c0_74, %c0_75] : memref<10x10x128xf32, #tpu.memory_space<vmem>>, vector<10x10x128xf32>
    tpu.vector_store %arg12[%c0_73, %c0_74, %c0_75], %120 {strides = array<i32>} : memref<10x10x128xf32, #tpu.memory_space<vmem>>, vector<10x10x128xf32>,
    %122 = vector.shape_cast %119 : vector<64x128xf32> to vector<8x8x128xf32>
    %c1_76 = arith.constant 1 : index
    %c1_77 = arith.constant 1 : index
    %c0_78 = arith.constant 0 : index
    %123 = vector.load %arg12[%c1_76, %c1_77, %c0_78] : memref<10x10x128xf32, #tpu.memory_space<vmem>>, vector<8x8x128xf32>
    tpu.vector_store %arg12[%c1_76, %c1_77, %c0_78], %122 {strides = array<i32>} : memref<10x10x128xf32, #tpu.memory_space<vmem>>, vector<8x8x128xf32>,
    %cst_79 = arith.constant 0.000000e+00 : f32
    %124 = vector.broadcast %cst_79 : f32 to vector<64x128xf32>
    %c0_80 = arith.constant 0 : index
    %c0_81 = arith.constant 0 : index
    %c0_82 = arith.constant 0 : index
    %125 = vector.load %arg12[%c0_80, %c0_81, %c0_82] : memref<10x10x128xf32, #tpu.memory_space<vmem>>, vector<8x8x128xf32>
    %126 = arith.truncf %125 : vector<8x8x128xf32> to vector<8x8x128xbf16>
    %127 = vector.shape_cast %126 : vector<8x8x128xbf16> to vector<64x128xbf16>
    %c0_83 = arith.constant 0 : index
    %c1_84 = arith.constant 1 : index
    %c0_85 = arith.constant 0 : index
    %128 = vector.load %arg12[%c0_83, %c1_84, %c0_85] : memref<10x10x128xf32, #tpu.memory_space<vmem>>, vector<8x8x128xf32>
    %129 = arith.truncf %128 : vector<8x8x128xf32> to vector<8x8x128xbf16>
    %130 = vector.shape_cast %129 : vector<8x8x128xbf16> to vector<64x128xbf16>
    %c0_86 = arith.constant 0 : index
    %c2_87 = arith.constant 2 : index
    %c0_88 = arith.constant 0 : index
    %131 = vector.load %arg12[%c0_86, %c2_87, %c0_88] : memref<10x10x128xf32, #tpu.memory_space<vmem>>, vector<8x8x128xf32>
    %132 = arith.truncf %131 : vector<8x8x128xf32> to vector<8x8x128xbf16>
    %133 = vector.shape_cast %132 : vector<8x8x128xbf16> to vector<64x128xbf16>
    %134 = tpu.concatenate %127, %130, %133 in 1 : vector<64x128xbf16>, vector<64x128xbf16>, vector<64x128xbf16> -> vector<64x384xbf16>
    %c0_89 = arith.constant 0 : index
    %c0_90 = arith.constant 0 : index
    %135 = vector.load %arg9[%c0_89, %c0_90] : memref<1152x128xbf16, #tpu.memory_space<vmem>>, vector<384x128xbf16>
    %cst_91 = arith.constant dense<0.000000e+00> : vector<64x128xf32>
    %136 = tpu.matmul %134, %135, %cst_91 {dimension_numbers = #tpu.dot_dimension_numbers<[1], [0], [0], [1], [0, 0, 1, 1], [], []>} : vector<64x384xbf16>, vector<384x128xbf16>, vector<64x128xf32> -> vector<64x128xf32>
    %137 = arith.addf %124, %136 : vector<64x128xf32>
    %c1_92 = arith.constant 1 : index
    %c0_93 = arith.constant 0 : index
    %c0_94 = arith.constant 0 : index
    %138 = vector.load %arg12[%c1_92, %c0_93, %c0_94] : memref<10x10x128xf32, #tpu.memory_space<vmem>>, vector<8x8x128xf32>
    %139 = arith.truncf %138 : vector<8x8x128xf32> to vector<8x8x128xbf16>
    %140 = vector.shape_cast %139 : vector<8x8x128xbf16> to vector<64x128xbf16>
    %c1_95 = arith.constant 1 : index
    %c1_96 = arith.constant 1 : index
    %c0_97 = arith.constant 0 : index
    %141 = vector.load %arg12[%c1_95, %c1_96, %c0_97] : memref<10x10x128xf32, #tpu.memory_space<vmem>>, vector<8x8x128xf32>
    %142 = arith.truncf %141 : vector<8x8x128xf32> to vector<8x8x128xbf16>
    %143 = vector.shape_cast %142 : vector<8x8x128xbf16> to vector<64x128xbf16>
    %c1_98 = arith.constant 1 : index
    %c2_99 = arith.constant 2 : index
    %c0_100 = arith.constant 0 : index
    %144 = vector.load %arg12[%c1_98, %c2_99, %c0_100] : memref<10x10x128xf32, #tpu.memory_space<vmem>>, vector<8x8x128xf32>
    %145 = arith.truncf %144 : vector<8x8x128xf32> to vector<8x8x128xbf16>
    %146 = vector.shape_cast %145 : vector<8x8x128xbf16> to vector<64x128xbf16>
    %147 = tpu.concatenate %140, %143, %146 in 1 : vector<64x128xbf16>, vector<64x128xbf16>, vector<64x128xbf16> -> vector<64x384xbf16>
    %c384_101 = arith.constant 384 : index
    %c0_102 = arith.constant 0 : index
    %148 = vector.load %arg9[%c384_101, %c0_102] : memref<1152x128xbf16, #tpu.memory_space<vmem>>, vector<384x128xbf16>
    %cst_103 = arith.constant dense<0.000000e+00> : vector<64x128xf32>
    %149 = tpu.matmul %147, %148, %cst_103 {dimension_numbers = #tpu.dot_dimension_numbers<[1], [0], [0], [1], [0, 0, 1, 1], [], []>} : vector<64x384xbf16>, vector<384x128xbf16>, vector<64x128xf32> -> vector<64x128xf32>
    %150 = arith.addf %137, %149 : vector<64x128xf32>
    %c2_104 = arith.constant 2 : index
    %c0_105 = arith.constant 0 : index
    %c0_106 = arith.constant 0 : index
    %151 = vector.load %arg12[%c2_104, %c0_105, %c0_106] : memref<10x10x128xf32, #tpu.memory_space<vmem>>, vector<8x8x128xf32>
    %152 = arith.truncf %151 : vector<8x8x128xf32> to vector<8x8x128xbf16>
    %153 = vector.shape_cast %152 : vector<8x8x128xbf16> to vector<64x128xbf16>
    %c2_107 = arith.constant 2 : index
    %c1_108 = arith.constant 1 : index
    %c0_109 = arith.constant 0 : index
    %154 = vector.load %arg12[%c2_107, %c1_108, %c0_109] : memref<10x10x128xf32, #tpu.memory_space<vmem>>, vector<8x8x128xf32>
    %155 = arith.truncf %154 : vector<8x8x128xf32> to vector<8x8x128xbf16>
    %156 = vector.shape_cast %155 : vector<8x8x128xbf16> to vector<64x128xbf16>
    %c2_110 = arith.constant 2 : index
    %c2_111 = arith.constant 2 : index
    %c0_112 = arith.constant 0 : index
    %157 = vector.load %arg12[%c2_110, %c2_111, %c0_112] : memref<10x10x128xf32, #tpu.memory_space<vmem>>, vector<8x8x128xf32>
    %158 = arith.truncf %157 : vector<8x8x128xf32> to vector<8x8x128xbf16>
    %159 = vector.shape_cast %158 : vector<8x8x128xbf16> to vector<64x128xbf16>
    %160 = tpu.concatenate %153, %156, %159 in 1 : vector<64x128xbf16>, vector<64x128xbf16>, vector<64x128xbf16> -> vector<64x384xbf16>
    %c768_113 = arith.constant 768 : index
    %c0_114 = arith.constant 0 : index
    %161 = vector.load %arg9[%c768_113, %c0_114] : memref<1152x128xbf16, #tpu.memory_space<vmem>>, vector<384x128xbf16>
    %cst_115 = arith.constant dense<0.000000e+00> : vector<64x128xf32>
    %162 = tpu.matmul %160, %161, %cst_115 {dimension_numbers = #tpu.dot_dimension_numbers<[1], [0], [0], [1], [0, 0, 1, 1], [], []>} : vector<64x384xbf16>, vector<384x128xbf16>, vector<64x128xf32> -> vector<64x128xf32>
    %163 = arith.addf %150, %162 : vector<64x128xf32>
    %cst_116 = arith.constant 0.000000e+00 : f32
    %164 = vector.broadcast %cst_116 : f32 to vector<64x128xf32>
    %165 = arith.maximumf %163, %164 : vector<64x128xf32>
    %c0_117 = arith.constant 0 : index
    %c0_118 = arith.constant 0 : index
    %c0_119 = arith.constant 0 : index
    %166 = vector.load %arg10[%c0_117, %c0_118, %c0_119] : memref<1x64x128xf32, #tpu.memory_space<vmem>>, vector<1x64x128xf32>
    %167 = vector.shape_cast %166 : vector<1x64x128xf32> to vector<64x128xf32>
    %168 = vector.shape_cast %165 : vector<64x128xf32> to vector<1x64x128xf32>
    tpu.vector_store %arg10[%c0_117, %c0_118, %c0_119], %168 {strides = array<i32>} : memref<1x64x128xf32, #tpu.memory_space<vmem>>, vector<1x64x128xf32>,
    return
  }
  func.func @transform_0(%arg0: i32) -> (i32, i32, i32) {
    %c0_i32 = arith.constant 0 : i32
    %c0_i32_0 = arith.constant 0 : i32
    %c0_i32_1 = arith.constant 0 : i32
    return %arg0, %c0_i32, %c0_i32_0 : i32, i32, i32
  }
  func.func @transform_1(%arg0: i32) -> (i32, i32) {
    %c0_i32 = arith.constant 0 : i32
    %c0_i32_0 = arith.constant 0 : i32
    %c0_i32_1 = arith.constant 0 : i32
    return %c0_i32, %c0_i32_0 : i32, i32
  }
  func.func @transform_2(%arg0: i32) -> (i32, i32) {
    %c0_i32 = arith.constant 0 : i32
    %c0_i32_0 = arith.constant 0 : i32
    %c0_i32_1 = arith.constant 0 : i32
    return %c0_i32, %c0_i32_0 : i32, i32
  }
  func.func @transform_3(%arg0: i32) -> (i32, i32) {
    %c0_i32 = arith.constant 0 : i32
    %c0_i32_0 = arith.constant 0 : i32
    %c0_i32_1 = arith.constant 0 : i32
    return %c0_i32, %c0_i32_0 : i32, i32
  }
  func.func @transform_4(%arg0: i32) -> (i32, i32) {
    %c0_i32 = arith.constant 0 : i32
    %c0_i32_0 = arith.constant 0 : i32
    %c0_i32_1 = arith.constant 0 : i32
    return %c0_i32, %c0_i32_0 : i32, i32
  }
  func.func @transform_5(%arg0: i32) -> (i32, i32) {
    %c0_i32 = arith.constant 0 : i32
    %c0_i32_0 = arith.constant 0 : i32
    %c0_i32_1 = arith.constant 0 : i32
    return %c0_i32, %c0_i32_0 : i32, i32
  }
  func.func @transform_6(%arg0: i32) -> (i32, i32) {
    %c0_i32 = arith.constant 0 : i32
    %c0_i32_0 = arith.constant 0 : i32
    %c0_i32_1 = arith.constant 0 : i32
    return %c0_i32, %c0_i32_0 : i32, i32
  }
  func.func @transform_7(%arg0: i32) -> (i32, i32) {
    %c0_i32 = arith.constant 0 : i32
    %c0_i32_0 = arith.constant 0 : i32
    %c0_i32_1 = arith.constant 0 : i32
    return %c0_i32, %c0_i32_0 : i32, i32
  }
  func.func @transform_8(%arg0: i32) -> (i32, i32) {
    %c0_i32 = arith.constant 0 : i32
    %c0_i32_0 = arith.constant 0 : i32
    %c0_i32_1 = arith.constant 0 : i32
    return %c0_i32, %c0_i32_0 : i32, i32
  }
  func.func @transform_9(%arg0: i32) -> (i32, i32, i32) {
    %c0_i32 = arith.constant 0 : i32
    %c0_i32_0 = arith.constant 0 : i32
    %c0_i32_1 = arith.constant 0 : i32
    return %arg0, %c0_i32, %c0_i32_0 : i32, i32, i32
  }
}

</mosaic_0001>

<llo_original>
// kernel: tile.23
$region0: #{tile.23}
  #allocation0 [shape = 's32[1]{0}', space=sflag, size = 0x4, scoped, tag = 'scoped memory for tile.23']
  %s0 = inlined_call_operand.vmem [shape: f32[16], index: 0, kind: input, shape index: {}]
  %s1 = inlined_call_operand.vmem [shape: f32[8,16], index: 1, kind: output, shape index: {}]
  // Predicated region
  $region2: #{tile.23} parent=0 // pred_check
    _
  $region3: #{tile.23} parent=0 // pred_check_branch
    %3 = sbr.rel (0) target = $region5
  $region4: #{tile.23} parent=0 // pred_region
    _
  $region5: #{tile.23} parent=0 // pred_fallthru
    _
  %v4 = vld [vmem:[%s0] ss:$0 sm:$0xff]
  %5 = vst [vmem:[%s1] sm:$0xff] %v4

// kernel: tile.24
$region0: #{tile.24}
  %s0 = inlined_call_operand.vmem [shape: f32[8,16], index: 0, kind: input, shape index: {}]
  %s1 = inlined_call_operand.vmem [shape: f32[1,128], index: 1, kind: output, shape index: {}]
  $region1: #{tile.24} parent=0
    #allocation0 [shape = 'u8[4096]{0}', space=vmem, size = 0x1000, scoped, tag = 'scoped mem for output reshape']
    %v2 = vld [vmem:[%s0] sm:$0x1]
    %vm3 = vcmask 130048
    %4 = vst.msk [vmem:[#allocation0] sm:$0x1] %vm3, %v2
    %s5 = scalar_lea.vmem %s0, 7
    %v6 = vld [vmem:[%s5] sm:$0x1]
    %7 = vrot.lane.b32.xlu0 %v6, 112
    %v8 = vpop.permute.xlu0 %7
    %vm9 = vcmask 1048448
    %10 = vst.msk [vmem:[#allocation0] sm:$0x1] %vm9, %v8
    %s11 = scalar_lea.vmem %s0, 6
    %v12 = vld [vmem:[%s11] sm:$0x1]
    %13 = vrot.lane.b32.xlu0 %v12, 96
    %v14 = vpop.permute.xlu0 %13
    %vm15 = vcmask 917248
    %16 = vst.msk [vmem:[#allocation0] sm:$0x1] %vm15, %v14
    %s17 = scalar_lea.vmem %s0, 5
    %v18 = vld [vmem:[%s17] sm:$0x1]
    %19 = vrot.lane.b32.xlu0 %v18, 80
    %v20 = vpop.permute.xlu0 %19
    %vm21 = vcmask 786048
    %22 = vst.msk [vmem:[#allocation0] sm:$0x1] %vm21, %v20
    %s23 = scalar_lea.vmem %s0, 4
    %v24 = vld [vmem:[%s23] sm:$0x1]
    %25 = vrot.lane.b32.xlu0 %v24, 64
    %v26 = vpop.permute.xlu0 %25
    %vm27 = vcmask 654848
    %28 = vst.msk [vmem:[#allocation0] sm:$0x1] %vm27, %v26
    %s29 = scalar_lea.vmem %s0, 3
    %v30 = vld [vmem:[%s29] sm:$0x1]
    %31 = vrot.lane.b32.xlu0 %v30, 48
    %v32 = vpop.permute.xlu0 %31
    %vm33 = vcmask 523648
    %34 = vst.msk [vmem:[#allocation0] sm:$0x1] %vm33, %v32
    %s35 = scalar_lea.vmem %s0, 2
    %v36 = vld [vmem:[%s35] sm:$0x1]
    %37 = vrot.lane.b32.xlu0 %v36, 32
    %v38 = vpop.permute.xlu0 %37
    %vm39 = vcmask 392448
    %40 = vst.msk [vmem:[#allocation0] sm:$0x1] %vm39, %v38
    %s41 = scalar_lea.vmem %s0, 1
    %v42 = vld [vmem:[%s41] sm:$0x1]
    %43 = vrot.lane.b32.xlu0 %v42, 16
    %v44 = vpop.permute.xlu0 %43
    %vm45 = vcmask 261248
    %46 = vst.msk [vmem:[#allocation0] sm:$0x1] %vm45, %v44
    %s48 = ssub.s32 2, 1
    %v49 = vld [vmem:[#allocation0] sm:%s48]
    %s51 = ssub.s32 2, 1
    %52 = vst [vmem:[%s1] sm:%s51] %v49

// kernel: double_conv3d_gcr_forward.1
$region0: #{double_conv3d_gcr_forward.1}
  #allocation0 [shape = 'u32[]', space=smem, size = 0x4, offset = 0x4, fixed_abs, tag = 'smem constant byte address 0x4 - core index']
  #allocation1 [shape = 'u32[72,128]{1,0:T(1,128)}', space=vmem, size = 0x9000, scoped, tag = 'internal scratch']
  #allocation2 [shape = 'f32[10,10,128]{2,1,0:T(8,128)}', space=vmem, size = 0x14000, scoped, tag = 'scratch operand']
  #allocation3 [shape = 'f32[10,10,128]{2,1,0:T(8,128)}', space=vmem, size = 0x14000, scoped, tag = 'scratch operand']
  %s0 = inlined_call_operand.vmem [shape: f32[2,64,128], index: 0, kind: input, shape index: {}]
  %s1 = inlined_call_operand.vmem [shape: f32[1,128], index: 1, kind: input, shape index: {}]
  %s2 = inlined_call_operand.vmem [shape: f32[1,128], index: 2, kind: input, shape index: {}]
  %s3 = inlined_call_operand.vmem [shape: bf16[128,128], index: 3, kind: input, shape index: {}, may-alias: {3,7}]
  %s4 = inlined_call_operand.vmem [shape: bf16[1152,128], index: 4, kind: input, shape index: {}]
  %s5 = inlined_call_operand.vmem [shape: f32[1,128], index: 5, kind: input, shape index: {}]
  %s6 = inlined_call_operand.vmem [shape: f32[1,128], index: 6, kind: input, shape index: {}]
  %s7 = inlined_call_operand.vmem [shape: bf16[128,128], index: 7, kind: input, shape index: {}, may-alias: {3,7}]
  %s8 = inlined_call_operand.vmem [shape: bf16[1152,128], index: 8, kind: input, shape index: {}]
  %s9 = inlined_call_operand.vmem [shape: f32[2,64,128], index: 9, kind: output, shape index: {}]
  %s10 = sld [smem:[#allocation0]]
  $region69: #{double_conv3d_gcr_forward.1} parent=0
    _
  %s12 = ssub.s32 1, %s10
  %s13 = scalar_select 0, %s12, %s10
  loop: start=0, step=1, limit=4
  $region2: #{double_conv3d_gcr_forward.1} parent=0 // loop_pre_header
    _
  $region3: #{double_conv3d_gcr_forward.1} parent=0 // loop_header
    %s15 = sphi 0, %s19
    %p16 = scmp.ge.s32.totalorder %s15, 4
    %s25 = sphi 0, %s27
    %s28 = sphi 0, %s25
    %s29 = sphi 0, %s28
    %s45 = sphi 0, %s29
    %s49 = sphi 0, %s49
    %s51 = sphi 0, %s49
    %s52 = sphi 0, %s51
    %s66 = sphi 0, %s52
    %s70 = sphi 0, %s70
    %s72 = sphi 0, %s70
    %s73 = sphi 0, %s72
    %s87 = sphi 0, %s73
    %s91 = sphi 0, %s91
    %s93 = sphi 0, %s91
    %s94 = sphi 0, %s93
    %s108 = sphi 0, %s94
    %s112 = sphi 0, %s112
    %s114 = sphi 0, %s112
    %s115 = sphi 0, %s114
    %s129 = sphi 0, %s115
    %s133 = sphi 0, %s133
    %s135 = sphi 0, %s133
    %s136 = sphi 0, %s135
    %s150 = sphi 0, %s136
    %s154 = sphi 0, %s154
    %s156 = sphi 0, %s154
    %s157 = sphi 0, %s156
    %s171 = sphi 0, %s157
    %s175 = sphi 0, %s175
    %s177 = sphi 0, %s175
    %s178 = sphi 0, %s177
    %s192 = sphi 0, %s178
    %s196 = sphi 0, %s196
    %s198 = sphi 0, %s196
    %s199 = sphi 0, %s198
    %s213 = sphi 0, %s199
    %s219 = sphi 0, %s221
    %s222 = sphi 0, %s219
    %s223 = sphi 0, %s222
    %s239 = sphi 0, %s223
  $region4: #{double_conv3d_gcr_forward.1} parent=0 // loop_header_branch
    %18 = sbr.rel (%p16) target = $region8
  $region5: #{double_conv3d_gcr_forward.1} parent=0 // loop_body
    %s20 = ssub.s32 %s15, 1
    %s21 = ssub.s32 %s15, 2
    %s22 = sadd.s32 %s15, 1
    %s23 = ssub.s32 %s15, %s22
    %p24 = scmp.eq.s32.totalorder %s23, 0
    %s26 = sadd.s32 %s25, 1
    %s27 = scalar_select %p24, %s25, %s26
    %p30 = pneg %p24
    %p31 = scmp.eq.s32.totalorder %s15, 1
    %p32 = por %p30, %p31
    %p33 = scmp.ne.s32.totalorder %s25, %s28
    %p34 = scmp.eq.s32.totalorder %s15, 0
    %p35 = por %p33, %p34
    %p36 = scmp.ne.s32.totalorder %s25, %s28
    %p37 = scmp.eq.s32.totalorder %s20, 1
    %p38 = por %p36, %p37
    %p39 = scmp.ne.s32.totalorder %s28, %s29
    %p40 = scmp.eq.s32.totalorder %s20, 0
    %p41 = por %p39, %p40
    %p42 = scmp.ne.s32.totalorder %s28, %s29
    %p43 = scmp.eq.s32.totalorder %s21, 1
    %p44 = por %p42, %p43
    %p46 = scmp.ne.s32.totalorder %s29, %s45
    %p47 = scmp.eq.s32.totalorder %s21, 0
    %p48 = por %p46, %p47
    %s50 = sadd.s32 %s49, 1
    %p53 = scmp.eq.s32.totalorder %s15, 1
    %p54 = scmp.ne.s32.totalorder %s49, %s51
    %p55 = scmp.eq.s32.totalorder %s15, 0
    %p56 = por %p54, %p55
    %p57 = scmp.ne.s32.totalorder %s49, %s51
    %p58 = scmp.eq.s32.totalorder %s20, 1
    %p59 = por %p57, %p58
    %p60 = scmp.ne.s32.totalorder %s51, %s52
    %p61 = scmp.eq.s32.totalorder %s20, 0
    %p62 = por %p60, %p61
    %p63 = scmp.ne.s32.totalorder %s51, %s52
    %p64 = scmp.eq.s32.totalorder %s21, 1
    %p65 = por %p63, %p64
    %p67 = scmp.ne.s32.totalorder %s52, %s66
    %p68 = scmp.eq.s32.totalorder %s21, 0
    %p69 = por %p67, %p68
    %s71 = sadd.s32 %s70, 1
    %p74 = scmp.eq.s32.totalorder %s15, 1
    %p75 = scmp.ne.s32.totalorder %s70, %s72
    %p76 = scmp.eq.s32.totalorder %s15, 0
    %p77 = por %p75, %p76
    %p78 = scmp.ne.s32.totalorder %s70, %s72
    %p79 = scmp.eq.s32.totalorder %s20, 1
    %p80 = por %p78, %p79
    %p81 = scmp.ne.s32.totalorder %s72, %s73
    %p82 = scmp.eq.s32.totalorder %s20, 0
    %p83 = por %p81, %p82
    %p84 = scmp.ne.s32.totalorder %s72, %s73
    %p85 = scmp.eq.s32.totalorder %s21, 1
    %p86 = por %p84, %p85
    %p88 = scmp.ne.s32.totalorder %s73, %s87
    %p89 = scmp.eq.s32.totalorder %s21, 0
    %p90 = por %p88, %p89
    %s92 = sadd.s32 %s91, 1
    %p95 = scmp.eq.s32.totalorder %s15, 1
    %p96 = scmp.ne.s32.totalorder %s91, %s93
    %p97 = scmp.eq.s32.totalorder %s15, 0
    %p98 = por %p96, %p97
    %p99 = scmp.ne.s32.totalorder %s91, %s93
    %p100 = scmp.eq.s32.totalorder %s20, 1
    %p101 = por %p99, %p100
    %p102 = scmp.ne.s32.totalorder %s93, %s94
    %p103 = scmp.eq.s32.totalorder %s20, 0
    %p104 = por %p102, %p103
    %p105 = scmp.ne.s32.totalorder %s93, %s94
    %p106 = scmp.eq.s32.totalorder %s21, 1
    %p107 = por %p105, %p106
    %p109 = scmp.ne.s32.totalorder %s94, %s108
    %p110 = scmp.eq.s32.totalorder %s21, 0
    %p111 = por %p109, %p110
    %s113 = sadd.s32 %s112, 1
    %p116 = scmp.eq.s32.totalorder %s15, 1
    %p117 = scmp.ne.s32.totalorder %s112, %s114
    %p118 = scmp.eq.s32.totalorder %s15, 0
    %p119 = por %p117, %p118
    %p120 = scmp.ne.s32.totalorder %s112, %s114
    %p121 = scmp.eq.s32.totalorder %s20, 1
    %p122 = por %p120, %p121
    %p123 = scmp.ne.s32.totalorder %s114, %s115
    %p124 = scmp.eq.s32.totalorder %s20, 0
    %p125 = por %p123, %p124
    %p126 = scmp.ne.s32.totalorder %s114, %s115
    %p127 = scmp.eq.s32.totalorder %s21, 1
    %p128 = por %p126, %p127
    %p130 = scmp.ne.s32.totalorder %s115, %s129
    %p131 = scmp.eq.s32.totalorder %s21, 0
    %p132 = por %p130, %p131
    %s134 = sadd.s32 %s133, 1
    %p137 = scmp.eq.s32.totalorder %s15, 1
    %p138 = scmp.ne.s32.totalorder %s133, %s135
    %p139 = scmp.eq.s32.totalorder %s15, 0
    %p140 = por %p138, %p139
    %p141 = scmp.ne.s32.totalorder %s133, %s135
    %p142 = scmp.eq.s32.totalorder %s20, 1
    %p143 = por %p141, %p142
    %p144 = scmp.ne.s32.totalorder %s135, %s136
    %p145 = scmp.eq.s32.totalorder %s20, 0
    %p146 = por %p144, %p145
    %p147 = scmp.ne.s32.totalorder %s135, %s136
    %p148 = scmp.eq.s32.totalorder %s21, 1
    %p149 = por %p147, %p148
    %p151 = scmp.ne.s32.totalorder %s136, %s150
    %p152 = scmp.eq.s32.totalorder %s21, 0
    %p153 = por %p151, %p152
    %s155 = sadd.s32 %s154, 1
    %p158 = scmp.eq.s32.totalorder %s15, 1
    %p159 = scmp.ne.s32.totalorder %s154, %s156
    %p160 = scmp.eq.s32.totalorder %s15, 0
    %p161 = por %p159, %p160
    %p162 = scmp.ne.s32.totalorder %s154, %s156
    %p163 = scmp.eq.s32.totalorder %s20, 1
    %p164 = por %p162, %p163
    %p165 = scmp.ne.s32.totalorder %s156, %s157
    %p166 = scmp.eq.s32.totalorder %s20, 0
    %p167 = por %p165, %p166
    %p168 = scmp.ne.s32.totalorder %s156, %s157
    %p169 = scmp.eq.s32.totalorder %s21, 1
    %p170 = por %p168, %p169
    %p172 = scmp.ne.s32.totalorder %s157, %s171
    %p173 = scmp.eq.s32.totalorder %s21, 0
    %p174 = por %p172, %p173
    %s176 = sadd.s32 %s175, 1
    %p179 = scmp.eq.s32.totalorder %s15, 1
    %p180 = scmp.ne.s32.totalorder %s175, %s177
    %p181 = scmp.eq.s32.totalorder %s15, 0
    %p182 = por %p180, %p181
    %p183 = scmp.ne.s32.totalorder %s175, %s177
    %p184 = scmp.eq.s32.totalorder %s20, 1
    %p185 = por %p183, %p184
    %p186 = scmp.ne.s32.totalorder %s177, %s178
    %p187 = scmp.eq.s32.totalorder %s20, 0
    %p188 = por %p186, %p187
    %p189 = scmp.ne.s32.totalorder %s177, %s178
    %p190 = scmp.eq.s32.totalorder %s21, 1
    %p191 = por %p189, %p190
    %p193 = scmp.ne.s32.totalorder %s178, %s192
    %p194 = scmp.eq.s32.totalorder %s21, 0
    %p195 = por %p193, %p194
    %s197 = sadd.s32 %s196, 1
    %p200 = scmp.eq.s32.totalorder %s15, 1
    %p201 = scmp.ne.s32.totalorder %s196, %s198
    %p202 = scmp.eq.s32.totalorder %s15, 0
    %p203 = por %p201, %p202
    %p204 = scmp.ne.s32.totalorder %s196, %s198
    %p205 = scmp.eq.s32.totalorder %s20, 1
    %p206 = por %p204, %p205
    %p207 = scmp.ne.s32.totalorder %s198, %s199
    %p208 = scmp.eq.s32.totalorder %s20, 0
    %p209 = por %p207, %p208
    %p210 = scmp.ne.s32.totalorder %s198, %s199
    %p211 = scmp.eq.s32.totalorder %s21, 1
    %p212 = por %p210, %p211
    %p214 = scmp.ne.s32.totalorder %s199, %s213
    %p215 = scmp.eq.s32.totalorder %s21, 0
    %p216 = por %p214, %p215
    %s217 = ssub.s32 %s15, %s22
    %p218 = scmp.eq.s32.totalorder %s217, 0
    %s220 = sadd.s32 %s219, 1
    %s221 = scalar_select %p218, %s219, %s220
    %p224 = pneg %p218
    %p225 = scmp.eq.s32.totalorder %s15, 1
    %p226 = por %p224, %p225
    %p227 = scmp.ne.s32.totalorder %s219, %s222
    %p228 = scmp.eq.s32.totalorder %s15, 0
    %p229 = por %p227, %p228
    %p230 = scmp.ne.s32.totalorder %s219, %s222
    %p231 = scmp.eq.s32.totalorder %s20, 1
    %p232 = por %p230, %p231
    %p233 = scmp.ne.s32.totalorder %s222, %s223
    %p234 = scmp.eq.s32.totalorder %s20, 0
    %p235 = por %p233, %p234
    %p236 = scmp.ne.s32.totalorder %s222, %s223
    %p237 = scmp.eq.s32.totalorder %s21, 1
    %p238 = por %p236, %p237
    %p240 = scmp.ne.s32.totalorder %s223, %s239
    %p241 = scmp.eq.s32.totalorder %s21, 0
    %p242 = por %p240, %p241
    %p243 = scmp.le.s32.totalorder 1, %s15
    %p244 = scmp.lt.s32.totalorder %s15, 3
    %p245 = pnand %p243, %p244
    %p246 = pneg %p245
    // Predicated region
    $region9: #{double_conv3d_gcr_forward.1} parent=5 // pred_check
      _
    $region10: #{double_conv3d_gcr_forward.1} parent=5 // pred_check_branch
      %248 = sbr.rel (%p245) target = $region12
    $region11: #{double_conv3d_gcr_forward.1} parent=5 // pred_region
      %s249 = ssub.s32 %s15, 1
      // Predicated region
      $region13: #{double_conv3d_gcr_forward.1} parent=11 // pred_check
        %p250 = pneg %p62
      $region14: #{double_conv3d_gcr_forward.1} parent=11 // pred_check_branch
        %252 = sbr.rel (%p250) target = $region16
      $region15: #{double_conv3d_gcr_forward.1} parent=11 // pred_region
        _
      $region16: #{double_conv3d_gcr_forward.1} parent=11 // pred_fallthru
        _
      // Predicated region
      $region17: #{double_conv3d_gcr_forward.1} parent=11 // pred_check
        %p253 = pneg %p83
      $region18: #{double_conv3d_gcr_forward.1} parent=11 // pred_check_branch
        %255 = sbr.rel (%p253) target = $region20
      $region19: #{double_conv3d_gcr_forward.1} parent=11 // pred_region
        _
      $region20: #{double_conv3d_gcr_forward.1} parent=11 // pred_fallthru
        _
      // Predicated region
      $region21: #{double_conv3d_gcr_forward.1} parent=11 // pred_check
        %p256 = pneg %p104
      $region22: #{double_conv3d_gcr_forward.1} parent=11 // pred_check_branch
        %258 = sbr.rel (%p256) target = $region24
      $region23: #{double_conv3d_gcr_forward.1} parent=11 // pred_region
        _
      $region24: #{double_conv3d_gcr_forward.1} parent=11 // pred_fallthru
        _
      // Predicated region
      $region25: #{double_conv3d_gcr_forward.1} parent=11 // pred_check
        %p259 = pneg %p125
      $region26: #{double_conv3d_gcr_forward.1} parent=11 // pred_check_branch
        %261 = sbr.rel (%p259) target = $region28
      $region27: #{double_conv3d_gcr_forward.1} parent=11 // pred_region
        _
      $region28: #{double_conv3d_gcr_forward.1} parent=11 // pred_fallthru
        _
      // Predicated region
      $region29: #{double_conv3d_gcr_forward.1} parent=11 // pred_check
        %p262 = pneg %p146
      $region30: #{double_conv3d_gcr_forward.1} parent=11 // pred_check_branch
        %264 = sbr.rel (%p262) target = $region32
      $region31: #{double_conv3d_gcr_forward.1} parent=11 // pred_region
        _
      $region32: #{double_conv3d_gcr_forward.1} parent=11 // pred_fallthru
        _
      // Predicated region
      $region33: #{double_conv3d_gcr_forward.1} parent=11 // pred_check
        %p265 = pneg %p167
      $region34: #{double_conv3d_gcr_forward.1} parent=11 // pred_check_branch
        %267 = sbr.rel (%p265) target = $region36
      $region35: #{double_conv3d_gcr_forward.1} parent=11 // pred_region
        _
      $region36: #{double_conv3d_gcr_forward.1} parent=11 // pred_fallthru
        _
      // Predicated region
      $region37: #{double_conv3d_gcr_forward.1} parent=11 // pred_check
        %p268 = pneg %p188
      $region38: #{double_conv3d_gcr_forward.1} parent=11 // pred_check_branch
        %270 = sbr.rel (%p268) target = $region40
      $region39: #{double_conv3d_gcr_forward.1} parent=11 // pred_region
        _
      $region40: #{double_conv3d_gcr_forward.1} parent=11 // pred_fallthru
        _
      // Predicated region
      $region41: #{double_conv3d_gcr_forward.1} parent=11 // pred_check
        %p271 = pneg %p209
      $region42: #{double_conv3d_gcr_forward.1} parent=11 // pred_check_branch
        %273 = sbr.rel (%p271) target = $region44
      $region43: #{double_conv3d_gcr_forward.1} parent=11 // pred_region
        _
      $region44: #{double_conv3d_gcr_forward.1} parent=11 // pred_fallthru
        _
    $region12: #{double_conv3d_gcr_forward.1} parent=5 // pred_fallthru
      _
    %p274 = scmp.lt.s32.totalorder %s15, 2
    // Predicated region
    $region45: #{double_conv3d_gcr_forward.1} parent=5 // pred_check
      %p275 = pneg %p274
    $region46: #{double_conv3d_gcr_forward.1} parent=5 // pred_check_branch
      %277 = sbr.rel (%p275) target = $region48
    $region47: #{double_conv3d_gcr_forward.1} parent=5 // pred_region
      // Predicated region
      $region49: #{double_conv3d_gcr_forward.1} parent=47 // pred_check
        %p278 = pneg %p35
      $region50: #{double_conv3d_gcr_forward.1} parent=47 // pred_check_branch
        %280 = sbr.rel (%p278) target = $region52
      $region51: #{double_conv3d_gcr_forward.1} parent=47 // pred_region
        %p281 = scmp.lt.s32.totalorder %s15, 1
        %s282 = scalar_select %p281, %s15, 1
        %s283 = smul.addr %s282, 8
        %s284 = smul.addr %s283, 8
        %s285 = scalar_lea.vmem %s0, %s284
      $region52: #{double_conv3d_gcr_forward.1} parent=47 // pred_fallthru
        _
    $region48: #{double_conv3d_gcr_forward.1} parent=5 // pred_fallthru
      _
    %p286 = scmp.le.s32.totalorder 1, %s15
    %p287 = scmp.lt.s32.totalorder %s15, 3
    %p288 = pnand %p286, %p287
    %p289 = pneg %p288
    // Predicated region
    $region53: #{double_conv3d_gcr_forward.1} parent=5 // pred_check
      _
    $region54: #{double_conv3d_gcr_forward.1} parent=5 // pred_check_branch
      %291 = sbr.rel (%p288) target = $region56
    $region55: #{double_conv3d_gcr_forward.1} parent=5 // pred_region
      %s292 = ssub.s32 %s15, 1
      %p293 = scmp.lt.s32.totalorder %s20, 1
      %s294 = scalar_select %p293, %s20, 1
      %s295 = smul.addr %s294, 8
      %s296 = smul.addr %s295, 8
      %s297 = scalar_lea.vmem %s0, %s296
      %p298 = pneg %p41
      %p299 = pneg %p38
      %p300 = pneg %p62
      %p301 = pneg %p59
      %p302 = pneg %p83
      %p303 = pneg %p80
      %p304 = pneg %p104
      %p305 = pneg %p101
      %p306 = pneg %p125
      %p307 = pneg %p122
      %p308 = pneg %p146
      %p309 = pneg %p143
      %p310 = pneg %p167
      %p311 = pneg %p164
      %p312 = pneg %p188
      %p313 = pneg %p185
      %p314 = pneg %p209
      %p315 = pneg %p206
      %p316 = pneg %p235
      %p317 = pneg %p232
      %p318 = scmp.lt.s32.totalorder %s20, 1
      %s319 = scalar_select %p318, %s20, 1
      %s320 = smul.addr %s319, 8
      %s321 = smul.addr %s320, 8
      %s322 = scalar_lea.vmem %s9, %s321
      %p323 = scmp.lt.s32.totalorder %s20, 1
      %s324 = scalar_select %p323, %s20, 1
      %s325 = smul.addr %s324, 8
      %s326 = smul.addr %s325, 8
      %s327 = scalar_lea.vmem %s0, %s326
      %p328 = scmp.lt.s32.totalorder %s20, 1
      %s329 = scalar_select %p328, %s20, 1
      %s330 = smul.addr %s329, 8
      %s331 = smul.addr %s330, 8
      %s332 = scalar_lea.vmem %s9, %s331
      %v333 = vld [vmem:[%s327] sm:$0xff]
      %v334 = vld [vmem:[%s327 + $0x8] sm:$0xff]
      %v335 = vld [vmem:[%s327 + $0x10] sm:$0xff]
      %v336 = vld [vmem:[%s327 + $0x18] sm:$0xff]
      %v337 = vld [vmem:[%s327 + $0x20] sm:$0xff]
      %v338 = vld [vmem:[%s327 + $0x28] sm:$0xff]
      %v339 = vld [vmem:[%s327 + $0x30] sm:$0xff]
      %v340 = vld [vmem:[%s327 + $0x38] sm:$0xff]
      %v341 = vld [vmem:[%s1] sm:$0x1]
      %v342 = vld [vmem:[%s2] sm:$0x1]
      %v343 = vld [vmem:[%s3] sm:$0xf]
      %v344 = vld [vmem:[%s3 + $0x4] sm:$0xf]
      %v345 = vld [vmem:[%s3 + $0x8] sm:$0xf]
      %v346 = vld [vmem:[%s3 + $0xc] sm:$0xf]
      %v347 = vld [vmem:[%s3 + $0x10] sm:$0xf]
      %v348 = vld [vmem:[%s3 + $0x14] sm:$0xf]
      %v349 = vld [vmem:[%s3 + $0x18] sm:$0xf]
      %v350 = vld [vmem:[%s3 + $0x1c] sm:$0xf]
      %v351 = vld [vmem:[%s3 + $0x20] sm:$0xf]
      %v352 = vld [vmem:[%s3 + $0x24] sm:$0xf]
      %v353 = vld [vmem:[%s3 + $0x28] sm:$0xf]
      %v354 = vld [vmem:[%s3 + $0x2c] sm:$0xf]
      %v355 = vld [vmem:[%s3 + $0x30] sm:$0xf]
      %v356 = vld [vmem:[%s3 + $0x34] sm:$0xf]
      %v357 = vld [vmem:[%s3 + $0x38] sm:$0xf]
      %v358 = vld [vmem:[%s3 + $0x3c] sm:$0xf]
      %v359 = vadd.f32 %v333, %v334
      %v360 = vadd.f32 %v359, %v335
      %v361 = vadd.f32 %v360, %v336
      %v362 = vadd.f32 %v361, %v337
      %v363 = vadd.f32 %v362, %v338
      %v364 = vadd.f32 %v363, %v339
      %v365 = vadd.f32 %v364, %v340
      %v366 = vrot.slane %v365, 4
      %v367 = vadd.f32 %v365, %v366
      %v368 = vrot.slane %v367, 2
      %v369 = vadd.f32 %v367, %v368
      %v370 = vrot.slane %v369, 1
      %v371 = vadd.f32 %v369, %v370
      %v372 = vpack.c.bf16 %v371, %v371
      %v373 = vunpack.c.l.bf16 %v372
      %v374 = vsub.f32 %v371, %v373
      %v375 = vpack.c.bf16 %v374, %v374
      %v392 = vunpack.c.l.b16 %v343
      %v393 = vunpack.c.l.b16 %v344
      %v394 = vunpack.c.l.b16 %v345
      %v395 = vunpack.c.l.b16 %v346
      %v396 = vunpack.c.l.b16 %v347
      %v397 = vunpack.c.l.b16 %v348
      %v398 = vunpack.c.l.b16 %v349
      %v399 = vunpack.c.l.b16 %v350
      %v400 = vunpack.c.l.b16 %v351
      %v401 = vunpack.c.l.b16 %v352
      %v402 = vunpack.c.l.b16 %v353
      %v403 = vunpack.c.l.b16 %v354
      %v404 = vunpack.c.l.b16 %v355
      %v405 = vunpack.c.l.b16 %v356
      %v406 = vunpack.c.l.b16 %v357
      %v407 = vunpack.c.l.b16 %v358
      %v408 = vpack.c.b16 %v393, %v392
      %v409 = vpack.c.b16 %v395, %v394
      %v410 = vpack.c.b16 %v397, %v396
      %v411 = vpack.c.b16 %v399, %v398
      %v412 = vpack.c.b16 %v401, %v400
      %v413 = vpack.c.b16 %v403, %v402
      %v414 = vpack.c.b16 %v405, %v404
      %v415 = vpack.c.b16 %v407, %v406
      %424 = vmatpush.bf16.msra.mxu0 %v415
      %425 = vmatpush.bf16.msra.mxu0 %v414
      %426 = vmatpush.bf16.msra.mxu0 %v413
      %427 = vmatpush.bf16.msra.mxu0 %v412
      %428 = vmatpush.bf16.msra.mxu0 %v411
      %429 = vmatpush.bf16.msra.mxu0 %v410
      %430 = vmatpush.bf16.msra.mxu0 %v409
      %431 = vmatpush.bf16.msra.mxu0 %v408
      %432 = vmatmul.bf16.gmra.mxu0 %v375
      %v433 = vpop.f32.mrf.mxu0
      %v434 = vadd.f32 0.0, %v433
      %v435 = vpop.f32.mrf.mxu0
      %436 = vdwg.mxu0
      %437 = vmatpush.bf16.msra.mxu0 %v415
      %438 = vmatpush.bf16.msra.mxu0 %v414
      %439 = vmatpush.bf16.msra.mxu0 %v413
      %440 = vmatpush.bf16.msra.mxu0 %v412
      %441 = vmatpush.bf16.msra.mxu0 %v411
      %442 = vmatpush.bf16.msra.mxu0 %v410
      %443 = vmatpush.bf16.msra.mxu0 %v409
      %444 = vmatpush.bf16.msra.mxu0 %v408
      %445 = vmatmul.bf16.gmra.mxu0 %v372
      %v446 = vpop.f32.mrf.mxu0
      %v447 = vadd.f32 %v434, %v446
      %v448 = vpop.f32.mrf.mxu0
      %449 = vdwg.mxu0
      %v450 = vmul.f32 %v447, 0.0009765625
      %v451 = vperm.slane %v450, 0
      %v452 = vsub.f32 %v333, %v451
      %v453 = vsub.f32 %v334, %v451
      %v454 = vsub.f32 %v335, %v451
      %v455 = vsub.f32 %v336, %v451
      %v456 = vsub.f32 %v337, %v451
      %v457 = vsub.f32 %v338, %v451
      %v458 = vsub.f32 %v339, %v451
      %v459 = vsub.f32 %v340, %v451
      %v460 = vmul.f32 %v452, %v452
      %v461 = vmul.f32 %v453, %v453
      %v462 = vmul.f32 %v454, %v454
      %v463 = vmul.f32 %v455, %v455
      %v464 = vmul.f32 %v456, %v456
      %v465 = vmul.f32 %v457, %v457
      %v466 = vmul.f32 %v458, %v458
      %v467 = vmul.f32 %v459, %v459
      %v468 = vadd.f32 %v460, %v461
      %v469 = vadd.f32 %v468, %v462
      %v470 = vadd.f32 %v469, %v463
      %v471 = vadd.f32 %v470, %v464
      %v472 = vadd.f32 %v471, %v465
      %v473 = vadd.f32 %v472, %v466
      %v474 = vadd.f32 %v473, %v467
      %v475 = vrot.slane %v474, 4
      %v476 = vadd.f32 %v474, %v475
      %v477 = vrot.slane %v476, 2
      %v478 = vadd.f32 %v476, %v477
      %v479 = vrot.slane %v478, 1
      %v480 = vadd.f32 %v478, %v479
      %v481 = vpack.c.bf16 %v480, %v480
      %v482 = vunpack.c.l.bf16 %v481
      %v483 = vsub.f32 %v480, %v482
      %v484 = vpack.c.bf16 %v483, %v483
      %485 = vmatpush.bf16.msra.mxu0 %v415
      %486 = vmatpush.bf16.msra.mxu0 %v414
      %487 = vmatpush.bf16.msra.mxu0 %v413
      %488 = vmatpush.bf16.msra.mxu0 %v412
      %489 = vmatpush.bf16.msra.mxu0 %v411
      %490 = vmatpush.bf16.msra.mxu0 %v410
      %491 = vmatpush.bf16.msra.mxu0 %v409
      %492 = vmatpush.bf16.msra.mxu0 %v408
      %493 = vmatmul.bf16.gmra.mxu0 %v484
      %v494 = vpop.f32.mrf.mxu0
      %v495 = vadd.f32 0.0, %v494
      %v496 = vpop.f32.mrf.mxu0
      %497 = vdwg.mxu0
      %498 = vmatpush.bf16.msra.mxu0 %v415
      %499 = vmatpush.bf16.msra.mxu0 %v414
      %500 = vmatpush.bf16.msra.mxu0 %v413
      %501 = vmatpush.bf16.msra.mxu0 %v412
      %502 = vmatpush.bf16.msra.mxu0 %v411
      %503 = vmatpush.bf16.msra.mxu0 %v410
      %504 = vmatpush.bf16.msra.mxu0 %v409
      %505 = vmatpush.bf16.msra.mxu0 %v408
      %506 = vmatmul.bf16.gmra.mxu0 %v481
      %v507 = vpop.f32.mrf.mxu0
      %v508 = vadd.f32 %v495, %v507
      %v509 = vpop.f32.mrf.mxu0
      %510 = vdwg.mxu0
      %v511 = vmul.f32 %v508, 0.0009765625
      %v512 = vadd.f32 %v511, 1e-05
      %v513 = vrsqrt.pop %v512
      %v514 = vmul.f32 %v513, %v512
      %v515 = vmul.f32 %v514, %v513
      %v516 = vmul.f32 0.5, %v515
      %v517 = vsub.f32 1.5, %v516
      %v518 = vmul.f32 %v513, %v517
      %vm519 = vweird.f32 %v512
      %vm520 = vweird.f32 %v513
      %vm521 = vmor %vm519, %vm520
      %v522 = vsel %vm521, %v513, %v518
      %v523 = vmul.f32 %v522, %v341
      %v524 = vperm.slane %v523, 0
      %v525 = vmul.f32 %v452, %v524
      %v526 = vmul.f32 %v453, %v524
      %v527 = vmul.f32 %v454, %v524
      %v528 = vmul.f32 %v455, %v524
      %v529 = vmul.f32 %v456, %v524
      %v530 = vmul.f32 %v457, %v524
      %v531 = vmul.f32 %v458, %v524
      %v532 = vmul.f32 %v459, %v524
      %v534 = vperm.slane %v342, 0
      %v536 = vadd.f32 %v525, %v534
      %v537 = vadd.f32 %v526, %v534
      %v538 = vadd.f32 %v527, %v534
      %v539 = vadd.f32 %v528, %v534
      %v540 = vadd.f32 %v529, %v534
      %v541 = vadd.f32 %v530, %v534
      %v542 = vadd.f32 %v531, %v534
      %v543 = vadd.f32 %v532, %v534
      %544 = vst [vmem:[#allocation2] sm:$0xff] 0.0
      %545 = vst [vmem:[#allocation2 + $0x8] sm:$0x3] 0.0
      %546 = vst [vmem:[#allocation2 + $0x10] sm:$0xff] 0.0
      %547 = vst [vmem:[#allocation2 + $0x18] sm:$0x3] 0.0
      %548 = vst [vmem:[#allocation2 + $0x20] sm:$0xff] 0.0
      %549 = vst [vmem:[#allocation2 + $0x28] sm:$0x3] 0.0
      %550 = vst [vmem:[#allocation2 + $0x30] sm:$0xff] 0.0
      %551 = vst [vmem:[#allocation2 + $0x38] sm:$0x3] 0.0
      %552 = vst [vmem:[#allocation2 + $0x40] sm:$0xff] 0.0
      %553 = vst [vmem:[#allocation2 + $0x48] sm:$0x3] 0.0
      %554 = vst [vmem:[#allocation2 + $0x50] sm:$0xff] 0.0
      %555 = vst [vmem:[#allocation2 + $0x58] sm:$0x3] 0.0
      %556 = vst [vmem:[#allocation2 + $0x60] sm:$0xff] 0.0
      %557 = vst [vmem:[#allocation2 + $0x68] sm:$0x3] 0.0
      %558 = vst [vmem:[#allocation2 + $0x70] sm:$0xff] 0.0
      %559 = vst [vmem:[#allocation2 + $0x78] sm:$0x3] 0.0
      %560 = vst [vmem:[#allocation2 + $0x80] sm:$0xff] 0.0
      %561 = vst [vmem:[#allocation2 + $0x88] sm:$0x3] 0.0
      %562 = vst [vmem:[#allocation2 + $0x90] sm:$0xff] 0.0
      %563 = vst [vmem:[#allocation2 + $0x98] sm:$0x3] 0.0
      %s564 = scalar_lea.vmem [#allocation2], 16
      %565 = vst [vmem:[%s564 + $0x1] sm:$0xff] %v536
      %566 = vst [vmem:[%s564 + $0x11] sm:$0xff] %v537
      %567 = vst [vmem:[%s564 + $0x21] sm:$0xff] %v538
      %568 = vst [vmem:[%s564 + $0x31] sm:$0xff] %v539
      %569 = vst [vmem:[%s564 + $0x41] sm:$0xff] %v540
      %570 = vst [vmem:[%s564 + $0x51] sm:$0xff] %v541
      %571 = vst [vmem:[%s564 + $0x61] sm:$0xff] %v542
      %572 = vst [vmem:[%s564 + $0x71] sm:$0xff] %v543
      %v573 = vld [vmem:[#allocation2] sm:$0xff]
      %v574 = vld [vmem:[#allocation2 + $0x10] sm:$0xff]
      %v575 = vld [vmem:[#allocation2 + $0x20] sm:$0xff]
      %v576 = vld [vmem:[#allocation2 + $0x30] sm:$0xff]
      %v577 = vld [vmem:[#allocation2 + $0x40] sm:$0xff]
      %v578 = vld [vmem:[#allocation2 + $0x50] sm:$0xff]
      %v579 = vld [vmem:[#allocation2 + $0x60] sm:$0xff]
      %v580 = vld [vmem:[#allocation2 + $0x70] sm:$0xff]
      %v581 = vpack.c.bf16 %v573, %v573
      %v582 = vpack.c.bf16 %v574, %v574
      %v583 = vpack.c.bf16 %v575, %v575
      %v584 = vpack.c.bf16 %v576, %v576
      %v585 = vpack.c.bf16 %v577, %v577
      %v586 = vpack.c.bf16 %v578, %v578
      %v587 = vpack.c.bf16 %v579, %v579
      %v588 = vpack.c.bf16 %v580, %v580
      %v589 = vld [vmem:[#allocation2 + $0x1] sm:$0xff]
      %v590 = vld [vmem:[#allocation2 + $0x11] sm:$0xff]
      %v591 = vld [vmem:[#allocation2 + $0x21] sm:$0xff]
      %v592 = vld [vmem:[#allocation2 + $0x31] sm:$0xff]
      %v593 = vld [vmem:[#allocation2 + $0x41] sm:$0xff]
      %v594 = vld [vmem:[#allocation2 + $0x51] sm:$0xff]
      %v595 = vld [vmem:[#allocation2 + $0x61] sm:$0xff]
      %v596 = vld [vmem:[#allocation2 + $0x71] sm:$0xff]
      %v597 = vpack.c.bf16 %v589, %v589
      %v598 = vpack.c.bf16 %v590, %v590
      %v599 = vpack.c.bf16 %v591, %v591
      %v600 = vpack.c.bf16 %v592, %v592
      %v601 = vpack.c.bf16 %v593, %v593
      %v602 = vpack.c.bf16 %v594, %v594
      %v603 = vpack.c.bf16 %v595, %v595
      %v604 = vpack.c.bf16 %v596, %v596
      %v605 = vld [vmem:[#allocation2 + $0x2] sm:$0xff]
      %v606 = vld [vmem:[#allocation2 + $0x12] sm:$0xff]
      %v607 = vld [vmem:[#allocation2 + $0x22] sm:$0xff]
      %v608 = vld [vmem:[#allocation2 + $0x32] sm:$0xff]
      %v609 = vld [vmem:[#allocation2 + $0x42] sm:$0xff]
      %v610 = vld [vmem:[#allocation2 + $0x52] sm:$0xff]
      %v611 = vld [vmem:[#allocation2 + $0x62] sm:$0xff]
      %v612 = vld [vmem:[#allocation2 + $0x72] sm:$0xff]
      %v613 = vpack.c.bf16 %v605, %v605
      %v614 = vpack.c.bf16 %v606, %v606
      %v615 = vpack.c.bf16 %v607, %v607
      %v616 = vpack.c.bf16 %v608, %v608
      %v617 = vpack.c.bf16 %v609, %v609
      %v618 = vpack.c.bf16 %v610, %v610
      %v619 = vpack.c.bf16 %v611, %v611
      %v620 = vpack.c.bf16 %v612, %v612
      %v629 = vunpack.c.l.b16 %v581
      %v630 = vunpack.c.l.b16 %v582
      %v631 = vunpack.c.l.b16 %v583
      %v632 = vunpack.c.l.b16 %v584
      %v633 = vunpack.c.l.b16 %v585
      %v634 = vunpack.c.l.b16 %v586
      %v635 = vunpack.c.l.b16 %v587
      %v636 = vunpack.c.l.b16 %v588
      %v637 = vpack.c.b16 %v630, %v629
      %v638 = vpack.c.b16 %v632, %v631
      %v639 = vpack.c.b16 %v634, %v633
      %v640 = vpack.c.b16 %v636, %v635
      %v653 = vunpack.c.l.b16 %v597
      %v654 = vunpack.c.l.b16 %v598
      %v655 = vunpack.c.l.b16 %v599
      %v656 = vunpack.c.l.b16 %v600
      %v657 = vunpack.c.l.b16 %v601
      %v658 = vunpack.c.l.b16 %v602
      %v659 = vunpack.c.l.b16 %v603
      %v660 = vunpack.c.l.b16 %v604
      %v661 = vpack.c.b16 %v654, %v653
      %v662 = vpack.c.b16 %v656, %v655
      %v663 = vpack.c.b16 %v658, %v657
      %v664 = vpack.c.b16 %v660, %v659
      %v677 = vunpack.c.l.b16 %v613
      %v678 = vunpack.c.l.b16 %v614
      %v679 = vunpack.c.l.b16 %v615
      %v680 = vunpack.c.l.b16 %v616
      %v681 = vunpack.c.l.b16 %v617
      %v682 = vunpack.c.l.b16 %v618
      %v683 = vunpack.c.l.b16 %v619
      %v684 = vunpack.c.l.b16 %v620
      %v685 = vpack.c.b16 %v678, %v677
      %v686 = vpack.c.b16 %v680, %v679
      %v687 = vpack.c.b16 %v682, %v681
      %v688 = vpack.c.b16 %v684, %v683
      %v693 = vld [vmem:[%s4] sm:$0xf]
      %v694 = vld [vmem:[%s4 + $0x4] sm:$0xf]
      %v695 = vld [vmem:[%s4 + $0x8] sm:$0xf]
      %v696 = vld [vmem:[%s4 + $0xc] sm:$0xf]
      %v697 = vld [vmem:[%s4 + $0x10] sm:$0xf]
      %v698 = vld [vmem:[%s4 + $0x14] sm:$0xf]
      %v699 = vld [vmem:[%s4 + $0x18] sm:$0xf]
      %v700 = vld [vmem:[%s4 + $0x1c] sm:$0xf]
      %v701 = vld [vmem:[%s4 + $0x20] sm:$0xf]
      %v702 = vld [vmem:[%s4 + $0x24] sm:$0xf]
      %v703 = vld [vmem:[%s4 + $0x28] sm:$0xf]
      %v704 = vld [vmem:[%s4 + $0x2c] sm:$0xf]
      %v705 = vld [vmem:[%s4 + $0x30] sm:$0xf]
      %v706 = vld [vmem:[%s4 + $0x34] sm:$0xf]
      %v707 = vld [vmem:[%s4 + $0x38] sm:$0xf]
      %v708 = vld [vmem:[%s4 + $0x3c] sm:$0xf]
      %v709 = vld [vmem:[%s4 + $0x40] sm:$0xf]
      %v710 = vld [vmem:[%s4 + $0x44] sm:$0xf]
      %v711 = vld [vmem:[%s4 + $0x48] sm:$0xf]
      %v712 = vld [vmem:[%s4 + $0x4c] sm:$0xf]
      %v713 = vld [vmem:[%s4 + $0x50] sm:$0xf]
      %v714 = vld [vmem:[%s4 + $0x54] sm:$0xf]
      %v715 = vld [vmem:[%s4 + $0x58] sm:$0xf]
      %v716 = vld [vmem:[%s4 + $0x5c] sm:$0xf]
      %v717 = vld [vmem:[%s4 + $0x60] sm:$0xf]
      %v718 = vld [vmem:[%s4 + $0x64] sm:$0xf]
      %v719 = vld [vmem:[%s4 + $0x68] sm:$0xf]
      %v720 = vld [vmem:[%s4 + $0x6c] sm:$0xf]
      %v721 = vld [vmem:[%s4 + $0x70] sm:$0xf]
      %v722 = vld [vmem:[%s4 + $0x74] sm:$0xf]
      %v723 = vld [vmem:[%s4 + $0x78] sm:$0xf]
      %v724 = vld [vmem:[%s4 + $0x7c] sm:$0xf]
      %v725 = vld [vmem:[%s4 + $0x80] sm:$0xf]
      %v726 = vld [vmem:[%s4 + $0x84] sm:$0xf]
      %v727 = vld [vmem:[%s4 + $0x88] sm:$0xf]
      %v728 = vld [vmem:[%s4 + $0x8c] sm:$0xf]
      %v729 = vld [vmem:[%s4 + $0x90] sm:$0xf]
      %v730 = vld [vmem:[%s4 + $0x94] sm:$0xf]
      %v731 = vld [vmem:[%s4 + $0x98] sm:$0xf]
      %v732 = vld [vmem:[%s4 + $0x9c] sm:$0xf]
      %v733 = vld [vmem:[%s4 + $0xa0] sm:$0xf]
      %v734 = vld [vmem:[%s4 + $0xa4] sm:$0xf]
      %v735 = vld [vmem:[%s4 + $0xa8] sm:$0xf]
      %v736 = vld [vmem:[%s4 + $0xac] sm:$0xf]
      %v737 = vld [vmem:[%s4 + $0xb0] sm:$0xf]
      %v738 = vld [vmem:[%s4 + $0xb4] sm:$0xf]
      %v739 = vld [vmem:[%s4 + $0xb8] sm:$0xf]
      %v740 = vld [vmem:[%s4 + $0xbc] sm:$0xf]
      %v741 = vld [vmem:[%s564] sm:$0xff]
      %v742 = vld [vmem:[%s564 + $0x10] sm:$0xff]
      %v743 = vld [vmem:[%s564 + $0x20] sm:$0xff]
      %v744 = vld [vmem:[%s564 + $0x30] sm:$0xff]
      %v745 = vld [vmem:[%s564 + $0x40] sm:$0xff]
      %v746 = vld [vmem:[%s564 + $0x50] sm:$0xff]
      %v747 = vld [vmem:[%s564 + $0x60] sm:$0xff]
      %v748 = vld [vmem:[%s564 + $0x70] sm:$0xff]
      %v749 = vpack.c.bf16 %v741, %v741
      %v750 = vpack.c.bf16 %v742, %v742
      %v751 = vpack.c.bf16 %v743, %v743
      %v752 = vpack.c.bf16 %v744, %v744
      %v753 = vpack.c.bf16 %v745, %v745
      %v754 = vpack.c.bf16 %v746, %v746
      %v755 = vpack.c.bf16 %v747, %v747
      %v756 = vpack.c.bf16 %v748, %v748
      %v757 = vld [vmem:[%s564 + $0x1] sm:$0xff]
      %v758 = vld [vmem:[%s564 + $0x11] sm:$0xff]
      %v759 = vld [vmem:[%s564 + $0x21] sm:$0xff]
      %v760 = vld [vmem:[%s564 + $0x31] sm:$0xff]
      %v761 = vld [vmem:[%s564 + $0x41] sm:$0xff]
      %v762 = vld [vmem:[%s564 + $0x51] sm:$0xff]
      %v763 = vld [vmem:[%s564 + $0x61] sm:$0xff]
      %v764 = vld [vmem:[%s564 + $0x71] sm:$0xff]
      %v765 = vpack.c.bf16 %v757, %v757
      %v766 = vpack.c.bf16 %v758, %v758
      %v767 = vpack.c.bf16 %v759, %v759
      %v768 = vpack.c.bf16 %v760, %v760
      %v769 = vpack.c.bf16 %v761, %v761
      %v770 = vpack.c.bf16 %v762, %v762
      %v771 = vpack.c.bf16 %v763, %v763
      %v772 = vpack.c.bf16 %v764, %v764
      %v773 = vld [vmem:[%s564 + $0x2] sm:$0xff]
      %v774 = vld [vmem:[%s564 + $0x12] sm:$0xff]
      %v775 = vld [vmem:[%s564 + $0x22] sm:$0xff]
      %v776 = vld [vmem:[%s564 + $0x32] sm:$0xff]
      %v777 = vld [vmem:[%s564 + $0x42] sm:$0xff]
      %v778 = vld [vmem:[%s564 + $0x52] sm:$0xff]
      %v779 = vld [vmem:[%s564 + $0x62] sm:$0xff]
      %v780 = vld [vmem:[%s564 + $0x72] sm:$0xff]
      %v781 = vpack.c.bf16 %v773, %v773
      %v782 = vpack.c.bf16 %v774, %v774
      %v783 = vpack.c.bf16 %v775, %v775
      %v784 = vpack.c.bf16 %v776, %v776
      %v785 = vpack.c.bf16 %v777, %v777
      %v786 = vpack.c.bf16 %v778, %v778
      %v787 = vpack.c.bf16 %v779, %v779
      %v788 = vpack.c.bf16 %v780, %v780
      %v797 = vunpack.c.l.b16 %v749
      %v798 = vunpack.c.l.b16 %v750
      %v799 = vunpack.c.l.b16 %v751
      %v800 = vunpack.c.l.b16 %v752
      %v801 = vunpack.c.l.b16 %v753
      %v802 = vunpack.c.l.b16 %v754
      %v803 = vunpack.c.l.b16 %v755
      %v804 = vunpack.c.l.b16 %v756
      %v805 = vpack.c.b16 %v798, %v797
      %v806 = vpack.c.b16 %v800, %v799
      %v807 = vpack.c.b16 %v802, %v801
      %v808 = vpack.c.b16 %v804, %v803
      %v821 = vunpack.c.l.b16 %v765
      %v822 = vunpack.c.l.b16 %v766
      %v823 = vunpack.c.l.b16 %v767
      %v824 = vunpack.c.l.b16 %v768
      %v825 = vunpack.c.l.b16 %v769
      %v826 = vunpack.c.l.b16 %v770
      %v827 = vunpack.c.l.b16 %v771
      %v828 = vunpack.c.l.b16 %v772
      %v829 = vpack.c.b16 %v822, %v821
      %v830 = vpack.c.b16 %v824, %v823
      %v831 = vpack.c.b16 %v826, %v825
      %v832 = vpack.c.b16 %v828, %v827
      %v845 = vunpack.c.l.b16 %v781
      %v846 = vunpack.c.l.b16 %v782
      %v847 = vunpack.c.l.b16 %v783
      %v848 = vunpack.c.l.b16 %v784
      %v849 = vunpack.c.l.b16 %v785
      %v850 = vunpack.c.l.b16 %v786
      %v851 = vunpack.c.l.b16 %v787
      %v852 = vunpack.c.l.b16 %v788
      %v853 = vpack.c.b16 %v846, %v845
      %v854 = vpack.c.b16 %v848, %v847
      %v855 = vpack.c.b16 %v850, %v849
      %v856 = vpack.c.b16 %v852, %v851
      %v861 = vld [vmem:[%s4 + $0xc0] sm:$0xf]
      %v862 = vld [vmem:[%s4 + $0xc4] sm:$0xf]
      %v863 = vld [vmem:[%s4 + $0xc8] sm:$0xf]
      %v864 = vld [vmem:[%s4 + $0xcc] sm:$0xf]
      %v865 = vld [vmem:[%s4 + $0xd0] sm:$0xf]
      %v866 = vld [vmem:[%s4 + $0xd4] sm:$0xf]
      %v867 = vld [vmem:[%s4 + $0xd8] sm:$0xf]
      %v868 = vld [vmem:[%s4 + $0xdc] sm:$0xf]
      %v869 = vld [vmem:[%s4 + $0xe0] sm:$0xf]
      %v870 = vld [vmem:[%s4 + $0xe4] sm:$0xf]
      %v871 = vld [vmem:[%s4 + $0xe8] sm:$0xf]
      %v872 = vld [vmem:[%s4 + $0xec] sm:$0xf]
      %v873 = vld [vmem:[%s4 + $0xf0] sm:$0xf]
      %v874 = vld [vmem:[%s4 + $0xf4] sm:$0xf]
      %v875 = vld [vmem:[%s4 + $0xf8] sm:$0xf]
      %v876 = vld [vmem:[%s4 + $0xfc] sm:$0xf]
      %v877 = vld [vmem:[%s4 + $0x100] sm:$0xf]
      %v878 = vld [vmem:[%s4 + $0x104] sm:$0xf]
      %v879 = vld [vmem:[%s4 + $0x108] sm:$0xf]
      %v880 = vld [vmem:[%s4 + $0x10c] sm:$0xf]
      %v881 = vld [vmem:[%s4 + $0x110] sm:$0xf]
      %v882 = vld [vmem:[%s4 + $0x114] sm:$0xf]
      %v883 = vld [vmem:[%s4 + $0x118] sm:$0xf]
      %v884 = vld [vmem:[%s4 + $0x11c] sm:$0xf]
      %v885 = vld [vmem:[%s4 + $0x120] sm:$0xf]
      %v886 = vld [vmem:[%s4 + $0x124] sm:$0xf]
      %v887 = vld [vmem:[%s4 + $0x128] sm:$0xf]
      %v888 = vld [vmem:[%s4 + $0x12c] sm:$0xf]
      %v889 = vld [vmem:[%s4 + $0x130] sm:$0xf]
      %v890 = vld [vmem:[%s4 + $0x134] sm:$0xf]
      %v891 = vld [vmem:[%s4 + $0x138] sm:$0xf]
      %v892 = vld [vmem:[%s4 + $0x13c] sm:$0xf]
      %v893 = vld [vmem:[%s4 + $0x140] sm:$0xf]
      %v894 = vld [vmem:[%s4 + $0x144] sm:$0xf]
      %v895 = vld [vmem:[%s4 + $0x148] sm:$0xf]
      %v896 = vld [vmem:[%s4 + $0x14c] sm:$0xf]
      %v897 = vld [vmem:[%s4 + $0x150] sm:$0xf]
      %v898 = vld [vmem:[%s4 + $0x154] sm:$0xf]
      %v899 = vld [vmem:[%s4 + $0x158] sm:$0xf]
      %v900 = vld [vmem:[%s4 + $0x15c] sm:$0xf]
      %v901 = vld [vmem:[%s4 + $0x160] sm:$0xf]
      %v902 = vld [vmem:[%s4 + $0x164] sm:$0xf]
      %v903 = vld [vmem:[%s4 + $0x168] sm:$0xf]
      %v904 = vld [vmem:[%s4 + $0x16c] sm:$0xf]
      %v905 = vld [vmem:[%s4 + $0x170] sm:$0xf]
      %v906 = vld [vmem:[%s4 + $0x174] sm:$0xf]
      %v907 = vld [vmem:[%s4 + $0x178] sm:$0xf]
      %v908 = vld [vmem:[%s4 + $0x17c] sm:$0xf]
      %v957 = vunpack.c.l.b16 %v861
      %v958 = vunpack.c.l.b16 %v862
      %v959 = vunpack.c.l.b16 %v863
      %v960 = vunpack.c.l.b16 %v864
      %v961 = vunpack.c.l.b16 %v865
      %v962 = vunpack.c.l.b16 %v866
      %v963 = vunpack.c.l.b16 %v867
      %v964 = vunpack.c.l.b16 %v868
      %v965 = vunpack.c.l.b16 %v869
      %v966 = vunpack.c.l.b16 %v870
      %v967 = vunpack.c.l.b16 %v871
      %v968 = vunpack.c.l.b16 %v872
      %v969 = vunpack.c.l.b16 %v873
      %v970 = vunpack.c.l.b16 %v874
      %v971 = vunpack.c.l.b16 %v875
      %v972 = vunpack.c.l.b16 %v876
      %v973 = vunpack.c.l.b16 %v877
      %v974 = vunpack.c.l.b16 %v878
      %v975 = vunpack.c.l.b16 %v879
      %v976 = vunpack.c.l.b16 %v880
      %v977 = vunpack.c.l.b16 %v881
      %v978 = vunpack.c.l.b16 %v882
      %v979 = vunpack.c.l.b16 %v883
      %v980 = vunpack.c.l.b16 %v884
      %v981 = vunpack.c.l.b16 %v885
      %v982 = vunpack.c.l.b16 %v886
      %v983 = vunpack.c.l.b16 %v887
      %v984 = vunpack.c.l.b16 %v888
      %v985 = vunpack.c.l.b16 %v889
      %v986 = vunpack.c.l.b16 %v890
      %v987 = vunpack.c.l.b16 %v891
      %v988 = vunpack.c.l.b16 %v892
      %v989 = vunpack.c.l.b16 %v893
      %v990 = vunpack.c.l.b16 %v894
      %v991 = vunpack.c.l.b16 %v895
      %v992 = vunpack.c.l.b16 %v896
      %v993 = vunpack.c.l.b16 %v897
      %v994 = vunpack.c.l.b16 %v898
      %v995 = vunpack.c.l.b16 %v899
      %v996 = vunpack.c.l.b16 %v900
      %v997 = vunpack.c.l.b16 %v901
      %v998 = vunpack.c.l.b16 %v902
      %v999 = vunpack.c.l.b16 %v903
      %v1000 = vunpack.c.l.b16 %v904
      %v1001 = vunpack.c.l.b16 %v905
      %v1002 = vunpack.c.l.b16 %v906
      %v1003 = vunpack.c.l.b16 %v907
      %v1004 = vunpack.c.l.b16 %v908
      %v1005 = vpack.c.b16 %v958, %v957
      %v1006 = vpack.c.b16 %v960, %v959
      %v1007 = vpack.c.b16 %v962, %v961
      %v1008 = vpack.c.b16 %v964, %v963
      %v1009 = vpack.c.b16 %v966, %v965
      %v1010 = vpack.c.b16 %v968, %v967
      %v1011 = vpack.c.b16 %v970, %v969
      %v1012 = vpack.c.b16 %v972, %v971
      %v1013 = vpack.c.b16 %v974, %v973
      %v1014 = vpack.c.b16 %v976, %v975
      %v1015 = vpack.c.b16 %v978, %v977
      %v1016 = vpack.c.b16 %v980, %v979
      %v1017 = vpack.c.b16 %v982, %v981
      %v1018 = vpack.c.b16 %v984, %v983
      %v1019 = vpack.c.b16 %v986, %v985
      %v1020 = vpack.c.b16 %v988, %v987
      %v1021 = vpack.c.b16 %v990, %v989
      %v1022 = vpack.c.b16 %v992, %v991
      %v1023 = vpack.c.b16 %v994, %v993
      %v1024 = vpack.c.b16 %v996, %v995
      %v1025 = vpack.c.b16 %v998, %v997
      %v1026 = vpack.c.b16 %v1000, %v999
      %v1027 = vpack.c.b16 %v1002, %v1001
      %v1028 = vpack.c.b16 %v1004, %v1003
      %1053 = vmatpush.bf16.msra.mxu0 %v1012
      %1054 = vmatpush.bf16.msra.mxu0 %v1011
      %1055 = vmatpush.bf16.msra.mxu0 %v1010
      %1056 = vmatpush.bf16.msra.mxu0 %v1009
      %1057 = vmatpush.bf16.msra.mxu0 %v1008
      %1058 = vmatpush.bf16.msra.mxu0 %v1007
      %1059 = vmatpush.bf16.msra.mxu0 %v1006
      %1060 = vmatpush.bf16.msra.mxu0 %v1005
      %1061 = vmatmul.bf16.gmra.mxu0 %v805
      %v1062 = vpop.f32.mrf.mxu0
      %v1063 = vadd.f32 0.0, %v1062
      %v1064 = vpop.f32.mrf.mxu0
      %v1065 = vadd.f32 0.0, %v1064
      %1066 = vmatmul.bf16.gmra.mxu0 %v806
      %v1067 = vpop.f32.mrf.mxu0
      %v1068 = vadd.f32 0.0, %v1067
      %v1069 = vpop.f32.mrf.mxu0
      %v1070 = vadd.f32 0.0, %v1069
      %1071 = vmatmul.bf16.gmra.mxu0 %v807
      %v1072 = vpop.f32.mrf.mxu0
      %v1073 = vadd.f32 0.0, %v1072
      %v1074 = vpop.f32.mrf.mxu0
      %v1075 = vadd.f32 0.0, %v1074
      %1076 = vmatmul.bf16.gmra.mxu0 %v808
      %v1077 = vpop.f32.mrf.mxu0
      %v1078 = vadd.f32 0.0, %v1077
      %v1079 = vpop.f32.mrf.mxu0
      %v1080 = vadd.f32 0.0, %v1079
      %1081 = vdwg.mxu0
      %1082 = vmatpush.bf16.msra.mxu0 %v1020
      %1083 = vmatpush.bf16.msra.mxu0 %v1019
      %1084 = vmatpush.bf16.msra.mxu0 %v1018
      %1085 = vmatpush.bf16.msra.mxu0 %v1017
      %1086 = vmatpush.bf16.msra.mxu0 %v1016
      %1087 = vmatpush.bf16.msra.mxu0 %v1015
      %1088 = vmatpush.bf16.msra.mxu0 %v1014
      %1089 = vmatpush.bf16.msra.mxu0 %v1013
      %1090 = vmatmul.bf16.gmra.mxu0 %v829
      %v1091 = vpop.f32.mrf.mxu0
      %v1092 = vadd.f32 %v1063, %v1091
      %v1093 = vpop.f32.mrf.mxu0
      %v1094 = vadd.f32 %v1065, %v1093
      %1095 = vmatmul.bf16.gmra.mxu0 %v830
      %v1096 = vpop.f32.mrf.mxu0
      %v1097 = vadd.f32 %v1068, %v1096
      %v1098 = vpop.f32.mrf.mxu0
      %v1099 = vadd.f32 %v1070, %v1098
      %1100 = vmatmul.bf16.gmra.mxu0 %v831
      %v1101 = vpop.f32.mrf.mxu0
      %v1102 = vadd.f32 %v1073, %v1101
      %v1103 = vpop.f32.mrf.mxu0
      %v1104 = vadd.f32 %v1075, %v1103
      %1105 = vmatmul.bf16.gmra.mxu0 %v832
      %v1106 = vpop.f32.mrf.mxu0
      %v1107 = vadd.f32 %v1078, %v1106
      %v1108 = vpop.f32.mrf.mxu0
      %v1109 = vadd.f32 %v1080, %v1108
      %1110 = vdwg.mxu0
      %1111 = vmatpush.bf16.msra.mxu0 %v1028
      %1112 = vmatpush.bf16.msra.mxu0 %v1027
      %1113 = vmatpush.bf16.msra.mxu0 %v1026
      %1114 = vmatpush.bf16.msra.mxu0 %v1025
      %1115 = vmatpush.bf16.msra.mxu0 %v1024
      %1116 = vmatpush.bf16.msra.mxu0 %v1023
      %1117 = vmatpush.bf16.msra.mxu0 %v1022
      %1118 = vmatpush.bf16.msra.mxu0 %v1021
      %1119 = vmatmul.bf16.gmra.mxu0 %v853
      %v1120 = vpop.f32.mrf.mxu0
      %v1121 = vadd.f32 %v1092, %v1120
      %v1122 = vpop.f32.mrf.mxu0
      %v1123 = vadd.f32 %v1094, %v1122
      %1124 = vmatmul.bf16.gmra.mxu0 %v854
      %v1125 = vpop.f32.mrf.mxu0
      %v1126 = vadd.f32 %v1097, %v1125
      %v1127 = vpop.f32.mrf.mxu0
      %v1128 = vadd.f32 %v1099, %v1127
      %1129 = vmatmul.bf16.gmra.mxu0 %v855
      %v1130 = vpop.f32.mrf.mxu0
      %v1131 = vadd.f32 %v1102, %v1130
      %v1132 = vpop.f32.mrf.mxu0
      %v1133 = vadd.f32 %v1104, %v1132
      %1134 = vmatmul.bf16.gmra.mxu0 %v856
      %v1135 = vpop.f32.mrf.mxu0
      %v1136 = vadd.f32 %v1107, %v1135
      %v1137 = vpop.f32.mrf.mxu0
      %v1138 = vadd.f32 %v1109, %v1137
      %1139 = vdwg.mxu0
      %v1188 = vunpack.c.l.b16 %v693
      %v1189 = vunpack.c.l.b16 %v694
      %v1190 = vunpack.c.l.b16 %v695
      %v1191 = vunpack.c.l.b16 %v696
      %v1192 = vunpack.c.l.b16 %v697
      %v1193 = vunpack.c.l.b16 %v698
      %v1194 = vunpack.c.l.b16 %v699
      %v1195 = vunpack.c.l.b16 %v700
      %v1196 = vunpack.c.l.b16 %v701
      %v1197 = vunpack.c.l.b16 %v702
      %v1198 = vunpack.c.l.b16 %v703
      %v1199 = vunpack.c.l.b16 %v704
      %v1200 = vunpack.c.l.b16 %v705
      %v1201 = vunpack.c.l.b16 %v706
      %v1202 = vunpack.c.l.b16 %v707
      %v1203 = vunpack.c.l.b16 %v708
      %v1204 = vunpack.c.l.b16 %v709
      %v1205 = vunpack.c.l.b16 %v710
      %v1206 = vunpack.c.l.b16 %v711
      %v1207 = vunpack.c.l.b16 %v712
      %v1208 = vunpack.c.l.b16 %v713
      %v1209 = vunpack.c.l.b16 %v714
      %v1210 = vunpack.c.l.b16 %v715
      %v1211 = vunpack.c.l.b16 %v716
      %v1212 = vunpack.c.l.b16 %v717
      %v1213 = vunpack.c.l.b16 %v718
      %v1214 = vunpack.c.l.b16 %v719
      %v1215 = vunpack.c.l.b16 %v720
      %v1216 = vunpack.c.l.b16 %v721
      %v1217 = vunpack.c.l.b16 %v722
      %v1218 = vunpack.c.l.b16 %v723
      %v1219 = vunpack.c.l.b16 %v724
      %v1220 = vunpack.c.l.b16 %v725
      %v1221 = vunpack.c.l.b16 %v726
      %v1222 = vunpack.c.l.b16 %v727
      %v1223 = vunpack.c.l.b16 %v728
      %v1224 = vunpack.c.l.b16 %v729
      %v1225 = vunpack.c.l.b16 %v730
      %v1226 = vunpack.c.l.b16 %v731
      %v1227 = vunpack.c.l.b16 %v732
      %v1228 = vunpack.c.l.b16 %v733
      %v1229 = vunpack.c.l.b16 %v734
      %v1230 = vunpack.c.l.b16 %v735
      %v1231 = vunpack.c.l.b16 %v736
      %v1232 = vunpack.c.l.b16 %v737
      %v1233 = vunpack.c.l.b16 %v738
      %v1234 = vunpack.c.l.b16 %v739
      %v1235 = vunpack.c.l.b16 %v740
      %v1236 = vpack.c.b16 %v1189, %v1188
      %v1237 = vpack.c.b16 %v1191, %v1190
      %v1238 = vpack.c.b16 %v1193, %v1192
      %v1239 = vpack.c.b16 %v1195, %v1194
      %v1240 = vpack.c.b16 %v1197, %v1196
      %v1241 = vpack.c.b16 %v1199, %v1198
      %v1242 = vpack.c.b16 %v1201, %v1200
      %v1243 = vpack.c.b16 %v1203, %v1202
      %v1244 = vpack.c.b16 %v1205, %v1204
      %v1245 = vpack.c.b16 %v1207, %v1206
      %v1246 = vpack.c.b16 %v1209, %v1208
      %v1247 = vpack.c.b16 %v1211, %v1210
      %v1248 = vpack.c.b16 %v1213, %v1212
      %v1249 = vpack.c.b16 %v1215, %v1214
      %v1250 = vpack.c.b16 %v1217, %v1216
      %v1251 = vpack.c.b16 %v1219, %v1218
      %v1252 = vpack.c.b16 %v1221, %v1220
      %v1253 = vpack.c.b16 %v1223, %v1222
      %v1254 = vpack.c.b16 %v1225, %v1224
      %v1255 = vpack.c.b16 %v1227, %v1226
      %v1256 = vpack.c.b16 %v1229, %v1228
      %v1257 = vpack.c.b16 %v1231, %v1230
      %v1258 = vpack.c.b16 %v1233, %v1232
      %v1259 = vpack.c.b16 %v1235, %v1234
      %1284 = vmatpush.bf16.msra.mxu0 %v1243
      %1285 = vmatpush.bf16.msra.mxu0 %v1242
      %1286 = vmatpush.bf16.msra.mxu0 %v1241
      %1287 = vmatpush.bf16.msra.mxu0 %v1240
      %1288 = vmatpush.bf16.msra.mxu0 %v1239
      %1289 = vmatpush.bf16.msra.mxu0 %v1238
      %1290 = vmatpush.bf16.msra.mxu0 %v1237
      %1291 = vmatpush.bf16.msra.mxu0 %v1236
      %1292 = vmatmul.bf16.gmra.mxu0 %v637
      %v1293 = vpop.f32.mrf.mxu0
      %v1294 = vadd.f32 %v1121, %v1293
      %v1295 = vpop.f32.mrf.mxu0
      %v1296 = vadd.f32 %v1123, %v1295
      %1297 = vmatmul.bf16.gmra.mxu0 %v638
      %v1298 = vpop.f32.mrf.mxu0
      %v1299 = vadd.f32 %v1126, %v1298
      %v1300 = vpop.f32.mrf.mxu0
      %v1301 = vadd.f32 %v1128, %v1300
      %1302 = vmatmul.bf16.gmra.mxu0 %v639
      %v1303 = vpop.f32.mrf.mxu0
      %v1304 = vadd.f32 %v1131, %v1303
      %v1305 = vpop.f32.mrf.mxu0
      %v1306 = vadd.f32 %v1133, %v1305
      %1307 = vmatmul.bf16.gmra.mxu0 %v640
      %v1308 = vpop.f32.mrf.mxu0
      %v1309 = vadd.f32 %v1136, %v1308
      %v1310 = vpop.f32.mrf.mxu0
      %v1311 = vadd.f32 %v1138, %v1310
      %1312 = vdwg.mxu0
      %1313 = vmatpush.bf16.msra.mxu0 %v1251
      %1314 = vmatpush.bf16.msra.mxu0 %v1250
      %1315 = vmatpush.bf16.msra.mxu0 %v1249
      %1316 = vmatpush.bf16.msra.mxu0 %v1248
      %1317 = vmatpush.bf16.msra.mxu0 %v1247
      %1318 = vmatpush.bf16.msra.mxu0 %v1246
      %1319 = vmatpush.bf16.msra.mxu0 %v1245
      %1320 = vmatpush.bf16.msra.mxu0 %v1244
      %1321 = vmatmul.bf16.gmra.mxu0 %v661
      %v1322 = vpop.f32.mrf.mxu0
      %v1323 = vadd.f32 %v1294, %v1322
      %v1324 = vpop.f32.mrf.mxu0
      %v1325 = vadd.f32 %v1296, %v1324
      %1326 = vmatmul.bf16.gmra.mxu0 %v662
      %v1327 = vpop.f32.mrf.mxu0
      %v1328 = vadd.f32 %v1299, %v1327
      %v1329 = vpop.f32.mrf.mxu0
      %v1330 = vadd.f32 %v1301, %v1329
      %1331 = vmatmul.bf16.gmra.mxu0 %v663
      %v1332 = vpop.f32.mrf.mxu0
      %v1333 = vadd.f32 %v1304, %v1332
      %v1334 = vpop.f32.mrf.mxu0
      %v1335 = vadd.f32 %v1306, %v1334
      %1336 = vmatmul.bf16.gmra.mxu0 %v664
      %v1337 = vpop.f32.mrf.mxu0
      %v1338 = vadd.f32 %v1309, %v1337
      %v1339 = vpop.f32.mrf.mxu0
      %v1340 = vadd.f32 %v1311, %v1339
      %1341 = vdwg.mxu0
      %1342 = vmatpush.bf16.msra.mxu0 %v1259
      %1343 = vmatpush.bf16.msra.mxu0 %v1258
      %1344 = vmatpush.bf16.msra.mxu0 %v1257
      %1345 = vmatpush.bf16.msra.mxu0 %v1256
      %1346 = vmatpush.bf16.msra.mxu0 %v1255
      %1347 = vmatpush.bf16.msra.mxu0 %v1254
      %1348 = vmatpush.bf16.msra.mxu0 %v1253
      %1349 = vmatpush.bf16.msra.mxu0 %v1252
      %1350 = vmatmul.bf16.gmra.mxu0 %v685
      %v1351 = vpop.f32.mrf.mxu0
      %v1352 = vadd.f32 %v1323, %v1351
      %v1353 = vpop.f32.mrf.mxu0
      %v1354 = vadd.f32 %v1325, %v1353
      %1355 = vmatmul.bf16.gmra.mxu0 %v686
      %v1356 = vpop.f32.mrf.mxu0
      %v1357 = vadd.f32 %v1328, %v1356
      %v1358 = vpop.f32.mrf.mxu0
      %v1359 = vadd.f32 %v1330, %v1358
      %1360 = vmatmul.bf16.gmra.mxu0 %v687
      %v1361 = vpop.f32.mrf.mxu0
      %v1362 = vadd.f32 %v1333, %v1361
      %v1363 = vpop.f32.mrf.mxu0
      %v1364 = vadd.f32 %v1335, %v1363
      %1365 = vmatmul.bf16.gmra.mxu0 %v688
      %v1366 = vpop.f32.mrf.mxu0
      %v1367 = vadd.f32 %v1338, %v1366
      %v1368 = vpop.f32.mrf.mxu0
      %v1369 = vadd.f32 %v1340, %v1368
      %1370 = vdwg.mxu0
      %s1371 = scalar_lea.vmem [#allocation2], 32
      %v1372 = vld [vmem:[%s1371] sm:$0xff]
      %v1373 = vld [vmem:[%s1371 + $0x10] sm:$0xff]
      %v1374 = vld [vmem:[%s1371 + $0x20] sm:$0xff]
      %v1375 = vld [vmem:[%s1371 + $0x30] sm:$0xff]
      %v1376 = vld [vmem:[%s1371 + $0x40] sm:$0xff]
      %v1377 = vld [vmem:[%s1371 + $0x50] sm:$0xff]
      %v1378 = vld [vmem:[%s1371 + $0x60] sm:$0xff]
      %v1379 = vld [vmem:[%s1371 + $0x70] sm:$0xff]
      %v1380 = vpack.c.bf16 %v1372, %v1372
      %v1381 = vpack.c.bf16 %v1373, %v1373
      %v1382 = vpack.c.bf16 %v1374, %v1374
      %v1383 = vpack.c.bf16 %v1375, %v1375
      %v1384 = vpack.c.bf16 %v1376, %v1376
      %v1385 = vpack.c.bf16 %v1377, %v1377
      %v1386 = vpack.c.bf16 %v1378, %v1378
      %v1387 = vpack.c.bf16 %v1379, %v1379
      %v1388 = vld [vmem:[%s1371 + $0x1] sm:$0xff]
      %v1389 = vld [vmem:[%s1371 + $0x11] sm:$0xff]
      %v1390 = vld [vmem:[%s1371 + $0x21] sm:$0xff]
      %v1391 = vld [vmem:[%s1371 + $0x31] sm:$0xff]
      %v1392 = vld [vmem:[%s1371 + $0x41] sm:$0xff]
      %v1393 = vld [vmem:[%s1371 + $0x51] sm:$0xff]
      %v1394 = vld [vmem:[%s1371 + $0x61] sm:$0xff]
      %v1395 = vld [vmem:[%s1371 + $0x71] sm:$0xff]
      %v1396 = vpack.c.bf16 %v1388, %v1388
      %v1397 = vpack.c.bf16 %v1389, %v1389
      %v1398 = vpack.c.bf16 %v1390, %v1390
      %v1399 = vpack.c.bf16 %v1391, %v1391
      %v1400 = vpack.c.bf16 %v1392, %v1392
      %v1401 = vpack.c.bf16 %v1393, %v1393
      %v1402 = vpack.c.bf16 %v1394, %v1394
      %v1403 = vpack.c.bf16 %v1395, %v1395
      %v1404 = vld [vmem:[%s1371 + $0x2] sm:$0xff]
      %v1405 = vld [vmem:[%s1371 + $0x12] sm:$0xff]
      %v1406 = vld [vmem:[%s1371 + $0x22] sm:$0xff]
      %v1407 = vld [vmem:[%s1371 + $0x32] sm:$0xff]
      %v1408 = vld [vmem:[%s1371 + $0x42] sm:$0xff]
      %v1409 = vld [vmem:[%s1371 + $0x52] sm:$0xff]
      %v1410 = vld [vmem:[%s1371 + $0x62] sm:$0xff]
      %v1411 = vld [vmem:[%s1371 + $0x72] sm:$0xff]
      %v1412 = vpack.c.bf16 %v1404, %v1404
      %v1413 = vpack.c.bf16 %v1405, %v1405
      %v1414 = vpack.c.bf16 %v1406, %v1406
      %v1415 = vpack.c.bf16 %v1407, %v1407
      %v1416 = vpack.c.bf16 %v1408, %v1408
      %v1417 = vpack.c.bf16 %v1409, %v1409
      %v1418 = vpack.c.bf16 %v1410, %v1410
      %v1419 = vpack.c.bf16 %v1411, %v1411
      %v1428 = vunpack.c.l.b16 %v1380
      %v1429 = vunpack.c.l.b16 %v1381
      %v1430 = vunpack.c.l.b16 %v1382
      %v1431 = vunpack.c.l.b16 %v1383
      %v1432 = vunpack.c.l.b16 %v1384
      %v1433 = vunpack.c.l.b16 %v1385
      %v1434 = vunpack.c.l.b16 %v1386
      %v1435 = vunpack.c.l.b16 %v1387
      %v1436 = vpack.c.b16 %v1429, %v1428
      %v1437 = vpack.c.b16 %v1431, %v1430
      %v1438 = vpack.c.b16 %v1433, %v1432
      %v1439 = vpack.c.b16 %v1435, %v1434
      %v1452 = vunpack.c.l.b16 %v1396
      %v1453 = vunpack.c.l.b16 %v1397
      %v1454 = vunpack.c.l.b16 %v1398
      %v1455 = vunpack.c.l.b16 %v1399
      %v1456 = vunpack.c.l.b16 %v1400
      %v1457 = vunpack.c.l.b16 %v1401
      %v1458 = vunpack.c.l.b16 %v1402
      %v1459 = vunpack.c.l.b16 %v1403
      %v1460 = vpack.c.b16 %v1453, %v1452
      %v1461 = vpack.c.b16 %v1455, %v1454
      %v1462 = vpack.c.b16 %v1457, %v1456
      %v1463 = vpack.c.b16 %v1459, %v1458
      %v1476 = vunpack.c.l.b16 %v1412
      %v1477 = vunpack.c.l.b16 %v1413
      %v1478 = vunpack.c.l.b16 %v1414
      %v1479 = vunpack.c.l.b16 %v1415
      %v1480 = vunpack.c.l.b16 %v1416
      %v1481 = vunpack.c.l.b16 %v1417
      %v1482 = vunpack.c.l.b16 %v1418
      %v1483 = vunpack.c.l.b16 %v1419
      %v1484 = vpack.c.b16 %v1477, %v1476
      %v1485 = vpack.c.b16 %v1479, %v1478
      %v1486 = vpack.c.b16 %v1481, %v1480
      %v1487 = vpack.c.b16 %v1483, %v1482
      %v1492 = vld [vmem:[%s4 + $0x180] sm:$0xf]
      %v1493 = vld [vmem:[%s4 + $0x184] sm:$0xf]
      %v1494 = vld [vmem:[%s4 + $0x188] sm:$0xf]
      %v1495 = vld [vmem:[%s4 + $0x18c] sm:$0xf]
      %v1496 = vld [vmem:[%s4 + $0x190] sm:$0xf]
      %v1497 = vld [vmem:[%s4 + $0x194] sm:$0xf]
      %v1498 = vld [vmem:[%s4 + $0x198] sm:$0xf]
      %v1499 = vld [vmem:[%s4 + $0x19c] sm:$0xf]
      %v1500 = vld [vmem:[%s4 + $0x1a0] sm:$0xf]
      %v1501 = vld [vmem:[%s4 + $0x1a4] sm:$0xf]
      %v1502 = vld [vmem:[%s4 + $0x1a8] sm:$0xf]
      %v1503 = vld [vmem:[%s4 + $0x1ac] sm:$0xf]
      %v1504 = vld [vmem:[%s4 + $0x1b0] sm:$0xf]
      %v1505 = vld [vmem:[%s4 + $0x1b4] sm:$0xf]
      %v1506 = vld [vmem:[%s4 + $0x1b8] sm:$0xf]
      %v1507 = vld [vmem:[%s4 + $0x1bc] sm:$0xf]
      %v1508 = vld [vmem:[%s4 + $0x1c0] sm:$0xf]
      %v1509 = vld [vmem:[%s4 + $0x1c4] sm:$0xf]
      %v1510 = vld [vmem:[%s4 + $0x1c8] sm:$0xf]
      %v1511 = vld [vmem:[%s4 + $0x1cc] sm:$0xf]
      %v1512 = vld [vmem:[%s4 + $0x1d0] sm:$0xf]
      %v1513 = vld [vmem:[%s4 + $0x1d4] sm:$0xf]
      %v1514 = vld [vmem:[%s4 + $0x1d8] sm:$0xf]
      %v1515 = vld [vmem:[%s4 + $0x1dc] sm:$0xf]
      %v1516 = vld [vmem:[%s4 + $0x1e0] sm:$0xf]
      %v1517 = vld [vmem:[%s4 + $0x1e4] sm:$0xf]
      %v1518 = vld [vmem:[%s4 + $0x1e8] sm:$0xf]
      %v1519 = vld [vmem:[%s4 + $0x1ec] sm:$0xf]
      %v1520 = vld [vmem:[%s4 + $0x1f0] sm:$0xf]
      %v1521 = vld [vmem:[%s4 + $0x1f4] sm:$0xf]
      %v1522 = vld [vmem:[%s4 + $0x1f8] sm:$0xf]
      %v1523 = vld [vmem:[%s4 + $0x1fc] sm:$0xf]
      %v1524 = vld [vmem:[%s4 + $0x200] sm:$0xf]
      %v1525 = vld [vmem:[%s4 + $0x204] sm:$0xf]
      %v1526 = vld [vmem:[%s4 + $0x208] sm:$0xf]
      %v1527 = vld [vmem:[%s4 + $0x20c] sm:$0xf]
      %v1528 = vld [vmem:[%s4 + $0x210] sm:$0xf]
      %v1529 = vld [vmem:[%s4 + $0x214] sm:$0xf]
      %v1530 = vld [vmem:[%s4 + $0x218] sm:$0xf]
      %v1531 = vld [vmem:[%s4 + $0x21c] sm:$0xf]
      %v1532 = vld [vmem:[%s4 + $0x220] sm:$0xf]
      %v1533 = vld [vmem:[%s4 + $0x224] sm:$0xf]
      %v1534 = vld [vmem:[%s4 + $0x228] sm:$0xf]
      %v1535 = vld [vmem:[%s4 + $0x22c] sm:$0xf]
      %v1536 = vld [vmem:[%s4 + $0x230] sm:$0xf]
      %v1537 = vld [vmem:[%s4 + $0x234] sm:$0xf]
      %v1538 = vld [vmem:[%s4 + $0x238] sm:$0xf]
      %v1539 = vld [vmem:[%s4 + $0x23c] sm:$0xf]
      %v1588 = vunpack.c.l.b16 %v1492
      %v1589 = vunpack.c.l.b16 %v1493
      %v1590 = vunpack.c.l.b16 %v1494
      %v1591 = vunpack.c.l.b16 %v1495
      %v1592 = vunpack.c.l.b16 %v1496
      %v1593 = vunpack.c.l.b16 %v1497
      %v1594 = vunpack.c.l.b16 %v1498
      %v1595 = vunpack.c.l.b16 %v1499
      %v1596 = vunpack.c.l.b16 %v1500
      %v1597 = vunpack.c.l.b16 %v1501
      %v1598 = vunpack.c.l.b16 %v1502
      %v1599 = vunpack.c.l.b16 %v1503
      %v1600 = vunpack.c.l.b16 %v1504
      %v1601 = vunpack.c.l.b16 %v1505
      %v1602 = vunpack.c.l.b16 %v1506
      %v1603 = vunpack.c.l.b16 %v1507
      %v1604 = vunpack.c.l.b16 %v1508
      %v1605 = vunpack.c.l.b16 %v1509
      %v1606 = vunpack.c.l.b16 %v1510
      %v1607 = vunpack.c.l.b16 %v1511
      %v1608 = vunpack.c.l.b16 %v1512
      %v1609 = vunpack.c.l.b16 %v1513
      %v1610 = vunpack.c.l.b16 %v1514
      %v1611 = vunpack.c.l.b16 %v1515
      %v1612 = vunpack.c.l.b16 %v1516
      %v1613 = vunpack.c.l.b16 %v1517
      %v1614 = vunpack.c.l.b16 %v1518
      %v1615 = vunpack.c.l.b16 %v1519
      %v1616 = vunpack.c.l.b16 %v1520
      %v1617 = vunpack.c.l.b16 %v1521
      %v1618 = vunpack.c.l.b16 %v1522
      %v1619 = vunpack.c.l.b16 %v1523
      %v1620 = vunpack.c.l.b16 %v1524
      %v1621 = vunpack.c.l.b16 %v1525
      %v1622 = vunpack.c.l.b16 %v1526
      %v1623 = vunpack.c.l.b16 %v1527
      %v1624 = vunpack.c.l.b16 %v1528
      %v1625 = vunpack.c.l.b16 %v1529
      %v1626 = vunpack.c.l.b16 %v1530
      %v1627 = vunpack.c.l.b16 %v1531
      %v1628 = vunpack.c.l.b16 %v1532
      %v1629 = vunpack.c.l.b16 %v1533
      %v1630 = vunpack.c.l.b16 %v1534
      %v1631 = vunpack.c.l.b16 %v1535
      %v1632 = vunpack.c.l.b16 %v1536
      %v1633 = vunpack.c.l.b16 %v1537
      %v1634 = vunpack.c.l.b16 %v1538
      %v1635 = vunpack.c.l.b16 %v1539
      %v1636 = vpack.c.b16 %v1589, %v1588
      %v1637 = vpack.c.b16 %v1591, %v1590
      %v1638 = vpack.c.b16 %v1593, %v1592
      %v1639 = vpack.c.b16 %v1595, %v1594
      %v1640 = vpack.c.b16 %v1597, %v1596
      %v1641 = vpack.c.b16 %v1599, %v1598
      %v1642 = vpack.c.b16 %v1601, %v1600
      %v1643 = vpack.c.b16 %v1603, %v1602
      %v1644 = vpack.c.b16 %v1605, %v1604
      %v1645 = vpack.c.b16 %v1607, %v1606
      %v1646 = vpack.c.b16 %v1609, %v1608
      %v1647 = vpack.c.b16 %v1611, %v1610
      %v1648 = vpack.c.b16 %v1613, %v1612
      %v1649 = vpack.c.b16 %v1615, %v1614
      %v1650 = vpack.c.b16 %v1617, %v1616
      %v1651 = vpack.c.b16 %v1619, %v1618
      %v1652 = vpack.c.b16 %v1621, %v1620
      %v1653 = vpack.c.b16 %v1623, %v1622
      %v1654 = vpack.c.b16 %v1625, %v1624
      %v1655 = vpack.c.b16 %v1627, %v1626
      %v1656 = vpack.c.b16 %v1629, %v1628
      %v1657 = vpack.c.b16 %v1631, %v1630
      %v1658 = vpack.c.b16 %v1633, %v1632
      %v1659 = vpack.c.b16 %v1635, %v1634
      %1684 = vmatpush.bf16.msra.mxu0 %v1643
      %1685 = vmatpush.bf16.msra.mxu0 %v1642
      %1686 = vmatpush.bf16.msra.mxu0 %v1641
      %1687 = vmatpush.bf16.msra.mxu0 %v1640
      %1688 = vmatpush.bf16.msra.mxu0 %v1639
      %1689 = vmatpush.bf16.msra.mxu0 %v1638
      %1690 = vmatpush.bf16.msra.mxu0 %v1637
      %1691 = vmatpush.bf16.msra.mxu0 %v1636
      %1692 = vmatmul.bf16.gmra.mxu0 %v1436
      %v1693 = vpop.f32.mrf.mxu0
      %v1694 = vadd.f32 0.0, %v1693
      %v1695 = vpop.f32.mrf.mxu0
      %v1696 = vadd.f32 0.0, %v1695
      %1697 = vmatmul.bf16.gmra.mxu0 %v1437
      %v1698 = vpop.f32.mrf.mxu0
      %v1699 = vadd.f32 0.0, %v1698
      %v1700 = vpop.f32.mrf.mxu0
      %v1701 = vadd.f32 0.0, %v1700
      %1702 = vmatmul.bf16.gmra.mxu0 %v1438
      %v1703 = vpop.f32.mrf.mxu0
      %v1704 = vadd.f32 0.0, %v1703
      %v1705 = vpop.f32.mrf.mxu0
      %v1706 = vadd.f32 0.0, %v1705
      %1707 = vmatmul.bf16.gmra.mxu0 %v1439
      %v1708 = vpop.f32.mrf.mxu0
      %v1709 = vadd.f32 0.0, %v1708
      %v1710 = vpop.f32.mrf.mxu0
      %v1711 = vadd.f32 0.0, %v1710
      %1712 = vdwg.mxu0
      %1713 = vmatpush.bf16.msra.mxu0 %v1651
      %1714 = vmatpush.bf16.msra.mxu0 %v1650
      %1715 = vmatpush.bf16.msra.mxu0 %v1649
      %1716 = vmatpush.bf16.msra.mxu0 %v1648
      %1717 = vmatpush.bf16.msra.mxu0 %v1647
      %1718 = vmatpush.bf16.msra.mxu0 %v1646
      %1719 = vmatpush.bf16.msra.mxu0 %v1645
      %1720 = vmatpush.bf16.msra.mxu0 %v1644
      %1721 = vmatmul.bf16.gmra.mxu0 %v1460
      %v1722 = vpop.f32.mrf.mxu0
      %v1723 = vadd.f32 %v1694, %v1722
      %v1724 = vpop.f32.mrf.mxu0
      %v1725 = vadd.f32 %v1696, %v1724
      %1726 = vmatmul.bf16.gmra.mxu0 %v1461
      %v1727 = vpop.f32.mrf.mxu0
      %v1728 = vadd.f32 %v1699, %v1727
      %v1729 = vpop.f32.mrf.mxu0
      %v1730 = vadd.f32 %v1701, %v1729
      %1731 = vmatmul.bf16.gmra.mxu0 %v1462
      %v1732 = vpop.f32.mrf.mxu0
      %v1733 = vadd.f32 %v1704, %v1732
      %v1734 = vpop.f32.mrf.mxu0
      %v1735 = vadd.f32 %v1706, %v1734
      %1736 = vmatmul.bf16.gmra.mxu0 %v1463
      %v1737 = vpop.f32.mrf.mxu0
      %v1738 = vadd.f32 %v1709, %v1737
      %v1739 = vpop.f32.mrf.mxu0
      %v1740 = vadd.f32 %v1711, %v1739
      %1741 = vdwg.mxu0
      %1742 = vmatpush.bf16.msra.mxu0 %v1659
      %1743 = vmatpush.bf16.msra.mxu0 %v1658
      %1744 = vmatpush.bf16.msra.mxu0 %v1657
      %1745 = vmatpush.bf16.msra.mxu0 %v1656
      %1746 = vmatpush.bf16.msra.mxu0 %v1655
      %1747 = vmatpush.bf16.msra.mxu0 %v1654
      %1748 = vmatpush.bf16.msra.mxu0 %v1653
      %1749 = vmatpush.bf16.msra.mxu0 %v1652
      %1750 = vmatmul.bf16.gmra.mxu0 %v1484
      %v1751 = vpop.f32.mrf.mxu0
      %v1752 = vadd.f32 %v1723, %v1751
      %v1753 = vpop.f32.mrf.mxu0
      %v1754 = vadd.f32 %v1725, %v1753
      %1755 = vmatmul.bf16.gmra.mxu0 %v1485
      %v1756 = vpop.f32.mrf.mxu0
      %v1757 = vadd.f32 %v1728, %v1756
      %v1758 = vpop.f32.mrf.mxu0
      %v1759 = vadd.f32 %v1730, %v1758
      %1760 = vmatmul.bf16.gmra.mxu0 %v1486
      %v1761 = vpop.f32.mrf.mxu0
      %v1762 = vadd.f32 %v1733, %v1761
      %v1763 = vpop.f32.mrf.mxu0
      %v1764 = vadd.f32 %v1735, %v1763
      %1765 = vmatmul.bf16.gmra.mxu0 %v1487
      %v1766 = vpop.f32.mrf.mxu0
      %v1767 = vadd.f32 %v1738, %v1766
      %v1768 = vpop.f32.mrf.mxu0
      %v1769 = vadd.f32 %v1740, %v1768
      %1770 = vdwg.mxu0
      %v1771 = vadd.f32 %v1352, %v1752
      %v1772 = vadd.f32 %v1354, %v1754
      %v1773 = vadd.f32 %v1357, %v1757
      %v1774 = vadd.f32 %v1359, %v1759
      %v1775 = vadd.f32 %v1362, %v1762
      %v1776 = vadd.f32 %v1364, %v1764
      %v1777 = vadd.f32 %v1367, %v1767
      %v1778 = vadd.f32 %v1369, %v1769
      %v1779 = vmax.f32 %v1771, 0.0
      %v1780 = vmax.f32 %v1772, 0.0
      %v1781 = vmax.f32 %v1773, 0.0
      %v1782 = vmax.f32 %v1774, 0.0
      %v1783 = vmax.f32 %v1775, 0.0
      %v1784 = vmax.f32 %v1776, 0.0
      %v1785 = vmax.f32 %v1777, 0.0
      %v1786 = vmax.f32 %v1778, 0.0
      %v1787 = vld [vmem:[%s5] sm:$0x1]
      %v1788 = vld [vmem:[%s6] sm:$0x1]
      %v1789 = vld [vmem:[%s7] sm:$0xf]
      %v1790 = vld [vmem:[%s7 + $0x4] sm:$0xf]
      %v1791 = vld [vmem:[%s7 + $0x8] sm:$0xf]
      %v1792 = vld [vmem:[%s7 + $0xc] sm:$0xf]
      %v1793 = vld [vmem:[%s7 + $0x10] sm:$0xf]
      %v1794 = vld [vmem:[%s7 + $0x14] sm:$0xf]
      %v1795 = vld [vmem:[%s7 + $0x18] sm:$0xf]
      %v1796 = vld [vmem:[%s7 + $0x1c] sm:$0xf]
      %v1797 = vld [vmem:[%s7 + $0x20] sm:$0xf]
      %v1798 = vld [vmem:[%s7 + $0x24] sm:$0xf]
      %v1799 = vld [vmem:[%s7 + $0x28] sm:$0xf]
      %v1800 = vld [vmem:[%s7 + $0x2c] sm:$0xf]
      %v1801 = vld [vmem:[%s7 + $0x30] sm:$0xf]
      %v1802 = vld [vmem:[%s7 + $0x34] sm:$0xf]
      %v1803 = vld [vmem:[%s7 + $0x38] sm:$0xf]
      %v1804 = vld [vmem:[%s7 + $0x3c] sm:$0xf]
      %v1805 = vadd.f32 %v1779, %v1780
      %v1806 = vadd.f32 %v1805, %v1781
      %v1807 = vadd.f32 %v1806, %v1782
      %v1808 = vadd.f32 %v1807, %v1783
      %v1809 = vadd.f32 %v1808, %v1784
      %v1810 = vadd.f32 %v1809, %v1785
      %v1811 = vadd.f32 %v1810, %v1786
      %v1812 = vrot.slane %v1811, 4
      %v1813 = vadd.f32 %v1811, %v1812
      %v1814 = vrot.slane %v1813, 2
      %v1815 = vadd.f32 %v1813, %v1814
      %v1816 = vrot.slane %v1815, 1
      %v1817 = vadd.f32 %v1815, %v1816
      %v1818 = vpack.c.bf16 %v1817, %v1817
      %v1819 = vunpack.c.l.bf16 %v1818
      %v1820 = vsub.f32 %v1817, %v1819
      %v1821 = vpack.c.bf16 %v1820, %v1820
      %v1838 = vunpack.c.l.b16 %v1789
      %v1839 = vunpack.c.l.b16 %v1790
      %v1840 = vunpack.c.l.b16 %v1791
      %v1841 = vunpack.c.l.b16 %v1792
      %v1842 = vunpack.c.l.b16 %v1793
      %v1843 = vunpack.c.l.b16 %v1794
      %v1844 = vunpack.c.l.b16 %v1795
      %v1845 = vunpack.c.l.b16 %v1796
      %v1846 = vunpack.c.l.b16 %v1797
      %v1847 = vunpack.c.l.b16 %v1798
      %v1848 = vunpack.c.l.b16 %v1799
      %v1849 = vunpack.c.l.b16 %v1800
      %v1850 = vunpack.c.l.b16 %v1801
      %v1851 = vunpack.c.l.b16 %v1802
      %v1852 = vunpack.c.l.b16 %v1803
      %v1853 = vunpack.c.l.b16 %v1804
      %v1854 = vpack.c.b16 %v1839, %v1838
      %v1855 = vpack.c.b16 %v1841, %v1840
      %v1856 = vpack.c.b16 %v1843, %v1842
      %v1857 = vpack.c.b16 %v1845, %v1844
      %v1858 = vpack.c.b16 %v1847, %v1846
      %v1859 = vpack.c.b16 %v1849, %v1848
      %v1860 = vpack.c.b16 %v1851, %v1850
      %v1861 = vpack.c.b16 %v1853, %v1852
      %1870 = vmatpush.bf16.msra.mxu0 %v1861
      %1871 = vmatpush.bf16.msra.mxu0 %v1860
      %1872 = vmatpush.bf16.msra.mxu0 %v1859
      %1873 = vmatpush.bf16.msra.mxu0 %v1858
      %1874 = vmatpush.bf16.msra.mxu0 %v1857
      %1875 = vmatpush.bf16.msra.mxu0 %v1856
      %1876 = vmatpush.bf16.msra.mxu0 %v1855
      %1877 = vmatpush.bf16.msra.mxu0 %v1854
      %1878 = vmatmul.bf16.gmra.mxu0 %v1821
      %v1879 = vpop.f32.mrf.mxu0
      %v1880 = vadd.f32 0.0, %v1879
      %v1881 = vpop.f32.mrf.mxu0
      %1882 = vdwg.mxu0
      %1883 = vmatpush.bf16.msra.mxu0 %v1861
      %1884 = vmatpush.bf16.msra.mxu0 %v1860
      %1885 = vmatpush.bf16.msra.mxu0 %v1859
      %1886 = vmatpush.bf16.msra.mxu0 %v1858
      %1887 = vmatpush.bf16.msra.mxu0 %v1857
      %1888 = vmatpush.bf16.msra.mxu0 %v1856
      %1889 = vmatpush.bf16.msra.mxu0 %v1855
      %1890 = vmatpush.bf16.msra.mxu0 %v1854
      %1891 = vmatmul.bf16.gmra.mxu0 %v1818
      %v1892 = vpop.f32.mrf.mxu0
      %v1893 = vadd.f32 %v1880, %v1892
      %v1894 = vpop.f32.mrf.mxu0
      %1895 = vdwg.mxu0
      %v1896 = vmul.f32 %v1893, 0.0009765625
      %v1897 = vperm.slane %v1896, 0
      %v1898 = vsub.f32 %v1779, %v1897
      %v1899 = vsub.f32 %v1780, %v1897
      %v1900 = vsub.f32 %v1781, %v1897
      %v1901 = vsub.f32 %v1782, %v1897
      %v1902 = vsub.f32 %v1783, %v1897
      %v1903 = vsub.f32 %v1784, %v1897
      %v1904 = vsub.f32 %v1785, %v1897
      %v1905 = vsub.f32 %v1786, %v1897
      %v1906 = vmul.f32 %v1898, %v1898
      %v1907 = vmul.f32 %v1899, %v1899
      %v1908 = vmul.f32 %v1900, %v1900
      %v1909 = vmul.f32 %v1901, %v1901
      %v1910 = vmul.f32 %v1902, %v1902
      %v1911 = vmul.f32 %v1903, %v1903
      %v1912 = vmul.f32 %v1904, %v1904
      %v1913 = vmul.f32 %v1905, %v1905
      %v1914 = vadd.f32 %v1906, %v1907
      %v1915 = vadd.f32 %v1914, %v1908
      %v1916 = vadd.f32 %v1915, %v1909
      %v1917 = vadd.f32 %v1916, %v1910
      %v1918 = vadd.f32 %v1917, %v1911
      %v1919 = vadd.f32 %v1918, %v1912
      %v1920 = vadd.f32 %v1919, %v1913
      %v1921 = vrot.slane %v1920, 4
      %v1922 = vadd.f32 %v1920, %v1921
      %v1923 = vrot.slane %v1922, 2
      %v1924 = vadd.f32 %v1922, %v1923
      %v1925 = vrot.slane %v1924, 1
      %v1926 = vadd.f32 %v1924, %v1925
      %v1927 = vpack.c.bf16 %v1926, %v1926
      %v1928 = vunpack.c.l.bf16 %v1927
      %v1929 = vsub.f32 %v1926, %v1928
      %v1930 = vpack.c.bf16 %v1929, %v1929
      %1931 = vmatpush.bf16.msra.mxu0 %v1861
      %1932 = vmatpush.bf16.msra.mxu0 %v1860
      %1933 = vmatpush.bf16.msra.mxu0 %v1859
      %1934 = vmatpush.bf16.msra.mxu0 %v1858
      %1935 = vmatpush.bf16.msra.mxu0 %v1857
      %1936 = vmatpush.bf16.msra.mxu0 %v1856
      %1937 = vmatpush.bf16.msra.mxu0 %v1855
      %1938 = vmatpush.bf16.msra.mxu0 %v1854
      %1939 = vmatmul.bf16.gmra.mxu0 %v1930
      %v1940 = vpop.f32.mrf.mxu0
      %v1941 = vadd.f32 0.0, %v1940
      %v1942 = vpop.f32.mrf.mxu0
      %1943 = vdwg.mxu0
      %1944 = vmatpush.bf16.msra.mxu0 %v1861
      %1945 = vmatpush.bf16.msra.mxu0 %v1860
      %1946 = vmatpush.bf16.msra.mxu0 %v1859
      %1947 = vmatpush.bf16.msra.mxu0 %v1858
      %1948 = vmatpush.bf16.msra.mxu0 %v1857
      %1949 = vmatpush.bf16.msra.mxu0 %v1856
      %1950 = vmatpush.bf16.msra.mxu0 %v1855
      %1951 = vmatpush.bf16.msra.mxu0 %v1854
      %1952 = vmatmul.bf16.gmra.mxu0 %v1927
      %v1953 = vpop.f32.mrf.mxu0
      %v1954 = vadd.f32 %v1941, %v1953
      %v1955 = vpop.f32.mrf.mxu0
      %1956 = vdwg.mxu0
      %v1957 = vmul.f32 %v1954, 0.0009765625
      %v1958 = vadd.f32 %v1957, 1e-05
      %v1959 = vrsqrt.pop %v1958
      %v1960 = vmul.f32 %v1959, %v1958
      %v1961 = vmul.f32 %v1960, %v1959
      %v1962 = vmul.f32 0.5, %v1961
      %v1963 = vsub.f32 1.5, %v1962
      %v1964 = vmul.f32 %v1959, %v1963
      %vm1965 = vweird.f32 %v1958
      %vm1966 = vweird.f32 %v1959
      %vm1967 = vmor %vm1965, %vm1966
      %v1968 = vsel %vm1967, %v1959, %v1964
      %v1969 = vmul.f32 %v1968, %v1787
      %v1970 = vperm.slane %v1969, 0
      %v1971 = vmul.f32 %v1898, %v1970
      %v1972 = vmul.f32 %v1899, %v1970
      %v1973 = vmul.f32 %v1900, %v1970
      %v1974 = vmul.f32 %v1901, %v1970
      %v1975 = vmul.f32 %v1902, %v1970
      %v1976 = vmul.f32 %v1903, %v1970
      %v1977 = vmul.f32 %v1904, %v1970
      %v1978 = vmul.f32 %v1905, %v1970
      %v1980 = vperm.slane %v1788, 0
      %v1982 = vadd.f32 %v1971, %v1980
      %v1983 = vadd.f32 %v1972, %v1980
      %v1984 = vadd.f32 %v1973, %v1980
      %v1985 = vadd.f32 %v1974, %v1980
      %v1986 = vadd.f32 %v1975, %v1980
      %v1987 = vadd.f32 %v1976, %v1980
      %v1988 = vadd.f32 %v1977, %v1980
      %v1989 = vadd.f32 %v1978, %v1980
      %1990 = vst [vmem:[#allocation3] sm:$0xff] 0.0
      %1991 = vst [vmem:[#allocation3 + $0x8] sm:$0x3] 0.0
      %1992 = vst [vmem:[#allocation3 + $0x10] sm:$0xff] 0.0
      %1993 = vst [vmem:[#allocation3 + $0x18] sm:$0x3] 0.0
      %1994 = vst [vmem:[#allocation3 + $0x20] sm:$0xff] 0.0
      %1995 = vst [vmem:[#allocation3 + $0x28] sm:$0x3] 0.0
      %1996 = vst [vmem:[#allocation3 + $0x30] sm:$0xff] 0.0
      %1997 = vst [vmem:[#allocation3 + $0x38] sm:$0x3] 0.0
      %1998 = vst [vmem:[#allocation3 + $0x40] sm:$0xff] 0.0
      %1999 = vst [vmem:[#allocation3 + $0x48] sm:$0x3] 0.0
      %2000 = vst [vmem:[#allocation3 + $0x50] sm:$0xff] 0.0
      %2001 = vst [vmem:[#allocation3 + $0x58] sm:$0x3] 0.0
      %2002 = vst [vmem:[#allocation3 + $0x60] sm:$0xff] 0.0
      %2003 = vst [vmem:[#allocation3 + $0x68] sm:$0x3] 0.0
      %2004 = vst [vmem:[#allocation3 + $0x70] sm:$0xff] 0.0
      %2005 = vst [vmem:[#allocation3 + $0x78] sm:$0x3] 0.0
      %2006 = vst [vmem:[#allocation3 + $0x80] sm:$0xff] 0.0
      %2007 = vst [vmem:[#allocation3 + $0x88] sm:$0x3] 0.0
      %2008 = vst [vmem:[#allocation3 + $0x90] sm:$0xff] 0.0
      %2009 = vst [vmem:[#allocation3 + $0x98] sm:$0x3] 0.0
      %s2010 = scalar_lea.vmem [#allocation3], 16
      %2011 = vst [vmem:[%s2010 + $0x1] sm:$0xff] %v1982
      %2012 = vst [vmem:[%s2010 + $0x11] sm:$0xff] %v1983
      %2013 = vst [vmem:[%s2010 + $0x21] sm:$0xff] %v1984
      %2014 = vst [vmem:[%s2010 + $0x31] sm:$0xff] %v1985
      %2015 = vst [vmem:[%s2010 + $0x41] sm:$0xff] %v1986
      %2016 = vst [vmem:[%s2010 + $0x51] sm:$0xff] %v1987
      %2017 = vst [vmem:[%s2010 + $0x61] sm:$0xff] %v1988
      %2018 = vst [vmem:[%s2010 + $0x71] sm:$0xff] %v1989
      %v2019 = vld [vmem:[#allocation3] sm:$0xff]
      %v2020 = vld [vmem:[#allocation3 + $0x10] sm:$0xff]
      %v2021 = vld [vmem:[#allocation3 + $0x20] sm:$0xff]
      %v2022 = vld [vmem:[#allocation3 + $0x30] sm:$0xff]
      %v2023 = vld [vmem:[#allocation3 + $0x40] sm:$0xff]
      %v2024 = vld [vmem:[#allocation3 + $0x50] sm:$0xff]
      %v2025 = vld [vmem:[#allocation3 + $0x60] sm:$0xff]
      %v2026 = vld [vmem:[#allocation3 + $0x70] sm:$0xff]
      %v2027 = vpack.c.bf16 %v2019, %v2019
      %v2028 = vpack.c.bf16 %v2020, %v2020
      %v2029 = vpack.c.bf16 %v2021, %v2021
      %v2030 = vpack.c.bf16 %v2022, %v2022
      %v2031 = vpack.c.bf16 %v2023, %v2023
      %v2032 = vpack.c.bf16 %v2024, %v2024
      %v2033 = vpack.c.bf16 %v2025, %v2025
      %v2034 = vpack.c.bf16 %v2026, %v2026
      %v2035 = vld [vmem:[#allocation3 + $0x1] sm:$0xff]
      %v2036 = vld [vmem:[#allocation3 + $0x11] sm:$0xff]
      %v2037 = vld [vmem:[#allocation3 + $0x21] sm:$0xff]
      %v2038 = vld [vmem:[#allocation3 + $0x31] sm:$0xff]
      %v2039 = vld [vmem:[#allocation3 + $0x41] sm:$0xff]
      %v2040 = vld [vmem:[#allocation3 + $0x51] sm:$0xff]
      %v2041 = vld [vmem:[#allocation3 + $0x61] sm:$0xff]
      %v2042 = vld [vmem:[#allocation3 + $0x71] sm:$0xff]
      %v2043 = vpack.c.bf16 %v2035, %v2035
      %v2044 = vpack.c.bf16 %v2036, %v2036
      %v2045 = vpack.c.bf16 %v2037, %v2037
      %v2046 = vpack.c.bf16 %v2038, %v2038
      %v2047 = vpack.c.bf16 %v2039, %v2039
      %v2048 = vpack.c.bf16 %v2040, %v2040
      %v2049 = vpack.c.bf16 %v2041, %v2041
      %v2050 = vpack.c.bf16 %v2042, %v2042
      %v2051 = vld [vmem:[#allocation3 + $0x2] sm:$0xff]
      %v2052 = vld [vmem:[#allocation3 + $0x12] sm:$0xff]
      %v2053 = vld [vmem:[#allocation3 + $0x22] sm:$0xff]
      %v2054 = vld [vmem:[#allocation3 + $0x32] sm:$0xff]
      %v2055 = vld [vmem:[#allocation3 + $0x42] sm:$0xff]
      %v2056 = vld [vmem:[#allocation3 + $0x52] sm:$0xff]
      %v2057 = vld [vmem:[#allocation3 + $0x62] sm:$0xff]
      %v2058 = vld [vmem:[#allocation3 + $0x72] sm:$0xff]
      %v2059 = vpack.c.bf16 %v2051, %v2051
      %v2060 = vpack.c.bf16 %v2052, %v2052
      %v2061 = vpack.c.bf16 %v2053, %v2053
      %v2062 = vpack.c.bf16 %v2054, %v2054
      %v2063 = vpack.c.bf16 %v2055, %v2055
      %v2064 = vpack.c.bf16 %v2056, %v2056
      %v2065 = vpack.c.bf16 %v2057, %v2057
      %v2066 = vpack.c.bf16 %v2058, %v2058
      %v2075 = vunpack.c.l.b16 %v2027
      %v2076 = vunpack.c.l.b16 %v2028
      %v2077 = vunpack.c.l.b16 %v2029
      %v2078 = vunpack.c.l.b16 %v2030
      %v2079 = vunpack.c.l.b16 %v2031
      %v2080 = vunpack.c.l.b16 %v2032
      %v2081 = vunpack.c.l.b16 %v2033
      %v2082 = vunpack.c.l.b16 %v2034
      %v2083 = vpack.c.b16 %v2076, %v2075
      %v2084 = vpack.c.b16 %v2078, %v2077
      %v2085 = vpack.c.b16 %v2080, %v2079
      %v2086 = vpack.c.b16 %v2082, %v2081
      %v2099 = vunpack.c.l.b16 %v2043
      %v2100 = vunpack.c.l.b16 %v2044
      %v2101 = vunpack.c.l.b16 %v2045
      %v2102 = vunpack.c.l.b16 %v2046
      %v2103 = vunpack.c.l.b16 %v2047
      %v2104 = vunpack.c.l.b16 %v2048
      %v2105 = vunpack.c.l.b16 %v2049
      %v2106 = vunpack.c.l.b16 %v2050
      %v2107 = vpack.c.b16 %v2100, %v2099
      %v2108 = vpack.c.b16 %v2102, %v2101
      %v2109 = vpack.c.b16 %v2104, %v2103
      %v2110 = vpack.c.b16 %v2106, %v2105
      %v2123 = vunpack.c.l.b16 %v2059
      %v2124 = vunpack.c.l.b16 %v2060
      %v2125 = vunpack.c.l.b16 %v2061
      %v2126 = vunpack.c.l.b16 %v2062
      %v2127 = vunpack.c.l.b16 %v2063
      %v2128 = vunpack.c.l.b16 %v2064
      %v2129 = vunpack.c.l.b16 %v2065
      %v2130 = vunpack.c.l.b16 %v2066
      %v2131 = vpack.c.b16 %v2124, %v2123
      %v2132 = vpack.c.b16 %v2126, %v2125
      %v2133 = vpack.c.b16 %v2128, %v2127
      %v2134 = vpack.c.b16 %v2130, %v2129
      %v2139 = vld [vmem:[%s8] sm:$0xf]
      %v2140 = vld [vmem:[%s8 + $0x4] sm:$0xf]
      %v2141 = vld [vmem:[%s8 + $0x8] sm:$0xf]
      %v2142 = vld [vmem:[%s8 + $0xc] sm:$0xf]
      %v2143 = vld [vmem:[%s8 + $0x10] sm:$0xf]
      %v2144 = vld [vmem:[%s8 + $0x14] sm:$0xf]
      %v2145 = vld [vmem:[%s8 + $0x18] sm:$0xf]
      %v2146 = vld [vmem:[%s8 + $0x1c] sm:$0xf]
      %v2147 = vld [vmem:[%s8 + $0x20] sm:$0xf]
      %v2148 = vld [vmem:[%s8 + $0x24] sm:$0xf]
      %v2149 = vld [vmem:[%s8 + $0x28] sm:$0xf]
      %v2150 = vld [vmem:[%s8 + $0x2c] sm:$0xf]
      %v2151 = vld [vmem:[%s8 + $0x30] sm:$0xf]
      %v2152 = vld [vmem:[%s8 + $0x34] sm:$0xf]
      %v2153 = vld [vmem:[%s8 + $0x38] sm:$0xf]
      %v2154 = vld [vmem:[%s8 + $0x3c] sm:$0xf]
      %v2155 = vld [vmem:[%s8 + $0x40] sm:$0xf]
      %v2156 = vld [vmem:[%s8 + $0x44] sm:$0xf]
      %v2157 = vld [vmem:[%s8 + $0x48] sm:$0xf]
      %v2158 = vld [vmem:[%s8 + $0x4c] sm:$0xf]
      %v2159 = vld [vmem:[%s8 + $0x50] sm:$0xf]
      %v2160 = vld [vmem:[%s8 + $0x54] sm:$0xf]
      %v2161 = vld [vmem:[%s8 + $0x58] sm:$0xf]
      %v2162 = vld [vmem:[%s8 + $0x5c] sm:$0xf]
      %v2163 = vld [vmem:[%s8 + $0x60] sm:$0xf]
      %v2164 = vld [vmem:[%s8 + $0x64] sm:$0xf]
      %v2165 = vld [vmem:[%s8 + $0x68] sm:$0xf]
      %v2166 = vld [vmem:[%s8 + $0x6c] sm:$0xf]
      %v2167 = vld [vmem:[%s8 + $0x70] sm:$0xf]
      %v2168 = vld [vmem:[%s8 + $0x74] sm:$0xf]
      %v2169 = vld [vmem:[%s8 + $0x78] sm:$0xf]
      %v2170 = vld [vmem:[%s8 + $0x7c] sm:$0xf]
      %v2171 = vld [vmem:[%s8 + $0x80] sm:$0xf]
      %v2172 = vld [vmem:[%s8 + $0x84] sm:$0xf]
      %v2173 = vld [vmem:[%s8 + $0x88] sm:$0xf]
      %v2174 = vld [vmem:[%s8 + $0x8c] sm:$0xf]
      %v2175 = vld [vmem:[%s8 + $0x90] sm:$0xf]
      %v2176 = vld [vmem:[%s8 + $0x94] sm:$0xf]
      %v2177 = vld [vmem:[%s8 + $0x98] sm:$0xf]
      %v2178 = vld [vmem:[%s8 + $0x9c] sm:$0xf]
      %v2179 = vld [vmem:[%s8 + $0xa0] sm:$0xf]
      %v2180 = vld [vmem:[%s8 + $0xa4] sm:$0xf]
      %v2181 = vld [vmem:[%s8 + $0xa8] sm:$0xf]
      %v2182 = vld [vmem:[%s8 + $0xac] sm:$0xf]
      %v2183 = vld [vmem:[%s8 + $0xb0] sm:$0xf]
      %v2184 = vld [vmem:[%s8 + $0xb4] sm:$0xf]
      %v2185 = vld [vmem:[%s8 + $0xb8] sm:$0xf]
      %v2186 = vld [vmem:[%s8 + $0xbc] sm:$0xf]
      %v2187 = vld [vmem:[%s2010] sm:$0xff]
      %v2188 = vld [vmem:[%s2010 + $0x10] sm:$0xff]
      %v2189 = vld [vmem:[%s2010 + $0x20] sm:$0xff]
      %v2190 = vld [vmem:[%s2010 + $0x30] sm:$0xff]
      %v2191 = vld [vmem:[%s2010 + $0x40] sm:$0xff]
      %v2192 = vld [vmem:[%s2010 + $0x50] sm:$0xff]
      %v2193 = vld [vmem:[%s2010 + $0x60] sm:$0xff]
      %v2194 = vld [vmem:[%s2010 + $0x70] sm:$0xff]
      %v2195 = vpack.c.bf16 %v2187, %v2187
      %v2196 = vpack.c.bf16 %v2188, %v2188
      %v2197 = vpack.c.bf16 %v2189, %v2189
      %v2198 = vpack.c.bf16 %v2190, %v2190
      %v2199 = vpack.c.bf16 %v2191, %v2191
      %v2200 = vpack.c.bf16 %v2192, %v2192
      %v2201 = vpack.c.bf16 %v2193, %v2193
      %v2202 = vpack.c.bf16 %v2194, %v2194
      %v2203 = vld [vmem:[%s2010 + $0x1] sm:$0xff]
      %v2204 = vld [vmem:[%s2010 + $0x11] sm:$0xff]
      %v2205 = vld [vmem:[%s2010 + $0x21] sm:$0xff]
      %v2206 = vld [vmem:[%s2010 + $0x31] sm:$0xff]
      %v2207 = vld [vmem:[%s2010 + $0x41] sm:$0xff]
      %v2208 = vld [vmem:[%s2010 + $0x51] sm:$0xff]
      %v2209 = vld [vmem:[%s2010 + $0x61] sm:$0xff]
      %v2210 = vld [vmem:[%s2010 + $0x71] sm:$0xff]
      %v2211 = vpack.c.bf16 %v2203, %v2203
      %v2212 = vpack.c.bf16 %v2204, %v2204
      %v2213 = vpack.c.bf16 %v2205, %v2205
      %v2214 = vpack.c.bf16 %v2206, %v2206
      %v2215 = vpack.c.bf16 %v2207, %v2207
      %v2216 = vpack.c.bf16 %v2208, %v2208
      %v2217 = vpack.c.bf16 %v2209, %v2209
      %v2218 = vpack.c.bf16 %v2210, %v2210
      %v2219 = vld [vmem:[%s2010 + $0x2] sm:$0xff]
      %v2220 = vld [vmem:[%s2010 + $0x12] sm:$0xff]
      %v2221 = vld [vmem:[%s2010 + $0x22] sm:$0xff]
      %v2222 = vld [vmem:[%s2010 + $0x32] sm:$0xff]
      %v2223 = vld [vmem:[%s2010 + $0x42] sm:$0xff]
      %v2224 = vld [vmem:[%s2010 + $0x52] sm:$0xff]
      %v2225 = vld [vmem:[%s2010 + $0x62] sm:$0xff]
      %v2226 = vld [vmem:[%s2010 + $0x72] sm:$0xff]
      %v2227 = vpack.c.bf16 %v2219, %v2219
      %v2228 = vpack.c.bf16 %v2220, %v2220
      %v2229 = vpack.c.bf16 %v2221, %v2221
      %v2230 = vpack.c.bf16 %v2222, %v2222
      %v2231 = vpack.c.bf16 %v2223, %v2223
      %v2232 = vpack.c.bf16 %v2224, %v2224
      %v2233 = vpack.c.bf16 %v2225, %v2225
      %v2234 = vpack.c.bf16 %v2226, %v2226
      %v2243 = vunpack.c.l.b16 %v2195
      %v2244 = vunpack.c.l.b16 %v2196
      %v2245 = vunpack.c.l.b16 %v2197
      %v2246 = vunpack.c.l.b16 %v2198
      %v2247 = vunpack.c.l.b16 %v2199
      %v2248 = vunpack.c.l.b16 %v2200
      %v2249 = vunpack.c.l.b16 %v2201
      %v2250 = vunpack.c.l.b16 %v2202
      %v2251 = vpack.c.b16 %v2244, %v2243
      %v2252 = vpack.c.b16 %v2246, %v2245
      %v2253 = vpack.c.b16 %v2248, %v2247
      %v2254 = vpack.c.b16 %v2250, %v2249
      %v2267 = vunpack.c.l.b16 %v2211
      %v2268 = vunpack.c.l.b16 %v2212
      %v2269 = vunpack.c.l.b16 %v2213
      %v2270 = vunpack.c.l.b16 %v2214
      %v2271 = vunpack.c.l.b16 %v2215
      %v2272 = vunpack.c.l.b16 %v2216
      %v2273 = vunpack.c.l.b16 %v2217
      %v2274 = vunpack.c.l.b16 %v2218
      %v2275 = vpack.c.b16 %v2268, %v2267
      %v2276 = vpack.c.b16 %v2270, %v2269
      %v2277 = vpack.c.b16 %v2272, %v2271
      %v2278 = vpack.c.b16 %v2274, %v2273
      %v2291 = vunpack.c.l.b16 %v2227
      %v2292 = vunpack.c.l.b16 %v2228
      %v2293 = vunpack.c.l.b16 %v2229
      %v2294 = vunpack.c.l.b16 %v2230
      %v2295 = vunpack.c.l.b16 %v2231
      %v2296 = vunpack.c.l.b16 %v2232
      %v2297 = vunpack.c.l.b16 %v2233
      %v2298 = vunpack.c.l.b16 %v2234
      %v2299 = vpack.c.b16 %v2292, %v2291
      %v2300 = vpack.c.b16 %v2294, %v2293
      %v2301 = vpack.c.b16 %v2296, %v2295
      %v2302 = vpack.c.b16 %v2298, %v2297
      %v2307 = vld [vmem:[%s8 + $0xc0] sm:$0xf]
      %v2308 = vld [vmem:[%s8 + $0xc4] sm:$0xf]
      %v2309 = vld [vmem:[%s8 + $0xc8] sm:$0xf]
      %v2310 = vld [vmem:[%s8 + $0xcc] sm:$0xf]
      %v2311 = vld [vmem:[%s8 + $0xd0] sm:$0xf]
      %v2312 = vld [vmem:[%s8 + $0xd4] sm:$0xf]
      %v2313 = vld [vmem:[%s8 + $0xd8] sm:$0xf]
      %v2314 = vld [vmem:[%s8 + $0xdc] sm:$0xf]
      %v2315 = vld [vmem:[%s8 + $0xe0] sm:$0xf]
      %v2316 = vld [vmem:[%s8 + $0xe4] sm:$0xf]
      %v2317 = vld [vmem:[%s8 + $0xe8] sm:$0xf]
      %v2318 = vld [vmem:[%s8 + $0xec] sm:$0xf]
      %v2319 = vld [vmem:[%s8 + $0xf0] sm:$0xf]
      %v2320 = vld [vmem:[%s8 + $0xf4] sm:$0xf]
      %v2321 = vld [vmem:[%s8 + $0xf8] sm:$0xf]
      %v2322 = vld [vmem:[%s8 + $0xfc] sm:$0xf]
      %v2323 = vld [vmem:[%s8 + $0x100] sm:$0xf]
      %v2324 = vld [vmem:[%s8 + $0x104] sm:$0xf]
      %v2325 = vld [vmem:[%s8 + $0x108] sm:$0xf]
      %v2326 = vld [vmem:[%s8 + $0x10c] sm:$0xf]
      %v2327 = vld [vmem:[%s8 + $0x110] sm:$0xf]
      %v2328 = vld [vmem:[%s8 + $0x114] sm:$0xf]
      %v2329 = vld [vmem:[%s8 + $0x118] sm:$0xf]
      %v2330 = vld [vmem:[%s8 + $0x11c] sm:$0xf]
      %v2331 = vld [vmem:[%s8 + $0x120] sm:$0xf]
      %v2332 = vld [vmem:[%s8 + $0x124] sm:$0xf]
      %v2333 = vld [vmem:[%s8 + $0x128] sm:$0xf]
      %v2334 = vld [vmem:[%s8 + $0x12c] sm:$0xf]
      %v2335 = vld [vmem:[%s8 + $0x130] sm:$0xf]
      %v2336 = vld [vmem:[%s8 + $0x134] sm:$0xf]
      %v2337 = vld [vmem:[%s8 + $0x138] sm:$0xf]
      %v2338 = vld [vmem:[%s8 + $0x13c] sm:$0xf]
      %v2339 = vld [vmem:[%s8 + $0x140] sm:$0xf]
      %v2340 = vld [vmem:[%s8 + $0x144] sm:$0xf]
      %v2341 = vld [vmem:[%s8 + $0x148] sm:$0xf]
      %v2342 = vld [vmem:[%s8 + $0x14c] sm:$0xf]
      %v2343 = vld [vmem:[%s8 + $0x150] sm:$0xf]
      %v2344 = vld [vmem:[%s8 + $0x154] sm:$0xf]
      %v2345 = vld [vmem:[%s8 + $0x158] sm:$0xf]
      %v2346 = vld [vmem:[%s8 + $0x15c] sm:$0xf]
      %v2347 = vld [vmem:[%s8 + $0x160] sm:$0xf]
      %v2348 = vld [vmem:[%s8 + $0x164] sm:$0xf]
      %v2349 = vld [vmem:[%s8 + $0x168] sm:$0xf]
      %v2350 = vld [vmem:[%s8 + $0x16c] sm:$0xf]
      %v2351 = vld [vmem:[%s8 + $0x170] sm:$0xf]
      %v2352 = vld [vmem:[%s8 + $0x174] sm:$0xf]
      %v2353 = vld [vmem:[%s8 + $0x178] sm:$0xf]
      %v2354 = vld [vmem:[%s8 + $0x17c] sm:$0xf]
      %v2403 = vunpack.c.l.b16 %v2307
      %v2404 = vunpack.c.l.b16 %v2308
      %v2405 = vunpack.c.l.b16 %v2309
      %v2406 = vunpack.c.l.b16 %v2310
      %v2407 = vunpack.c.l.b16 %v2311
      %v2408 = vunpack.c.l.b16 %v2312
      %v2409 = vunpack.c.l.b16 %v2313
      %v2410 = vunpack.c.l.b16 %v2314
      %v2411 = vunpack.c.l.b16 %v2315
      %v2412 = vunpack.c.l.b16 %v2316
      %v2413 = vunpack.c.l.b16 %v2317
      %v2414 = vunpack.c.l.b16 %v2318
      %v2415 = vunpack.c.l.b16 %v2319
      %v2416 = vunpack.c.l.b16 %v2320
      %v2417 = vunpack.c.l.b16 %v2321
      %v2418 = vunpack.c.l.b16 %v2322
      %v2419 = vunpack.c.l.b16 %v2323
      %v2420 = vunpack.c.l.b16 %v2324
      %v2421 = vunpack.c.l.b16 %v2325
      %v2422 = vunpack.c.l.b16 %v2326
      %v2423 = vunpack.c.l.b16 %v2327
      %v2424 = vunpack.c.l.b16 %v2328
      %v2425 = vunpack.c.l.b16 %v2329
      %v2426 = vunpack.c.l.b16 %v2330
      %v2427 = vunpack.c.l.b16 %v2331
      %v2428 = vunpack.c.l.b16 %v2332
      %v2429 = vunpack.c.l.b16 %v2333
      %v2430 = vunpack.c.l.b16 %v2334
      %v2431 = vunpack.c.l.b16 %v2335
      %v2432 = vunpack.c.l.b16 %v2336
      %v2433 = vunpack.c.l.b16 %v2337
      %v2434 = vunpack.c.l.b16 %v2338
      %v2435 = vunpack.c.l.b16 %v2339
      %v2436 = vunpack.c.l.b16 %v2340
      %v2437 = vunpack.c.l.b16 %v2341
      %v2438 = vunpack.c.l.b16 %v2342
      %v2439 = vunpack.c.l.b16 %v2343
      %v2440 = vunpack.c.l.b16 %v2344
      %v2441 = vunpack.c.l.b16 %v2345
      %v2442 = vunpack.c.l.b16 %v2346
      %v2443 = vunpack.c.l.b16 %v2347
      %v2444 = vunpack.c.l.b16 %v2348
      %v2445 = vunpack.c.l.b16 %v2349
      %v2446 = vunpack.c.l.b16 %v2350
      %v2447 = vunpack.c.l.b16 %v2351
      %v2448 = vunpack.c.l.b16 %v2352
      %v2449 = vunpack.c.l.b16 %v2353
      %v2450 = vunpack.c.l.b16 %v2354
      %v2451 = vpack.c.b16 %v2404, %v2403
      %v2452 = vpack.c.b16 %v2406, %v2405
      %v2453 = vpack.c.b16 %v2408, %v2407
      %v2454 = vpack.c.b16 %v2410, %v2409
      %v2455 = vpack.c.b16 %v2412, %v2411
      %v2456 = vpack.c.b16 %v2414, %v2413
      %v2457 = vpack.c.b16 %v2416, %v2415
      %v2458 = vpack.c.b16 %v2418, %v2417
      %v2459 = vpack.c.b16 %v2420, %v2419
      %v2460 = vpack.c.b16 %v2422, %v2421
      %v2461 = vpack.c.b16 %v2424, %v2423
      %v2462 = vpack.c.b16 %v2426, %v2425
      %v2463 = vpack.c.b16 %v2428, %v2427
      %v2464 = vpack.c.b16 %v2430, %v2429
      %v2465 = vpack.c.b16 %v2432, %v2431
      %v2466 = vpack.c.b16 %v2434, %v2433
      %v2467 = vpack.c.b16 %v2436, %v2435
      %v2468 = vpack.c.b16 %v2438, %v2437
      %v2469 = vpack.c.b16 %v2440, %v2439
      %v2470 = vpack.c.b16 %v2442, %v2441
      %v2471 = vpack.c.b16 %v2444, %v2443
      %v2472 = vpack.c.b16 %v2446, %v2445
      %v2473 = vpack.c.b16 %v2448, %v2447
      %v2474 = vpack.c.b16 %v2450, %v2449
      %2499 = vmatpush.bf16.msra.mxu0 %v2458
      %2500 = vmatpush.bf16.msra.mxu0 %v2457
      %2501 = vmatpush.bf16.msra.mxu0 %v2456
      %2502 = vmatpush.bf16.msra.mxu0 %v2455
      %2503 = vmatpush.bf16.msra.mxu0 %v2454
      %2504 = vmatpush.bf16.msra.mxu0 %v2453
      %2505 = vmatpush.bf16.msra.mxu0 %v2452
      %2506 = vmatpush.bf16.msra.mxu0 %v2451
      %2507 = vmatmul.bf16.gmra.mxu0 %v2251
      %v2508 = vpop.f32.mrf.mxu0
      %v2509 = vadd.f32 0.0, %v2508
      %v2510 = vpop.f32.mrf.mxu0
      %v2511 = vadd.f32 0.0, %v2510
      %2512 = vmatmul.bf16.gmra.mxu0 %v2252
      %v2513 = vpop.f32.mrf.mxu0
      %v2514 = vadd.f32 0.0, %v2513
      %v2515 = vpop.f32.mrf.mxu0
      %v2516 = vadd.f32 0.0, %v2515
      %2517 = vmatmul.bf16.gmra.mxu0 %v2253
      %v2518 = vpop.f32.mrf.mxu0
      %v2519 = vadd.f32 0.0, %v2518
      %v2520 = vpop.f32.mrf.mxu0
      %v2521 = vadd.f32 0.0, %v2520
      %2522 = vmatmul.bf16.gmra.mxu0 %v2254
      %v2523 = vpop.f32.mrf.mxu0
      %v2524 = vadd.f32 0.0, %v2523
      %v2525 = vpop.f32.mrf.mxu0
      %v2526 = vadd.f32 0.0, %v2525
      %2527 = vdwg.mxu0
      %2528 = vmatpush.bf16.msra.mxu0 %v2466
      %2529 = vmatpush.bf16.msra.mxu0 %v2465
      %2530 = vmatpush.bf16.msra.mxu0 %v2464
      %2531 = vmatpush.bf16.msra.mxu0 %v2463
      %2532 = vmatpush.bf16.msra.mxu0 %v2462
      %2533 = vmatpush.bf16.msra.mxu0 %v2461
      %2534 = vmatpush.bf16.msra.mxu0 %v2460
      %2535 = vmatpush.bf16.msra.mxu0 %v2459
      %2536 = vmatmul.bf16.gmra.mxu0 %v2275
      %v2537 = vpop.f32.mrf.mxu0
      %v2538 = vadd.f32 %v2509, %v2537
      %v2539 = vpop.f32.mrf.mxu0
      %v2540 = vadd.f32 %v2511, %v2539
      %2541 = vmatmul.bf16.gmra.mxu0 %v2276
      %v2542 = vpop.f32.mrf.mxu0
      %v2543 = vadd.f32 %v2514, %v2542
      %v2544 = vpop.f32.mrf.mxu0
      %v2545 = vadd.f32 %v2516, %v2544
      %2546 = vmatmul.bf16.gmra.mxu0 %v2277
      %v2547 = vpop.f32.mrf.mxu0
      %v2548 = vadd.f32 %v2519, %v2547
      %v2549 = vpop.f32.mrf.mxu0
      %v2550 = vadd.f32 %v2521, %v2549
      %2551 = vmatmul.bf16.gmra.mxu0 %v2278
      %v2552 = vpop.f32.mrf.mxu0
      %v2553 = vadd.f32 %v2524, %v2552
      %v2554 = vpop.f32.mrf.mxu0
      %v2555 = vadd.f32 %v2526, %v2554
      %2556 = vdwg.mxu0
      %2557 = vmatpush.bf16.msra.mxu0 %v2474
      %2558 = vmatpush.bf16.msra.mxu0 %v2473
      %2559 = vmatpush.bf16.msra.mxu0 %v2472
      %2560 = vmatpush.bf16.msra.mxu0 %v2471
      %2561 = vmatpush.bf16.msra.mxu0 %v2470
      %2562 = vmatpush.bf16.msra.mxu0 %v2469
      %2563 = vmatpush.bf16.msra.mxu0 %v2468
      %2564 = vmatpush.bf16.msra.mxu0 %v2467
      %2565 = vmatmul.bf16.gmra.mxu0 %v2299
      %v2566 = vpop.f32.mrf.mxu0
      %v2567 = vadd.f32 %v2538, %v2566
      %v2568 = vpop.f32.mrf.mxu0
      %v2569 = vadd.f32 %v2540, %v2568
      %2570 = vmatmul.bf16.gmra.mxu0 %v2300
      %v2571 = vpop.f32.mrf.mxu0
      %v2572 = vadd.f32 %v2543, %v2571
      %v2573 = vpop.f32.mrf.mxu0
      %v2574 = vadd.f32 %v2545, %v2573
      %2575 = vmatmul.bf16.gmra.mxu0 %v2301
      %v2576 = vpop.f32.mrf.mxu0
      %v2577 = vadd.f32 %v2548, %v2576
      %v2578 = vpop.f32.mrf.mxu0
      %v2579 = vadd.f32 %v2550, %v2578
      %2580 = vmatmul.bf16.gmra.mxu0 %v2302
      %v2581 = vpop.f32.mrf.mxu0
      %v2582 = vadd.f32 %v2553, %v2581
      %v2583 = vpop.f32.mrf.mxu0
      %v2584 = vadd.f32 %v2555, %v2583
      %2585 = vdwg.mxu0
      %v2634 = vunpack.c.l.b16 %v2139
      %v2635 = vunpack.c.l.b16 %v2140
      %v2636 = vunpack.c.l.b16 %v2141
      %v2637 = vunpack.c.l.b16 %v2142
      %v2638 = vunpack.c.l.b16 %v2143
      %v2639 = vunpack.c.l.b16 %v2144
      %v2640 = vunpack.c.l.b16 %v2145
      %v2641 = vunpack.c.l.b16 %v2146
      %v2642 = vunpack.c.l.b16 %v2147
      %v2643 = vunpack.c.l.b16 %v2148
      %v2644 = vunpack.c.l.b16 %v2149
      %v2645 = vunpack.c.l.b16 %v2150
      %v2646 = vunpack.c.l.b16 %v2151
      %v2647 = vunpack.c.l.b16 %v2152
      %v2648 = vunpack.c.l.b16 %v2153
      %v2649 = vunpack.c.l.b16 %v2154
      %v2650 = vunpack.c.l.b16 %v2155
      %v2651 = vunpack.c.l.b16 %v2156
      %v2652 = vunpack.c.l.b16 %v2157
      %v2653 = vunpack.c.l.b16 %v2158
      %v2654 = vunpack.c.l.b16 %v2159
      %v2655 = vunpack.c.l.b16 %v2160
      %v2656 = vunpack.c.l.b16 %v2161
      %v2657 = vunpack.c.l.b16 %v2162
      %v2658 = vunpack.c.l.b16 %v2163
      %v2659 = vunpack.c.l.b16 %v2164
      %v2660 = vunpack.c.l.b16 %v2165
      %v2661 = vunpack.c.l.b16 %v2166
      %v2662 = vunpack.c.l.b16 %v2167
      %v2663 = vunpack.c.l.b16 %v2168
      %v2664 = vunpack.c.l.b16 %v2169
      %v2665 = vunpack.c.l.b16 %v2170
      %v2666 = vunpack.c.l.b16 %v2171
      %v2667 = vunpack.c.l.b16 %v2172
      %v2668 = vunpack.c.l.b16 %v2173
      %v2669 = vunpack.c.l.b16 %v2174
      %v2670 = vunpack.c.l.b16 %v2175
      %v2671 = vunpack.c.l.b16 %v2176
      %v2672 = vunpack.c.l.b16 %v2177
      %v2673 = vunpack.c.l.b16 %v2178
      %v2674 = vunpack.c.l.b16 %v2179
      %v2675 = vunpack.c.l.b16 %v2180
      %v2676 = vunpack.c.l.b16 %v2181
      %v2677 = vunpack.c.l.b16 %v2182
      %v2678 = vunpack.c.l.b16 %v2183
      %v2679 = vunpack.c.l.b16 %v2184
      %v2680 = vunpack.c.l.b16 %v2185
      %v2681 = vunpack.c.l.b16 %v2186
      %v2682 = vpack.c.b16 %v2635, %v2634
      %v2683 = vpack.c.b16 %v2637, %v2636
      %v2684 = vpack.c.b16 %v2639, %v2638
      %v2685 = vpack.c.b16 %v2641, %v2640
      %v2686 = vpack.c.b16 %v2643, %v2642
      %v2687 = vpack.c.b16 %v2645, %v2644
      %v2688 = vpack.c.b16 %v2647, %v2646
      %v2689 = vpack.c.b16 %v2649, %v2648
      %v2690 = vpack.c.b16 %v2651, %v2650
      %v2691 = vpack.c.b16 %v2653, %v2652
      %v2692 = vpack.c.b16 %v2655, %v2654
      %v2693 = vpack.c.b16 %v2657, %v2656
      %v2694 = vpack.c.b16 %v2659, %v2658
      %v2695 = vpack.c.b16 %v2661, %v2660
      %v2696 = vpack.c.b16 %v2663, %v2662
      %v2697 = vpack.c.b16 %v2665, %v2664
      %v2698 = vpack.c.b16 %v2667, %v2666
      %v2699 = vpack.c.b16 %v2669, %v2668
      %v2700 = vpack.c.b16 %v2671, %v2670
      %v2701 = vpack.c.b16 %v2673, %v2672
      %v2702 = vpack.c.b16 %v2675, %v2674
      %v2703 = vpack.c.b16 %v2677, %v2676
      %v2704 = vpack.c.b16 %v2679, %v2678
      %v2705 = vpack.c.b16 %v2681, %v2680
      %2730 = vmatpush.bf16.msra.mxu0 %v2689
      %2731 = vmatpush.bf16.msra.mxu0 %v2688
      %2732 = vmatpush.bf16.msra.mxu0 %v2687
      %2733 = vmatpush.bf16.msra.mxu0 %v2686
      %2734 = vmatpush.bf16.msra.mxu0 %v2685
      %2735 = vmatpush.bf16.msra.mxu0 %v2684
      %2736 = vmatpush.bf16.msra.mxu0 %v2683
      %2737 = vmatpush.bf16.msra.mxu0 %v2682
      %2738 = vmatmul.bf16.gmra.mxu0 %v2083
      %v2739 = vpop.f32.mrf.mxu0
      %v2740 = vadd.f32 %v2567, %v2739
      %v2741 = vpop.f32.mrf.mxu0
      %v2742 = vadd.f32 %v2569, %v2741
      %2743 = vmatmul.bf16.gmra.mxu0 %v2084
      %v2744 = vpop.f32.mrf.mxu0
      %v2745 = vadd.f32 %v2572, %v2744
      %v2746 = vpop.f32.mrf.mxu0
      %v2747 = vadd.f32 %v2574, %v2746
      %2748 = vmatmul.bf16.gmra.mxu0 %v2085
      %v2749 = vpop.f32.mrf.mxu0
      %v2750 = vadd.f32 %v2577, %v2749
      %v2751 = vpop.f32.mrf.mxu0
      %v2752 = vadd.f32 %v2579, %v2751
      %2753 = vmatmul.bf16.gmra.mxu0 %v2086
      %v2754 = vpop.f32.mrf.mxu0
      %v2755 = vadd.f32 %v2582, %v2754
      %v2756 = vpop.f32.mrf.mxu0
      %v2757 = vadd.f32 %v2584, %v2756
      %2758 = vdwg.mxu0
      %2759 = vmatpush.bf16.msra.mxu0 %v2697
      %2760 = vmatpush.bf16.msra.mxu0 %v2696
      %2761 = vmatpush.bf16.msra.mxu0 %v2695
      %2762 = vmatpush.bf16.msra.mxu0 %v2694
      %2763 = vmatpush.bf16.msra.mxu0 %v2693
      %2764 = vmatpush.bf16.msra.mxu0 %v2692
      %2765 = vmatpush.bf16.msra.mxu0 %v2691
      %2766 = vmatpush.bf16.msra.mxu0 %v2690
      %2767 = vmatmul.bf16.gmra.mxu0 %v2107
      %v2768 = vpop.f32.mrf.mxu0
      %v2769 = vadd.f32 %v2740, %v2768
      %v2770 = vpop.f32.mrf.mxu0
      %v2771 = vadd.f32 %v2742, %v2770
      %2772 = vmatmul.bf16.gmra.mxu0 %v2108
      %v2773 = vpop.f32.mrf.mxu0
      %v2774 = vadd.f32 %v2745, %v2773
      %v2775 = vpop.f32.mrf.mxu0
      %v2776 = vadd.f32 %v2747, %v2775
      %2777 = vmatmul.bf16.gmra.mxu0 %v2109
      %v2778 = vpop.f32.mrf.mxu0
      %v2779 = vadd.f32 %v2750, %v2778
      %v2780 = vpop.f32.mrf.mxu0
      %v2781 = vadd.f32 %v2752, %v2780
      %2782 = vmatmul.bf16.gmra.mxu0 %v2110
      %v2783 = vpop.f32.mrf.mxu0
      %v2784 = vadd.f32 %v2755, %v2783
      %v2785 = vpop.f32.mrf.mxu0
      %v2786 = vadd.f32 %v2757, %v2785
      %2787 = vdwg.mxu0
      %2788 = vmatpush.bf16.msra.mxu0 %v2705
      %2789 = vmatpush.bf16.msra.mxu0 %v2704
      %2790 = vmatpush.bf16.msra.mxu0 %v2703
      %2791 = vmatpush.bf16.msra.mxu0 %v2702
      %2792 = vmatpush.bf16.msra.mxu0 %v2701
      %2793 = vmatpush.bf16.msra.mxu0 %v2700
      %2794 = vmatpush.bf16.msra.mxu0 %v2699
      %2795 = vmatpush.bf16.msra.mxu0 %v2698
      %2796 = vmatmul.bf16.gmra.mxu0 %v2131
      %v2797 = vpop.f32.mrf.mxu0
      %v2798 = vadd.f32 %v2769, %v2797
      %v2799 = vpop.f32.mrf.mxu0
      %v2800 = vadd.f32 %v2771, %v2799
      %2801 = vmatmul.bf16.gmra.mxu0 %v2132
      %v2802 = vpop.f32.mrf.mxu0
      %v2803 = vadd.f32 %v2774, %v2802
      %v2804 = vpop.f32.mrf.mxu0
      %v2805 = vadd.f32 %v2776, %v2804
      %2806 = vmatmul.bf16.gmra.mxu0 %v2133
      %v2807 = vpop.f32.mrf.mxu0
      %v2808 = vadd.f32 %v2779, %v2807
      %v2809 = vpop.f32.mrf.mxu0
      %v2810 = vadd.f32 %v2781, %v2809
      %2811 = vmatmul.bf16.gmra.mxu0 %v2134
      %v2812 = vpop.f32.mrf.mxu0
      %v2813 = vadd.f32 %v2784, %v2812
      %v2814 = vpop.f32.mrf.mxu0
      %v2815 = vadd.f32 %v2786, %v2814
      %2816 = vdwg.mxu0
      %s2817 = scalar_lea.vmem [#allocation3], 32
      %v2818 = vld [vmem:[%s2817] sm:$0xff]
      %v2819 = vld [vmem:[%s2817 + $0x10] sm:$0xff]
      %v2820 = vld [vmem:[%s2817 + $0x20] sm:$0xff]
      %v2821 = vld [vmem:[%s2817 + $0x30] sm:$0xff]
      %v2822 = vld [vmem:[%s2817 + $0x40] sm:$0xff]
      %v2823 = vld [vmem:[%s2817 + $0x50] sm:$0xff]
      %v2824 = vld [vmem:[%s2817 + $0x60] sm:$0xff]
      %v2825 = vld [vmem:[%s2817 + $0x70] sm:$0xff]
      %v2826 = vpack.c.bf16 %v2818, %v2818
      %v2827 = vpack.c.bf16 %v2819, %v2819
      %v2828 = vpack.c.bf16 %v2820, %v2820
      %v2829 = vpack.c.bf16 %v2821, %v2821
      %v2830 = vpack.c.bf16 %v2822, %v2822
      %v2831 = vpack.c.bf16 %v2823, %v2823
      %v2832 = vpack.c.bf16 %v2824, %v2824
      %v2833 = vpack.c.bf16 %v2825, %v2825
      %v2834 = vld [vmem:[%s2817 + $0x1] sm:$0xff]
      %v2835 = vld [vmem:[%s2817 + $0x11] sm:$0xff]
      %v2836 = vld [vmem:[%s2817 + $0x21] sm:$0xff]
      %v2837 = vld [vmem:[%s2817 + $0x31] sm:$0xff]
      %v2838 = vld [vmem:[%s2817 + $0x41] sm:$0xff]
      %v2839 = vld [vmem:[%s2817 + $0x51] sm:$0xff]
      %v2840 = vld [vmem:[%s2817 + $0x61] sm:$0xff]
      %v2841 = vld [vmem:[%s2817 + $0x71] sm:$0xff]
      %v2842 = vpack.c.bf16 %v2834, %v2834
      %v2843 = vpack.c.bf16 %v2835, %v2835
      %v2844 = vpack.c.bf16 %v2836, %v2836
      %v2845 = vpack.c.bf16 %v2837, %v2837
      %v2846 = vpack.c.bf16 %v2838, %v2838
      %v2847 = vpack.c.bf16 %v2839, %v2839
      %v2848 = vpack.c.bf16 %v2840, %v2840
      %v2849 = vpack.c.bf16 %v2841, %v2841
      %v2850 = vld [vmem:[%s2817 + $0x2] sm:$0xff]
      %v2851 = vld [vmem:[%s2817 + $0x12] sm:$0xff]
      %v2852 = vld [vmem:[%s2817 + $0x22] sm:$0xff]
      %v2853 = vld [vmem:[%s2817 + $0x32] sm:$0xff]
      %v2854 = vld [vmem:[%s2817 + $0x42] sm:$0xff]
      %v2855 = vld [vmem:[%s2817 + $0x52] sm:$0xff]
      %v2856 = vld [vmem:[%s2817 + $0x62] sm:$0xff]
      %v2857 = vld [vmem:[%s2817 + $0x72] sm:$0xff]
      %v2858 = vpack.c.bf16 %v2850, %v2850
      %v2859 = vpack.c.bf16 %v2851, %v2851
      %v2860 = vpack.c.bf16 %v2852, %v2852
      %v2861 = vpack.c.bf16 %v2853, %v2853
      %v2862 = vpack.c.bf16 %v2854, %v2854
      %v2863 = vpack.c.bf16 %v2855, %v2855
      %v2864 = vpack.c.bf16 %v2856, %v2856
      %v2865 = vpack.c.bf16 %v2857, %v2857
      %v2874 = vunpack.c.l.b16 %v2826
      %v2875 = vunpack.c.l.b16 %v2827
      %v2876 = vunpack.c.l.b16 %v2828
      %v2877 = vunpack.c.l.b16 %v2829
      %v2878 = vunpack.c.l.b16 %v2830
      %v2879 = vunpack.c.l.b16 %v2831
      %v2880 = vunpack.c.l.b16 %v2832
      %v2881 = vunpack.c.l.b16 %v2833
      %v2882 = vpack.c.b16 %v2875, %v2874
      %v2883 = vpack.c.b16 %v2877, %v2876
      %v2884 = vpack.c.b16 %v2879, %v2878
      %v2885 = vpack.c.b16 %v2881, %v2880
      %v2898 = vunpack.c.l.b16 %v2842
      %v2899 = vunpack.c.l.b16 %v2843
      %v2900 = vunpack.c.l.b16 %v2844
      %v2901 = vunpack.c.l.b16 %v2845
      %v2902 = vunpack.c.l.b16 %v2846
      %v2903 = vunpack.c.l.b16 %v2847
      %v2904 = vunpack.c.l.b16 %v2848
      %v2905 = vunpack.c.l.b16 %v2849
      %v2906 = vpack.c.b16 %v2899, %v2898
      %v2907 = vpack.c.b16 %v2901, %v2900
      %v2908 = vpack.c.b16 %v2903, %v2902
      %v2909 = vpack.c.b16 %v2905, %v2904
      %v2922 = vunpack.c.l.b16 %v2858
      %v2923 = vunpack.c.l.b16 %v2859
      %v2924 = vunpack.c.l.b16 %v2860
      %v2925 = vunpack.c.l.b16 %v2861
      %v2926 = vunpack.c.l.b16 %v2862
      %v2927 = vunpack.c.l.b16 %v2863
      %v2928 = vunpack.c.l.b16 %v2864
      %v2929 = vunpack.c.l.b16 %v2865
      %v2930 = vpack.c.b16 %v2923, %v2922
      %v2931 = vpack.c.b16 %v2925, %v2924
      %v2932 = vpack.c.b16 %v2927, %v2926
      %v2933 = vpack.c.b16 %v2929, %v2928
      %v2938 = vld [vmem:[%s8 + $0x180] sm:$0xf]
      %v2939 = vld [vmem:[%s8 + $0x184] sm:$0xf]
      %v2940 = vld [vmem:[%s8 + $0x188] sm:$0xf]
      %v2941 = vld [vmem:[%s8 + $0x18c] sm:$0xf]
      %v2942 = vld [vmem:[%s8 + $0x190] sm:$0xf]
      %v2943 = vld [vmem:[%s8 + $0x194] sm:$0xf]
      %v2944 = vld [vmem:[%s8 + $0x198] sm:$0xf]
      %v2945 = vld [vmem:[%s8 + $0x19c] sm:$0xf]
      %v2946 = vld [vmem:[%s8 + $0x1a0] sm:$0xf]
      %v2947 = vld [vmem:[%s8 + $0x1a4] sm:$0xf]
      %v2948 = vld [vmem:[%s8 + $0x1a8] sm:$0xf]
      %v2949 = vld [vmem:[%s8 + $0x1ac] sm:$0xf]
      %v2950 = vld [vmem:[%s8 + $0x1b0] sm:$0xf]
      %v2951 = vld [vmem:[%s8 + $0x1b4] sm:$0xf]
      %v2952 = vld [vmem:[%s8 + $0x1b8] sm:$0xf]
      %v2953 = vld [vmem:[%s8 + $0x1bc] sm:$0xf]
      %v2954 = vld [vmem:[%s8 + $0x1c0] sm:$0xf]
      %v2955 = vld [vmem:[%s8 + $0x1c4] sm:$0xf]
      %v2956 = vld [vmem:[%s8 + $0x1c8] sm:$0xf]
      %v2957 = vld [vmem:[%s8 + $0x1cc] sm:$0xf]
      %v2958 = vld [vmem:[%s8 + $0x1d0] sm:$0xf]
      %v2959 = vld [vmem:[%s8 + $0x1d4] sm:$0xf]
      %v2960 = vld [vmem:[%s8 + $0x1d8] sm:$0xf]
      %v2961 = vld [vmem:[%s8 + $0x1dc] sm:$0xf]
      %v2962 = vld [vmem:[%s8 + $0x1e0] sm:$0xf]
      %v2963 = vld [vmem:[%s8 + $0x1e4] sm:$0xf]
      %v2964 = vld [vmem:[%s8 + $0x1e8] sm:$0xf]
      %v2965 = vld [vmem:[%s8 + $0x1ec] sm:$0xf]
      %v2966 = vld [vmem:[%s8 + $0x1f0] sm:$0xf]
      %v2967 = vld [vmem:[%s8 + $0x1f4] sm:$0xf]
      %v2968 = vld [vmem:[%s8 + $0x1f8] sm:$0xf]
      %v2969 = vld [vmem:[%s8 + $0x1fc] sm:$0xf]
      %v2970 = vld [vmem:[%s8 + $0x200] sm:$0xf]
      %v2971 = vld [vmem:[%s8 + $0x204] sm:$0xf]
      %v2972 = vld [vmem:[%s8 + $0x208] sm:$0xf]
      %v2973 = vld [vmem:[%s8 + $0x20c] sm:$0xf]
      %v2974 = vld [vmem:[%s8 + $0x210] sm:$0xf]
      %v2975 = vld [vmem:[%s8 + $0x214] sm:$0xf]
      %v2976 = vld [vmem:[%s8 + $0x218] sm:$0xf]
      %v2977 = vld [vmem:[%s8 + $0x21c] sm:$0xf]
      %v2978 = vld [vmem:[%s8 + $0x220] sm:$0xf]
      %v2979 = vld [vmem:[%s8 + $0x224] sm:$0xf]
      %v2980 = vld [vmem:[%s8 + $0x228] sm:$0xf]
      %v2981 = vld [vmem:[%s8 + $0x22c] sm:$0xf]
      %v2982 = vld [vmem:[%s8 + $0x230] sm:$0xf]
      %v2983 = vld [vmem:[%s8 + $0x234] sm:$0xf]
      %v2984 = vld [vmem:[%s8 + $0x238] sm:$0xf]
      %v2985 = vld [vmem:[%s8 + $0x23c] sm:$0xf]
      %v3034 = vunpack.c.l.b16 %v2938
      %v3035 = vunpack.c.l.b16 %v2939
      %v3036 = vunpack.c.l.b16 %v2940
      %v3037 = vunpack.c.l.b16 %v2941
      %v3038 = vunpack.c.l.b16 %v2942
      %v3039 = vunpack.c.l.b16 %v2943
      %v3040 = vunpack.c.l.b16 %v2944
      %v3041 = vunpack.c.l.b16 %v2945
      %v3042 = vunpack.c.l.b16 %v2946
      %v3043 = vunpack.c.l.b16 %v2947
      %v3044 = vunpack.c.l.b16 %v2948
      %v3045 = vunpack.c.l.b16 %v2949
      %v3046 = vunpack.c.l.b16 %v2950
      %v3047 = vunpack.c.l.b16 %v2951
      %v3048 = vunpack.c.l.b16 %v2952
      %v3049 = vunpack.c.l.b16 %v2953
      %v3050 = vunpack.c.l.b16 %v2954
      %v3051 = vunpack.c.l.b16 %v2955
      %v3052 = vunpack.c.l.b16 %v2956
      %v3053 = vunpack.c.l.b16 %v2957
      %v3054 = vunpack.c.l.b16 %v2958
      %v3055 = vunpack.c.l.b16 %v2959
      %v3056 = vunpack.c.l.b16 %v2960
      %v3057 = vunpack.c.l.b16 %v2961
      %v3058 = vunpack.c.l.b16 %v2962
      %v3059 = vunpack.c.l.b16 %v2963
      %v3060 = vunpack.c.l.b16 %v2964
      %v3061 = vunpack.c.l.b16 %v2965
      %v3062 = vunpack.c.l.b16 %v2966
      %v3063 = vunpack.c.l.b16 %v2967
      %v3064 = vunpack.c.l.b16 %v2968
      %v3065 = vunpack.c.l.b16 %v2969
      %v3066 = vunpack.c.l.b16 %v2970
      %v3067 = vunpack.c.l.b16 %v2971
      %v3068 = vunpack.c.l.b16 %v2972
      %v3069 = vunpack.c.l.b16 %v2973
      %v3070 = vunpack.c.l.b16 %v2974
      %v3071 = vunpack.c.l.b16 %v2975
      %v3072 = vunpack.c.l.b16 %v2976
      %v3073 = vunpack.c.l.b16 %v2977
      %v3074 = vunpack.c.l.b16 %v2978
      %v3075 = vunpack.c.l.b16 %v2979
      %v3076 = vunpack.c.l.b16 %v2980
      %v3077 = vunpack.c.l.b16 %v2981
      %v3078 = vunpack.c.l.b16 %v2982
      %v3079 = vunpack.c.l.b16 %v2983
      %v3080 = vunpack.c.l.b16 %v2984
      %v3081 = vunpack.c.l.b16 %v2985
      %v3082 = vpack.c.b16 %v3035, %v3034
      %v3083 = vpack.c.b16 %v3037, %v3036
      %v3084 = vpack.c.b16 %v3039, %v3038
      %v3085 = vpack.c.b16 %v3041, %v3040
      %v3086 = vpack.c.b16 %v3043, %v3042
      %v3087 = vpack.c.b16 %v3045, %v3044
      %v3088 = vpack.c.b16 %v3047, %v3046
      %v3089 = vpack.c.b16 %v3049, %v3048
      %v3090 = vpack.c.b16 %v3051, %v3050
      %v3091 = vpack.c.b16 %v3053, %v3052
      %v3092 = vpack.c.b16 %v3055, %v3054
      %v3093 = vpack.c.b16 %v3057, %v3056
      %v3094 = vpack.c.b16 %v3059, %v3058
      %v3095 = vpack.c.b16 %v3061, %v3060
      %v3096 = vpack.c.b16 %v3063, %v3062
      %v3097 = vpack.c.b16 %v3065, %v3064
      %v3098 = vpack.c.b16 %v3067, %v3066
      %v3099 = vpack.c.b16 %v3069, %v3068
      %v3100 = vpack.c.b16 %v3071, %v3070
      %v3101 = vpack.c.b16 %v3073, %v3072
      %v3102 = vpack.c.b16 %v3075, %v3074
      %v3103 = vpack.c.b16 %v3077, %v3076
      %v3104 = vpack.c.b16 %v3079, %v3078
      %v3105 = vpack.c.b16 %v3081, %v3080
      %3130 = vmatpush.bf16.msra.mxu0 %v3089
      %3131 = vmatpush.bf16.msra.mxu0 %v3088
      %3132 = vmatpush.bf16.msra.mxu0 %v3087
      %3133 = vmatpush.bf16.msra.mxu0 %v3086
      %3134 = vmatpush.bf16.msra.mxu0 %v3085
      %3135 = vmatpush.bf16.msra.mxu0 %v3084
      %3136 = vmatpush.bf16.msra.mxu0 %v3083
      %3137 = vmatpush.bf16.msra.mxu0 %v3082
      %3138 = vmatmul.bf16.gmra.mxu0 %v2882
      %v3139 = vpop.f32.mrf.mxu0
      %v3140 = vadd.f32 0.0, %v3139
      %v3141 = vpop.f32.mrf.mxu0
      %v3142 = vadd.f32 0.0, %v3141
      %3143 = vmatmul.bf16.gmra.mxu0 %v2883
      %v3144 = vpop.f32.mrf.mxu0
      %v3145 = vadd.f32 0.0, %v3144
      %v3146 = vpop.f32.mrf.mxu0
      %v3147 = vadd.f32 0.0, %v3146
      %3148 = vmatmul.bf16.gmra.mxu0 %v2884
      %v3149 = vpop.f32.mrf.mxu0
      %v3150 = vadd.f32 0.0, %v3149
      %v3151 = vpop.f32.mrf.mxu0
      %v3152 = vadd.f32 0.0, %v3151
      %3153 = vmatmul.bf16.gmra.mxu0 %v2885
      %v3154 = vpop.f32.mrf.mxu0
      %v3155 = vadd.f32 0.0, %v3154
      %v3156 = vpop.f32.mrf.mxu0
      %v3157 = vadd.f32 0.0, %v3156
      %3158 = vdwg.mxu0
      %3159 = vmatpush.bf16.msra.mxu0 %v3097
      %3160 = vmatpush.bf16.msra.mxu0 %v3096
      %3161 = vmatpush.bf16.msra.mxu0 %v3095
      %3162 = vmatpush.bf16.msra.mxu0 %v3094
      %3163 = vmatpush.bf16.msra.mxu0 %v3093
      %3164 = vmatpush.bf16.msra.mxu0 %v3092
      %3165 = vmatpush.bf16.msra.mxu0 %v3091
      %3166 = vmatpush.bf16.msra.mxu0 %v3090
      %3167 = vmatmul.bf16.gmra.mxu0 %v2906
      %v3168 = vpop.f32.mrf.mxu0
      %v3169 = vadd.f32 %v3140, %v3168
      %v3170 = vpop.f32.mrf.mxu0
      %v3171 = vadd.f32 %v3142, %v3170
      %3172 = vmatmul.bf16.gmra.mxu0 %v2907
      %v3173 = vpop.f32.mrf.mxu0
      %v3174 = vadd.f32 %v3145, %v3173
      %v3175 = vpop.f32.mrf.mxu0
      %v3176 = vadd.f32 %v3147, %v3175
      %3177 = vmatmul.bf16.gmra.mxu0 %v2908
      %v3178 = vpop.f32.mrf.mxu0
      %v3179 = vadd.f32 %v3150, %v3178
      %v3180 = vpop.f32.mrf.mxu0
      %v3181 = vadd.f32 %v3152, %v3180
      %3182 = vmatmul.bf16.gmra.mxu0 %v2909
      %v3183 = vpop.f32.mrf.mxu0
      %v3184 = vadd.f32 %v3155, %v3183
      %v3185 = vpop.f32.mrf.mxu0
      %v3186 = vadd.f32 %v3157, %v3185
      %3187 = vdwg.mxu0
      %3188 = vmatpush.bf16.msra.mxu0 %v3105
      %3189 = vmatpush.bf16.msra.mxu0 %v3104
      %3190 = vmatpush.bf16.msra.mxu0 %v3103
      %3191 = vmatpush.bf16.msra.mxu0 %v3102
      %3192 = vmatpush.bf16.msra.mxu0 %v3101
      %3193 = vmatpush.bf16.msra.mxu0 %v3100
      %3194 = vmatpush.bf16.msra.mxu0 %v3099
      %3195 = vmatpush.bf16.msra.mxu0 %v3098
      %3196 = vmatmul.bf16.gmra.mxu0 %v2930
      %v3197 = vpop.f32.mrf.mxu0
      %v3198 = vadd.f32 %v3169, %v3197
      %v3199 = vpop.f32.mrf.mxu0
      %v3200 = vadd.f32 %v3171, %v3199
      %3201 = vmatmul.bf16.gmra.mxu0 %v2931
      %v3202 = vpop.f32.mrf.mxu0
      %v3203 = vadd.f32 %v3174, %v3202
      %v3204 = vpop.f32.mrf.mxu0
      %v3205 = vadd.f32 %v3176, %v3204
      %3206 = vmatmul.bf16.gmra.mxu0 %v2932
      %v3207 = vpop.f32.mrf.mxu0
      %v3208 = vadd.f32 %v3179, %v3207
      %v3209 = vpop.f32.mrf.mxu0
      %v3210 = vadd.f32 %v3181, %v3209
      %3211 = vmatmul.bf16.gmra.mxu0 %v2933
      %v3212 = vpop.f32.mrf.mxu0
      %v3213 = vadd.f32 %v3184, %v3212
      %v3214 = vpop.f32.mrf.mxu0
      %v3215 = vadd.f32 %v3186, %v3214
      %3216 = vdwg.mxu0
      %v3217 = vadd.f32 %v2798, %v3198
      %v3218 = vadd.f32 %v2800, %v3200
      %v3219 = vadd.f32 %v2803, %v3203
      %v3220 = vadd.f32 %v2805, %v3205
      %v3221 = vadd.f32 %v2808, %v3208
      %v3222 = vadd.f32 %v2810, %v3210
      %v3223 = vadd.f32 %v2813, %v3213
      %v3224 = vadd.f32 %v2815, %v3215
      %v3225 = vmax.f32 %v3217, 0.0
      %v3226 = vmax.f32 %v3218, 0.0
      %v3227 = vmax.f32 %v3219, 0.0
      %v3228 = vmax.f32 %v3220, 0.0
      %v3229 = vmax.f32 %v3221, 0.0
      %v3230 = vmax.f32 %v3222, 0.0
      %v3231 = vmax.f32 %v3223, 0.0
      %v3232 = vmax.f32 %v3224, 0.0
      %3233 = vst [vmem:[%s332] sm:$0xff] %v3225
      %3234 = vst [vmem:[%s332 + $0x8] sm:$0xff] %v3226
      %3235 = vst [vmem:[%s332 + $0x10] sm:$0xff] %v3227
      %3236 = vst [vmem:[%s332 + $0x18] sm:$0xff] %v3228
      %3237 = vst [vmem:[%s332 + $0x20] sm:$0xff] %v3229
      %3238 = vst [vmem:[%s332 + $0x28] sm:$0xff] %v3230
      %3239 = vst [vmem:[%s332 + $0x30] sm:$0xff] %v3231
      %3240 = vst [vmem:[%s332 + $0x38] sm:$0xff] %v3232
      %p3241 = scmp.lt.s32.totalorder %s20, 1
      %s3242 = scalar_select %p3241, %s20, 1
      %s3243 = smul.addr %s3242, 8
      %s3244 = smul.addr %s3243, 8
      %s3245 = scalar_lea.vmem %s9, %s3244
      // Predicated region
      $region57: #{double_conv3d_gcr_forward.1} parent=55 // pred_check
        %p3246 = pneg %p232
      $region58: #{double_conv3d_gcr_forward.1} parent=55 // pred_check_branch
        %3248 = sbr.rel (%p3246) target = $region60
      $region59: #{double_conv3d_gcr_forward.1} parent=55 // pred_region
        _
      $region60: #{double_conv3d_gcr_forward.1} parent=55 // pred_fallthru
        _
    $region56: #{double_conv3d_gcr_forward.1} parent=5 // pred_fallthru
      _
    %p3249 = scmp.le.s32.totalorder 2, %s15
    // Predicated region
    $region61: #{double_conv3d_gcr_forward.1} parent=5 // pred_check
      %p3250 = pneg %p3249
    $region62: #{double_conv3d_gcr_forward.1} parent=5 // pred_check_branch
      %3252 = sbr.rel (%p3250) target = $region64
    $region63: #{double_conv3d_gcr_forward.1} parent=5 // pred_region
      %s3253 = ssub.s32 %s15, 2
      // Predicated region
      $region65: #{double_conv3d_gcr_forward.1} parent=63 // pred_check
        %p3254 = pneg %p238
      $region66: #{double_conv3d_gcr_forward.1} parent=63 // pred_check_branch
        %3256 = sbr.rel (%p3254) target = $region68
      $region67: #{double_conv3d_gcr_forward.1} parent=63 // pred_region
        %p3257 = scmp.lt.s32.totalorder %s21, 1
        %s3258 = scalar_select %p3257, %s21, 1
        %s3259 = smul.addr %s3258, 8
        %s3260 = smul.addr %s3259, 8
        %s3261 = scalar_lea.vmem %s9, %s3260
      $region68: #{double_conv3d_gcr_forward.1} parent=63 // pred_fallthru
        _
    $region64: #{double_conv3d_gcr_forward.1} parent=5 // pred_fallthru
      _
  $region6: #{double_conv3d_gcr_forward.1} parent=0 // loop_footer
    %s19 = sadd.s32 1, %s15
  $region7: #{double_conv3d_gcr_forward.1} parent=0 // loop_footer_branch
    %14 = sbr.rel target = $region3
  $region8: #{double_conv3d_gcr_forward.1} parent=0 // loop_exit
    _

</llo_original>
